<compile_context>
chip_gen: v7x
topology: tpu7x:2x2x1
jax: 0.10.0
libtpu: 0.0.40
codegen_flags: <defaults>
</compile_context>

<pallas_src>
import math

import jax
import jax.numpy as jnp
from jax.experimental import pallas as pl
from jax.experimental.pallas import tpu as pltpu

_OUT_LANES = 128   # logits padded to a lane-dense 128-wide row; real logits in [:2]


def _extractor_lstm_kernel(xg_ref, whh_ref, wlin_ref, blin_ref, out_ref,
                           h_scr, c_scr):
    """One grid step == one group of Bg batch elements of the torch loop.

    (h, c) live in VMEM scratch and persist across grid steps, exactly like
    the torch code carries hidden/cell across its batch loop.

    xg_ref : (Bg, T, 4H) f32   precomputed x @ W_ih^T + (b_ih + b_hh)
    whh_ref: (4, H, H)   bf16  per-gate recurrent weights [i, f, g, o]
    wlin_ref:(H, 128)    f32   classifier weights, zero-padded past col 1
    blin_ref:(1, 128)    f32   classifier bias, -1e9 past col 1
    out_ref: (1, Bg, 128) f32  log-softmax rows (lanes 0..1 valid)
    """
    Bg, T, _ = xg_ref.shape
    H = h_scr.shape[1]

    @pl.when(pl.program_id(0) == 0)
    def _():
        h_scr[...] = jnp.zeros_like(h_scr)
        c_scr[...] = jnp.zeros_like(c_scr)

    # Constant operands: load once per grid step, reuse across every timestep
    # of every batch element in the group.  Each gate tile is (H, H).
    w_i = whh_ref[0]
    w_f = whh_ref[1]
    w_g = whh_ref[2]
    w_o = whh_ref[3]
    wlin = wlin_ref[...]     # (H, 128) f32
    blin = blin_ref[...]     # (1, 128) f32

    def batch_step(b, carry):
        h, c = carry                         # (1, H) f32 each
        xg_b = xg_ref[b]                     # (T, 4H) f32, dynamic row of group
        for t in range(T):                   # short static unroll over time
            hb = h.astype(jnp.bfloat16)
            # Per-gate (1,H)@(H,H) dots; nonlinearity applied as soon as each
            # dot result is available so EUP work overlaps the next MXU pop.
            i_g = jax.nn.sigmoid(
                xg_b[t:t + 1, 0 * H:1 * H]
                + jnp.dot(hb, w_i, preferred_element_type=jnp.float32))
            f_g = jax.nn.sigmoid(
                xg_b[t:t + 1, 1 * H:2 * H]
                + jnp.dot(hb, w_f, preferred_element_type=jnp.float32))
            g_g = jnp.tanh(
                xg_b[t:t + 1, 2 * H:3 * H]
                + jnp.dot(hb, w_g, preferred_element_type=jnp.float32))
            o_g = jax.nn.sigmoid(
                xg_b[t:t + 1, 3 * H:4 * H]
                + jnp.dot(hb, w_o, preferred_element_type=jnp.float32))
            c = f_g * c + i_g * g_g
            h = o_g * jnp.tanh(c)

        # Mish on the last hidden state (h is bounded in (-1, 1) so the naive
        # softplus is safe), Linear(H -> 2 padded to 128 lanes), log-softmax.
        # Padded lanes carry a -1e9 bias -> exp underflows to 0, so the
        # softmax is exactly over the 2 real logits.
        mish = h * jnp.tanh(jnp.log1p(jnp.exp(h)))                     # (1, H)
        z = jnp.dot(mish, wlin, preferred_element_type=jnp.float32) + blin
        m = jnp.max(z, axis=-1, keepdims=True)
        lse = m + jnp.log(jnp.sum(jnp.exp(z - m), axis=-1, keepdims=True))
        out_ref[0, pl.ds(b, 1), :] = z - lse        # lane-dense (1, 128) store
        return (h, c)

    h0 = h_scr[...]
    c0 = c_scr[...]
    hf, cf = jax.lax.fori_loop(0, Bg, batch_step, (h0, c0))
    h_scr[...] = hf
    c_scr[...] = cf


def init_torch_like_params(key, input_size, hidden_size):
    """Deterministic synthetic f32 params mimicking torch's U(-1/sqrt(H), 1/sqrt(H))."""
    D, H = input_size, hidden_size
    ks = jax.random.split(key, 6)
    bound = 1.0 / math.sqrt(H)
    u = lambda k, shape: jax.random.uniform(k, shape, jnp.float32, -bound, bound)
    return dict(
        w_ih=u(ks[0], (4 * H, D)),     # torch lstm.weight_ih_l0
        w_hh=u(ks[1], (4 * H, H)),     # torch lstm.weight_hh_l0
        b_ih=u(ks[2], (4 * H,)),
        b_hh=u(ks[3], (4 * H,)),
        w_lin=u(ks[4], (2, H)),        # torch linear.weight
        b_lin=u(ks[5], (2,)),          # torch linear.bias
    )


def prepare_kernel_params(p):
    """Kernel-side layout: bf16 LSTM weights (f32 accumulation), per-gate
    recurrent tiles, lane-padded classifier."""
    H = p["w_hh"].shape[1]
    wih_t = p["w_ih"].T.astype(jnp.bfloat16)                       # (D, 4H)
    # W_hh^T split into 4 gate tiles [i, f, g, o], each (H, H).
    whh_gates = jnp.transpose(p["w_hh"].reshape(4, H, H), (0, 2, 1)).astype(
        jnp.bfloat16)                                              # (4, H, H)
    b = (p["b_ih"] + p["b_hh"])[None, :].astype(jnp.float32)       # (1, 4H)
    wlin_pad = jnp.zeros((H, _OUT_LANES), jnp.float32).at[:, :2].set(p["w_lin"].T)
    blin_pad = jnp.full((1, _OUT_LANES), -1e9, jnp.float32).at[0, :2].set(p["b_lin"])
    return dict(wih_t=wih_t, whh_gates=whh_gates, b=b,
                wlin_pad=wlin_pad, blin_pad=blin_pad)


def extractor_lstm_forward(x, kparams, max_group=64):
    B, T, D = x.shape
    H = kparams["whh_gates"].shape[1]

    # Hoisted batched input projection (parallel, outside the serial kernel):
    # (B*T, D) @ (D, 4H) + b  -> (B, T, 4H), f32 accumulation.
    xg = (jnp.dot(x.astype(jnp.bfloat16).reshape(B * T, D), kparams["wih_t"],
                  preferred_element_type=jnp.float32)
          + kparams["b"]).reshape(B, T, 4 * H)

    # Group batch elements per grid step; pad the tail (padded elements run
    # AFTER all real ones, so the carried (h, c) of real outputs is unaffected).
    n_groups = max(1, -(-B // max_group))
    Bg = -(-B // n_groups)
    B_pad = n_groups * Bg
    if B_pad != B:
        xg = jnp.concatenate(
            [xg, jnp.zeros((B_pad - B, T, 4 * H), xg.dtype)], axis=0)

    out = pl.pallas_call(
        _extractor_lstm_kernel,
        out_shape=jax.ShapeDtypeStruct((n_groups, Bg, _OUT_LANES), jnp.float32),
        grid_spec=pltpu.PrefetchScalarGridSpec(
            num_scalar_prefetch=0,
            grid=(n_groups,),
            in_specs=[
                pl.BlockSpec((Bg, T, 4 * H), lambda i: (i, 0, 0)),     # xg
                pl.BlockSpec((4, H, H), lambda i: (0, 0, 0)),          # W_hh gates
                pl.BlockSpec((H, _OUT_LANES), lambda i: (0, 0)),       # W_lin padded
                pl.BlockSpec((1, _OUT_LANES), lambda i: (0, 0)),       # b_lin padded
            ],
            out_specs=pl.BlockSpec((1, Bg, _OUT_LANES), lambda i: (i, 0, 0)),
            scratch_shapes=[
                pltpu.VMEM((1, H), jnp.float32),   # hidden state (carried)
                pltpu.VMEM((1, H), jnp.float32),   # cell state (carried)
            ],
        ),
        compiler_params=pltpu.CompilerParams(
            # State carried across grid steps -> serial grid axis.
            dimension_semantics=("arbitrary",),
            # v5e scoped default is 16 MiB; keep headroom for larger Bg/T.
            vmem_limit_bytes=32 * 1024 * 1024,
        ),
    )(xg, kparams["whh_gates"], kparams["wlin_pad"], kparams["blin_pad"])

    return out.reshape(n_groups * Bg, _OUT_LANES)[:B, :2]


def reference_forward(x, p):
    """Pure-f32 JAX replica of the torch forward (validation target)."""
    B, T, _ = x.shape
    H = p["w_hh"].shape[1]
    w_ih_t = p["w_ih"].T
    w_hh_t = p["w_hh"].T
    b = (p["b_ih"] + p["b_hh"])[None, :]
    h = jnp.zeros((1, H), jnp.float32)
    c = jnp.zeros((1, H), jnp.float32)
    outs = []
    for i in range(B):
        xg = x[i] @ w_ih_t + b                                   # (T, 4H)
        for t in range(T):
            g = xg[t:t + 1] + h @ w_hh_t
            i_g = jax.nn.sigmoid(g[:, 0 * H:1 * H])
            f_g = jax.nn.sigmoid(g[:, 1 * H:2 * H])
            g_g = jnp.tanh(g[:, 2 * H:3 * H])
            o_g = jax.nn.sigmoid(g[:, 3 * H:4 * H])
            c = f_g * c + i_g * g_g
            h = o_g * jnp.tanh(c)
        mish = h * jnp.tanh(jax.nn.softplus(h))
        z = mish @ p["w_lin"].T + p["b_lin"][None, :]            # (1, 2)
        outs.append(jax.nn.log_softmax(z, axis=-1))
    return jnp.concatenate(outs, axis=0)


if __name__ == "__main__":
    # Small shapes consistent with the module (hidden = 2 * input_size).
    B, T, D = 2, 8, 128
    H = 2 * D

    key = jax.random.PRNGKey(0)
    kx, kp = jax.random.split(key)
    x = jax.random.normal(kx, (B, T, D), dtype=jnp.float32)

    params = init_torch_like_params(kp, D, H)
    kparams = prepare_kernel_params(params)

    out = jax.block_until_ready(extractor_lstm_forward(x, kparams))
    ref = jax.block_until_ready(reference_forward(x, params))

    assert out.shape == (B, 2), out.shape
    assert bool(jnp.all(jnp.isfinite(out)))
    # Kernel uses bf16 LSTM weights (f32 accumulation); reference is pure f32,
    # so this tolerance measures real low-precision drift.
    assert bool(jnp.allclose(out, ref, atol=3e-2, rtol=3e-2)), (out, ref)
    print("KERNEL_OK")
</pallas_src>

<mosaic_0001>
module attributes {stable_mosaic.version = 11 : i64} {
  func.func @_extractor_lstm_kernel(%arg0: i32, %arg1: memref<2x8x1024xf32, #tpu.memory_space<vmem>>, %arg2: memref<4x256x256xbf16, #tpu.memory_space<vmem>>, %arg3: memref<256x128xf32, #tpu.memory_space<vmem>>, %arg4: memref<1x128xf32, #tpu.memory_space<vmem>>, %arg5: memref<1x2x128xf32, #tpu.memory_space<vmem>>, %arg6: memref<1x256xf32, #tpu.memory_space<vmem>>, %arg7: memref<1x256xf32, #tpu.memory_space<vmem>>) attributes {dimension_semantics = [#tpu.dimension_semantics<arbitrary>], iteration_bounds = array<i64: 1>, scalar_prefetch = 0 : i64, scratch_operands = 2 : i64, tpu.core_type = #tpu.core_type<tc>, window_params = [{transform_indices = @transform_0, window_bounds = array<i64: 2, 8, 1024>}, {pipeline_mode = #tpu.pipeline_mode<synchronous>, transform_indices = @transform_1, window_bounds = array<i64: 4, 256, 256>}, {pipeline_mode = #tpu.pipeline_mode<synchronous>, transform_indices = @transform_2, window_bounds = array<i64: 256, 128>}, {pipeline_mode = #tpu.pipeline_mode<synchronous>, transform_indices = @transform_3, window_bounds = array<i64: 1, 128>}, {transform_indices = @transform_4, window_bounds = array<i64: 1, 2, 128>}]} {
    %c0_i32 = arith.constant 0 : i32
    %0 = arith.cmpi eq, %arg0, %c0_i32 : i32
    %1 = arith.extui %0 : i1 to i32
    %c0_i32_0 = arith.constant 0 : i32
    %2 = arith.cmpi ne, %1, %c0_i32_0 : i32
    scf.if %2 {
      %cst = arith.constant 0.000000e+00 : f32
      %19 = vector.broadcast %cst : f32 to vector<1x256xf32>
      %c0_23 = arith.constant 0 : index
      %c0_24 = arith.constant 0 : index
      %20 = vector.load %arg6[%c0_23, %c0_24] : memref<1x256xf32, #tpu.memory_space<vmem>>, vector<1x256xf32>
      tpu.vector_store %arg6[%c0_23, %c0_24], %19 {strides = array<i32>} : memref<1x256xf32, #tpu.memory_space<vmem>>, vector<1x256xf32>,
      %cst_25 = arith.constant 0.000000e+00 : f32
      %21 = vector.broadcast %cst_25 : f32 to vector<1x256xf32>
      %c0_26 = arith.constant 0 : index
      %c0_27 = arith.constant 0 : index
      %22 = vector.load %arg7[%c0_26, %c0_27] : memref<1x256xf32, #tpu.memory_space<vmem>>, vector<1x256xf32>
      tpu.vector_store %arg7[%c0_26, %c0_27], %21 {strides = array<i32>} : memref<1x256xf32, #tpu.memory_space<vmem>>, vector<1x256xf32>,
    } else {
    }
    %c0 = arith.constant 0 : index
    %c0_1 = arith.constant 0 : index
    %c0_2 = arith.constant 0 : index
    %3 = vector.load %arg2[%c0, %c0_1, %c0_2] : memref<4x256x256xbf16, #tpu.memory_space<vmem>>, vector<1x256x256xbf16>
    %4 = vector.shape_cast %3 : vector<1x256x256xbf16> to vector<256x256xbf16>
    %c1 = arith.constant 1 : index
    %c0_3 = arith.constant 0 : index
    %c0_4 = arith.constant 0 : index
    %5 = vector.load %arg2[%c1, %c0_3, %c0_4] : memref<4x256x256xbf16, #tpu.memory_space<vmem>>, vector<1x256x256xbf16>
    %6 = vector.shape_cast %5 : vector<1x256x256xbf16> to vector<256x256xbf16>
    %c2 = arith.constant 2 : index
    %c0_5 = arith.constant 0 : index
    %c0_6 = arith.constant 0 : index
    %7 = vector.load %arg2[%c2, %c0_5, %c0_6] : memref<4x256x256xbf16, #tpu.memory_space<vmem>>, vector<1x256x256xbf16>
    %8 = vector.shape_cast %7 : vector<1x256x256xbf16> to vector<256x256xbf16>
    %c3 = arith.constant 3 : index
    %c0_7 = arith.constant 0 : index
    %c0_8 = arith.constant 0 : index
    %9 = vector.load %arg2[%c3, %c0_7, %c0_8] : memref<4x256x256xbf16, #tpu.memory_space<vmem>>, vector<1x256x256xbf16>
    %10 = vector.shape_cast %9 : vector<1x256x256xbf16> to vector<256x256xbf16>
    %c0_9 = arith.constant 0 : index
    %c0_10 = arith.constant 0 : index
    %11 = vector.load %arg3[%c0_9, %c0_10] : memref<256x128xf32, #tpu.memory_space<vmem>>, vector<256x128xf32>
    %c0_11 = arith.constant 0 : index
    %c0_12 = arith.constant 0 : index
    %12 = vector.load %arg4[%c0_11, %c0_12] : memref<1x128xf32, #tpu.memory_space<vmem>>, vector<1x128xf32>
    %c0_13 = arith.constant 0 : index
    %c0_14 = arith.constant 0 : index
    %13 = vector.load %arg6[%c0_13, %c0_14] : memref<1x256xf32, #tpu.memory_space<vmem>>, vector<1x256xf32>
    %c0_15 = arith.constant 0 : index
    %c0_16 = arith.constant 0 : index
    %14 = vector.load %arg7[%c0_15, %c0_16] : memref<1x256xf32, #tpu.memory_space<vmem>>, vector<1x256xf32>
    %c0_i32_17 = arith.constant 0 : i32
    %c2_i32 = arith.constant 2 : i32
    %15 = arith.addi %c0_i32_17, %c2_i32 : i32
    %c1_i32 = arith.constant 1 : i32
    %16:2 = scf.for %arg8 = %c0_i32_17 to %15 step %c1_i32 iter_args(%arg9 = %13, %arg10 = %14) -> (vector<1x256xf32>, vector<1x256xf32>)  : i32 {
      %19 = arith.index_cast %arg8 : i32 to index
      %c0_23 = arith.constant 0 : index
      %c0_24 = arith.constant 0 : index
      %20 = vector.load %arg1[%19, %c0_23, %c0_24] : memref<2x8x1024xf32, #tpu.memory_space<vmem>>, vector<1x8x1024xf32>
      %21 = vector.shape_cast %20 : vector<1x8x1024xf32> to vector<8x1024xf32>
      %22 = arith.truncf %arg9 : vector<1x256xf32> to vector<1x256xbf16>
      %23 = vector.extract_strided_slice %21 {offsets = [0, 0], sizes = [1, 256], strides = [1, 1]} : vector<8x1024xf32> to vector<1x256xf32>
      %cst = arith.constant dense<0.000000e+00> : vector<1x256xf32>
      %24 = tpu.matmul %22, %4, %cst {dimension_numbers = #tpu.dot_dimension_numbers<[1], [0], [0], [1], [0, 0, 1, 1], [], []>} : vector<1x256xbf16>, vector<256x256xbf16>, vector<1x256xf32> -> vector<1x256xf32>
      %25 = arith.addf %23, %24 : vector<1x256xf32>
      %26 = arith.negf %25 : vector<1x256xf32>
      %27 = math.exp %26 : vector<1x256xf32>
      %cst_25 = arith.constant 1.000000e+00 : f32
      %28 = vector.broadcast %cst_25 : f32 to vector<1x256xf32>
      %29 = arith.addf %28, %27 : vector<1x256xf32>
      %30 = arith.divf %28, %29 : vector<1x256xf32>
      %31 = vector.extract_strided_slice %21 {offsets = [0, 256], sizes = [1, 256], strides = [1, 1]} : vector<8x1024xf32> to vector<1x256xf32>
      %cst_26 = arith.constant dense<0.000000e+00> : vector<1x256xf32>
      %32 = tpu.matmul %22, %6, %cst_26 {dimension_numbers = #tpu.dot_dimension_numbers<[1], [0], [0], [1], [0, 0, 1, 1], [], []>} : vector<1x256xbf16>, vector<256x256xbf16>, vector<1x256xf32> -> vector<1x256xf32>
      %33 = arith.addf %31, %32 : vector<1x256xf32>
      %34 = arith.negf %33 : vector<1x256xf32>
      %35 = math.exp %34 : vector<1x256xf32>
      %cst_27 = arith.constant 1.000000e+00 : f32
      %36 = vector.broadcast %cst_27 : f32 to vector<1x256xf32>
      %37 = arith.addf %36, %35 : vector<1x256xf32>
      %38 = arith.divf %36, %37 : vector<1x256xf32>
      %39 = vector.extract_strided_slice %21 {offsets = [0, 512], sizes = [1, 256], strides = [1, 1]} : vector<8x1024xf32> to vector<1x256xf32>
      %cst_28 = arith.constant dense<0.000000e+00> : vector<1x256xf32>
      %40 = tpu.matmul %22, %8, %cst_28 {dimension_numbers = #tpu.dot_dimension_numbers<[1], [0], [0], [1], [0, 0, 1, 1], [], []>} : vector<1x256xbf16>, vector<256x256xbf16>, vector<1x256xf32> -> vector<1x256xf32>
      %41 = arith.addf %39, %40 : vector<1x256xf32>
      %42 = math.tanh %41 : vector<1x256xf32>
      %43 = vector.extract_strided_slice %21 {offsets = [0, 768], sizes = [1, 256], strides = [1, 1]} : vector<8x1024xf32> to vector<1x256xf32>
      %cst_29 = arith.constant dense<0.000000e+00> : vector<1x256xf32>
      %44 = tpu.matmul %22, %10, %cst_29 {dimension_numbers = #tpu.dot_dimension_numbers<[1], [0], [0], [1], [0, 0, 1, 1], [], []>} : vector<1x256xbf16>, vector<256x256xbf16>, vector<1x256xf32> -> vector<1x256xf32>
      %45 = arith.addf %43, %44 : vector<1x256xf32>
      %46 = arith.negf %45 : vector<1x256xf32>
      %47 = math.exp %46 : vector<1x256xf32>
      %cst_30 = arith.constant 1.000000e+00 : f32
      %48 = vector.broadcast %cst_30 : f32 to vector<1x256xf32>
      %49 = arith.addf %48, %47 : vector<1x256xf32>
      %50 = arith.divf %48, %49 : vector<1x256xf32>
      %51 = arith.mulf %38, %arg10 : vector<1x256xf32>
      %52 = arith.mulf %30, %42 : vector<1x256xf32>
      %53 = arith.addf %51, %52 : vector<1x256xf32>
      %54 = math.tanh %53 : vector<1x256xf32>
      %55 = arith.mulf %50, %54 : vector<1x256xf32>
      %56 = arith.truncf %55 : vector<1x256xf32> to vector<1x256xbf16>
      %57 = vector.extract_strided_slice %21 {offsets = [1, 0], sizes = [1, 256], strides = [1, 1]} : vector<8x1024xf32> to vector<1x256xf32>
      %cst_31 = arith.constant dense<0.000000e+00> : vector<1x256xf32>
      %58 = tpu.matmul %56, %4, %cst_31 {dimension_numbers = #tpu.dot_dimension_numbers<[1], [0], [0], [1], [0, 0, 1, 1], [], []>} : vector<1x256xbf16>, vector<256x256xbf16>, vector<1x256xf32> -> vector<1x256xf32>
      %59 = arith.addf %57, %58 : vector<1x256xf32>
      %60 = arith.negf %59 : vector<1x256xf32>
      %61 = math.exp %60 : vector<1x256xf32>
      %cst_32 = arith.constant 1.000000e+00 : f32
      %62 = vector.broadcast %cst_32 : f32 to vector<1x256xf32>
      %63 = arith.addf %62, %61 : vector<1x256xf32>
      %64 = arith.divf %62, %63 : vector<1x256xf32>
      %65 = vector.extract_strided_slice %21 {offsets = [1, 256], sizes = [1, 256], strides = [1, 1]} : vector<8x1024xf32> to vector<1x256xf32>
      %cst_33 = arith.constant dense<0.000000e+00> : vector<1x256xf32>
      %66 = tpu.matmul %56, %6, %cst_33 {dimension_numbers = #tpu.dot_dimension_numbers<[1], [0], [0], [1], [0, 0, 1, 1], [], []>} : vector<1x256xbf16>, vector<256x256xbf16>, vector<1x256xf32> -> vector<1x256xf32>
      %67 = arith.addf %65, %66 : vector<1x256xf32>
      %68 = arith.negf %67 : vector<1x256xf32>
      %69 = math.exp %68 : vector<1x256xf32>
      %cst_34 = arith.constant 1.000000e+00 : f32
      %70 = vector.broadcast %cst_34 : f32 to vector<1x256xf32>
      %71 = arith.addf %70, %69 : vector<1x256xf32>
      %72 = arith.divf %70, %71 : vector<1x256xf32>
      %73 = vector.extract_strided_slice %21 {offsets = [1, 512], sizes = [1, 256], strides = [1, 1]} : vector<8x1024xf32> to vector<1x256xf32>
      %cst_35 = arith.constant dense<0.000000e+00> : vector<1x256xf32>
      %74 = tpu.matmul %56, %8, %cst_35 {dimension_numbers = #tpu.dot_dimension_numbers<[1], [0], [0], [1], [0, 0, 1, 1], [], []>} : vector<1x256xbf16>, vector<256x256xbf16>, vector<1x256xf32> -> vector<1x256xf32>
      %75 = arith.addf %73, %74 : vector<1x256xf32>
      %76 = math.tanh %75 : vector<1x256xf32>
      %77 = vector.extract_strided_slice %21 {offsets = [1, 768], sizes = [1, 256], strides = [1, 1]} : vector<8x1024xf32> to vector<1x256xf32>
      %cst_36 = arith.constant dense<0.000000e+00> : vector<1x256xf32>
      %78 = tpu.matmul %56, %10, %cst_36 {dimension_numbers = #tpu.dot_dimension_numbers<[1], [0], [0], [1], [0, 0, 1, 1], [], []>} : vector<1x256xbf16>, vector<256x256xbf16>, vector<1x256xf32> -> vector<1x256xf32>
      %79 = arith.addf %77, %78 : vector<1x256xf32>
      %80 = arith.negf %79 : vector<1x256xf32>
      %81 = math.exp %80 : vector<1x256xf32>
      %cst_37 = arith.constant 1.000000e+00 : f32
      %82 = vector.broadcast %cst_37 : f32 to vector<1x256xf32>
      %83 = arith.addf %82, %81 : vector<1x256xf32>
      %84 = arith.divf %82, %83 : vector<1x256xf32>
      %85 = arith.mulf %72, %53 : vector<1x256xf32>
      %86 = arith.mulf %64, %76 : vector<1x256xf32>
      %87 = arith.addf %85, %86 : vector<1x256xf32>
      %88 = math.tanh %87 : vector<1x256xf32>
      %89 = arith.mulf %84, %88 : vector<1x256xf32>
      %90 = arith.truncf %89 : vector<1x256xf32> to vector<1x256xbf16>
      %91 = vector.extract_strided_slice %21 {offsets = [2, 0], sizes = [1, 256], strides = [1, 1]} : vector<8x1024xf32> to vector<1x256xf32>
      %cst_38 = arith.constant dense<0.000000e+00> : vector<1x256xf32>
      %92 = tpu.matmul %90, %4, %cst_38 {dimension_numbers = #tpu.dot_dimension_numbers<[1], [0], [0], [1], [0, 0, 1, 1], [], []>} : vector<1x256xbf16>, vector<256x256xbf16>, vector<1x256xf32> -> vector<1x256xf32>
      %93 = arith.addf %91, %92 : vector<1x256xf32>
      %94 = arith.negf %93 : vector<1x256xf32>
      %95 = math.exp %94 : vector<1x256xf32>
      %cst_39 = arith.constant 1.000000e+00 : f32
      %96 = vector.broadcast %cst_39 : f32 to vector<1x256xf32>
      %97 = arith.addf %96, %95 : vector<1x256xf32>
      %98 = arith.divf %96, %97 : vector<1x256xf32>
      %99 = vector.extract_strided_slice %21 {offsets = [2, 256], sizes = [1, 256], strides = [1, 1]} : vector<8x1024xf32> to vector<1x256xf32>
      %cst_40 = arith.constant dense<0.000000e+00> : vector<1x256xf32>
      %100 = tpu.matmul %90, %6, %cst_40 {dimension_numbers = #tpu.dot_dimension_numbers<[1], [0], [0], [1], [0, 0, 1, 1], [], []>} : vector<1x256xbf16>, vector<256x256xbf16>, vector<1x256xf32> -> vector<1x256xf32>
      %101 = arith.addf %99, %100 : vector<1x256xf32>
      %102 = arith.negf %101 : vector<1x256xf32>
      %103 = math.exp %102 : vector<1x256xf32>
      %cst_41 = arith.constant 1.000000e+00 : f32
      %104 = vector.broadcast %cst_41 : f32 to vector<1x256xf32>
      %105 = arith.addf %104, %103 : vector<1x256xf32>
      %106 = arith.divf %104, %105 : vector<1x256xf32>
      %107 = vector.extract_strided_slice %21 {offsets = [2, 512], sizes = [1, 256], strides = [1, 1]} : vector<8x1024xf32> to vector<1x256xf32>
      %cst_42 = arith.constant dense<0.000000e+00> : vector<1x256xf32>
      %108 = tpu.matmul %90, %8, %cst_42 {dimension_numbers = #tpu.dot_dimension_numbers<[1], [0], [0], [1], [0, 0, 1, 1], [], []>} : vector<1x256xbf16>, vector<256x256xbf16>, vector<1x256xf32> -> vector<1x256xf32>
      %109 = arith.addf %107, %108 : vector<1x256xf32>
      %110 = math.tanh %109 : vector<1x256xf32>
      %111 = vector.extract_strided_slice %21 {offsets = [2, 768], sizes = [1, 256], strides = [1, 1]} : vector<8x1024xf32> to vector<1x256xf32>
      %cst_43 = arith.constant dense<0.000000e+00> : vector<1x256xf32>
      %112 = tpu.matmul %90, %10, %cst_43 {dimension_numbers = #tpu.dot_dimension_numbers<[1], [0], [0], [1], [0, 0, 1, 1], [], []>} : vector<1x256xbf16>, vector<256x256xbf16>, vector<1x256xf32> -> vector<1x256xf32>
      %113 = arith.addf %111, %112 : vector<1x256xf32>
      %114 = arith.negf %113 : vector<1x256xf32>
      %115 = math.exp %114 : vector<1x256xf32>
      %cst_44 = arith.constant 1.000000e+00 : f32
      %116 = vector.broadcast %cst_44 : f32 to vector<1x256xf32>
      %117 = arith.addf %116, %115 : vector<1x256xf32>
      %118 = arith.divf %116, %117 : vector<1x256xf32>
      %119 = arith.mulf %106, %87 : vector<1x256xf32>
      %120 = arith.mulf %98, %110 : vector<1x256xf32>
      %121 = arith.addf %119, %120 : vector<1x256xf32>
      %122 = math.tanh %121 : vector<1x256xf32>
      %123 = arith.mulf %118, %122 : vector<1x256xf32>
      %124 = arith.truncf %123 : vector<1x256xf32> to vector<1x256xbf16>
      %125 = vector.extract_strided_slice %21 {offsets = [3, 0], sizes = [1, 256], strides = [1, 1]} : vector<8x1024xf32> to vector<1x256xf32>
      %cst_45 = arith.constant dense<0.000000e+00> : vector<1x256xf32>
      %126 = tpu.matmul %124, %4, %cst_45 {dimension_numbers = #tpu.dot_dimension_numbers<[1], [0], [0], [1], [0, 0, 1, 1], [], []>} : vector<1x256xbf16>, vector<256x256xbf16>, vector<1x256xf32> -> vector<1x256xf32>
      %127 = arith.addf %125, %126 : vector<1x256xf32>
      %128 = arith.negf %127 : vector<1x256xf32>
      %129 = math.exp %128 : vector<1x256xf32>
      %cst_46 = arith.constant 1.000000e+00 : f32
      %130 = vector.broadcast %cst_46 : f32 to vector<1x256xf32>
      %131 = arith.addf %130, %129 : vector<1x256xf32>
      %132 = arith.divf %130, %131 : vector<1x256xf32>
      %133 = vector.extract_strided_slice %21 {offsets = [3, 256], sizes = [1, 256], strides = [1, 1]} : vector<8x1024xf32> to vector<1x256xf32>
      %cst_47 = arith.constant dense<0.000000e+00> : vector<1x256xf32>
      %134 = tpu.matmul %124, %6, %cst_47 {dimension_numbers = #tpu.dot_dimension_numbers<[1], [0], [0], [1], [0, 0, 1, 1], [], []>} : vector<1x256xbf16>, vector<256x256xbf16>, vector<1x256xf32> -> vector<1x256xf32>
      %135 = arith.addf %133, %134 : vector<1x256xf32>
      %136 = arith.negf %135 : vector<1x256xf32>
      %137 = math.exp %136 : vector<1x256xf32>
      %cst_48 = arith.constant 1.000000e+00 : f32
      %138 = vector.broadcast %cst_48 : f32 to vector<1x256xf32>
      %139 = arith.addf %138, %137 : vector<1x256xf32>
      %140 = arith.divf %138, %139 : vector<1x256xf32>
      %141 = vector.extract_strided_slice %21 {offsets = [3, 512], sizes = [1, 256], strides = [1, 1]} : vector<8x1024xf32> to vector<1x256xf32>
      %cst_49 = arith.constant dense<0.000000e+00> : vector<1x256xf32>
      %142 = tpu.matmul %124, %8, %cst_49 {dimension_numbers = #tpu.dot_dimension_numbers<[1], [0], [0], [1], [0, 0, 1, 1], [], []>} : vector<1x256xbf16>, vector<256x256xbf16>, vector<1x256xf32> -> vector<1x256xf32>
      %143 = arith.addf %141, %142 : vector<1x256xf32>
      %144 = math.tanh %143 : vector<1x256xf32>
      %145 = vector.extract_strided_slice %21 {offsets = [3, 768], sizes = [1, 256], strides = [1, 1]} : vector<8x1024xf32> to vector<1x256xf32>
      %cst_50 = arith.constant dense<0.000000e+00> : vector<1x256xf32>
      %146 = tpu.matmul %124, %10, %cst_50 {dimension_numbers = #tpu.dot_dimension_numbers<[1], [0], [0], [1], [0, 0, 1, 1], [], []>} : vector<1x256xbf16>, vector<256x256xbf16>, vector<1x256xf32> -> vector<1x256xf32>
      %147 = arith.addf %145, %146 : vector<1x256xf32>
      %148 = arith.negf %147 : vector<1x256xf32>
      %149 = math.exp %148 : vector<1x256xf32>
      %cst_51 = arith.constant 1.000000e+00 : f32
      %150 = vector.broadcast %cst_51 : f32 to vector<1x256xf32>
      %151 = arith.addf %150, %149 : vector<1x256xf32>
      %152 = arith.divf %150, %151 : vector<1x256xf32>
      %153 = arith.mulf %140, %121 : vector<1x256xf32>
      %154 = arith.mulf %132, %144 : vector<1x256xf32>
      %155 = arith.addf %153, %154 : vector<1x256xf32>
      %156 = math.tanh %155 : vector<1x256xf32>
      %157 = arith.mulf %152, %156 : vector<1x256xf32>
      %158 = arith.truncf %157 : vector<1x256xf32> to vector<1x256xbf16>
      %159 = vector.extract_strided_slice %21 {offsets = [4, 0], sizes = [1, 256], strides = [1, 1]} : vector<8x1024xf32> to vector<1x256xf32>
      %cst_52 = arith.constant dense<0.000000e+00> : vector<1x256xf32>
      %160 = tpu.matmul %158, %4, %cst_52 {dimension_numbers = #tpu.dot_dimension_numbers<[1], [0], [0], [1], [0, 0, 1, 1], [], []>} : vector<1x256xbf16>, vector<256x256xbf16>, vector<1x256xf32> -> vector<1x256xf32>
      %161 = arith.addf %159, %160 : vector<1x256xf32>
      %162 = arith.negf %161 : vector<1x256xf32>
      %163 = math.exp %162 : vector<1x256xf32>
      %cst_53 = arith.constant 1.000000e+00 : f32
      %164 = vector.broadcast %cst_53 : f32 to vector<1x256xf32>
      %165 = arith.addf %164, %163 : vector<1x256xf32>
      %166 = arith.divf %164, %165 : vector<1x256xf32>
      %167 = vector.extract_strided_slice %21 {offsets = [4, 256], sizes = [1, 256], strides = [1, 1]} : vector<8x1024xf32> to vector<1x256xf32>
      %cst_54 = arith.constant dense<0.000000e+00> : vector<1x256xf32>
      %168 = tpu.matmul %158, %6, %cst_54 {dimension_numbers = #tpu.dot_dimension_numbers<[1], [0], [0], [1], [0, 0, 1, 1], [], []>} : vector<1x256xbf16>, vector<256x256xbf16>, vector<1x256xf32> -> vector<1x256xf32>
      %169 = arith.addf %167, %168 : vector<1x256xf32>
      %170 = arith.negf %169 : vector<1x256xf32>
      %171 = math.exp %170 : vector<1x256xf32>
      %cst_55 = arith.constant 1.000000e+00 : f32
      %172 = vector.broadcast %cst_55 : f32 to vector<1x256xf32>
      %173 = arith.addf %172, %171 : vector<1x256xf32>
      %174 = arith.divf %172, %173 : vector<1x256xf32>
      %175 = vector.extract_strided_slice %21 {offsets = [4, 512], sizes = [1, 256], strides = [1, 1]} : vector<8x1024xf32> to vector<1x256xf32>
      %cst_56 = arith.constant dense<0.000000e+00> : vector<1x256xf32>
      %176 = tpu.matmul %158, %8, %cst_56 {dimension_numbers = #tpu.dot_dimension_numbers<[1], [0], [0], [1], [0, 0, 1, 1], [], []>} : vector<1x256xbf16>, vector<256x256xbf16>, vector<1x256xf32> -> vector<1x256xf32>
      %177 = arith.addf %175, %176 : vector<1x256xf32>
      %178 = math.tanh %177 : vector<1x256xf32>
      %179 = vector.extract_strided_slice %21 {offsets = [4, 768], sizes = [1, 256], strides = [1, 1]} : vector<8x1024xf32> to vector<1x256xf32>
      %cst_57 = arith.constant dense<0.000000e+00> : vector<1x256xf32>
      %180 = tpu.matmul %158, %10, %cst_57 {dimension_numbers = #tpu.dot_dimension_numbers<[1], [0], [0], [1], [0, 0, 1, 1], [], []>} : vector<1x256xbf16>, vector<256x256xbf16>, vector<1x256xf32> -> vector<1x256xf32>
      %181 = arith.addf %179, %180 : vector<1x256xf32>
      %182 = arith.negf %181 : vector<1x256xf32>
      %183 = math.exp %182 : vector<1x256xf32>
      %cst_58 = arith.constant 1.000000e+00 : f32
      %184 = vector.broadcast %cst_58 : f32 to vector<1x256xf32>
      %185 = arith.addf %184, %183 : vector<1x256xf32>
      %186 = arith.divf %184, %185 : vector<1x256xf32>
      %187 = arith.mulf %174, %155 : vector<1x256xf32>
      %188 = arith.mulf %166, %178 : vector<1x256xf32>
      %189 = arith.addf %187, %188 : vector<1x256xf32>
      %190 = math.tanh %189 : vector<1x256xf32>
      %191 = arith.mulf %186, %190 : vector<1x256xf32>
      %192 = arith.truncf %191 : vector<1x256xf32> to vector<1x256xbf16>
      %193 = vector.extract_strided_slice %21 {offsets = [5, 0], sizes = [1, 256], strides = [1, 1]} : vector<8x1024xf32> to vector<1x256xf32>
      %cst_59 = arith.constant dense<0.000000e+00> : vector<1x256xf32>
      %194 = tpu.matmul %192, %4, %cst_59 {dimension_numbers = #tpu.dot_dimension_numbers<[1], [0], [0], [1], [0, 0, 1, 1], [], []>} : vector<1x256xbf16>, vector<256x256xbf16>, vector<1x256xf32> -> vector<1x256xf32>
      %195 = arith.addf %193, %194 : vector<1x256xf32>
      %196 = arith.negf %195 : vector<1x256xf32>
      %197 = math.exp %196 : vector<1x256xf32>
      %cst_60 = arith.constant 1.000000e+00 : f32
      %198 = vector.broadcast %cst_60 : f32 to vector<1x256xf32>
      %199 = arith.addf %198, %197 : vector<1x256xf32>
      %200 = arith.divf %198, %199 : vector<1x256xf32>
      %201 = vector.extract_strided_slice %21 {offsets = [5, 256], sizes = [1, 256], strides = [1, 1]} : vector<8x1024xf32> to vector<1x256xf32>
      %cst_61 = arith.constant dense<0.000000e+00> : vector<1x256xf32>
      %202 = tpu.matmul %192, %6, %cst_61 {dimension_numbers = #tpu.dot_dimension_numbers<[1], [0], [0], [1], [0, 0, 1, 1], [], []>} : vector<1x256xbf16>, vector<256x256xbf16>, vector<1x256xf32> -> vector<1x256xf32>
      %203 = arith.addf %201, %202 : vector<1x256xf32>
      %204 = arith.negf %203 : vector<1x256xf32>
      %205 = math.exp %204 : vector<1x256xf32>
      %cst_62 = arith.constant 1.000000e+00 : f32
      %206 = vector.broadcast %cst_62 : f32 to vector<1x256xf32>
      %207 = arith.addf %206, %205 : vector<1x256xf32>
      %208 = arith.divf %206, %207 : vector<1x256xf32>
      %209 = vector.extract_strided_slice %21 {offsets = [5, 512], sizes = [1, 256], strides = [1, 1]} : vector<8x1024xf32> to vector<1x256xf32>
      %cst_63 = arith.constant dense<0.000000e+00> : vector<1x256xf32>
      %210 = tpu.matmul %192, %8, %cst_63 {dimension_numbers = #tpu.dot_dimension_numbers<[1], [0], [0], [1], [0, 0, 1, 1], [], []>} : vector<1x256xbf16>, vector<256x256xbf16>, vector<1x256xf32> -> vector<1x256xf32>
      %211 = arith.addf %209, %210 : vector<1x256xf32>
      %212 = math.tanh %211 : vector<1x256xf32>
      %213 = vector.extract_strided_slice %21 {offsets = [5, 768], sizes = [1, 256], strides = [1, 1]} : vector<8x1024xf32> to vector<1x256xf32>
      %cst_64 = arith.constant dense<0.000000e+00> : vector<1x256xf32>
      %214 = tpu.matmul %192, %10, %cst_64 {dimension_numbers = #tpu.dot_dimension_numbers<[1], [0], [0], [1], [0, 0, 1, 1], [], []>} : vector<1x256xbf16>, vector<256x256xbf16>, vector<1x256xf32> -> vector<1x256xf32>
      %215 = arith.addf %213, %214 : vector<1x256xf32>
      %216 = arith.negf %215 : vector<1x256xf32>
      %217 = math.exp %216 : vector<1x256xf32>
      %cst_65 = arith.constant 1.000000e+00 : f32
      %218 = vector.broadcast %cst_65 : f32 to vector<1x256xf32>
      %219 = arith.addf %218, %217 : vector<1x256xf32>
      %220 = arith.divf %218, %219 : vector<1x256xf32>
      %221 = arith.mulf %208, %189 : vector<1x256xf32>
      %222 = arith.mulf %200, %212 : vector<1x256xf32>
      %223 = arith.addf %221, %222 : vector<1x256xf32>
      %224 = math.tanh %223 : vector<1x256xf32>
      %225 = arith.mulf %220, %224 : vector<1x256xf32>
      %226 = arith.truncf %225 : vector<1x256xf32> to vector<1x256xbf16>
      %227 = vector.extract_strided_slice %21 {offsets = [6, 0], sizes = [1, 256], strides = [1, 1]} : vector<8x1024xf32> to vector<1x256xf32>
      %cst_66 = arith.constant dense<0.000000e+00> : vector<1x256xf32>
      %228 = tpu.matmul %226, %4, %cst_66 {dimension_numbers = #tpu.dot_dimension_numbers<[1], [0], [0], [1], [0, 0, 1, 1], [], []>} : vector<1x256xbf16>, vector<256x256xbf16>, vector<1x256xf32> -> vector<1x256xf32>
      %229 = arith.addf %227, %228 : vector<1x256xf32>
      %230 = arith.negf %229 : vector<1x256xf32>
      %231 = math.exp %230 : vector<1x256xf32>
      %cst_67 = arith.constant 1.000000e+00 : f32
      %232 = vector.broadcast %cst_67 : f32 to vector<1x256xf32>
      %233 = arith.addf %232, %231 : vector<1x256xf32>
      %234 = arith.divf %232, %233 : vector<1x256xf32>
      %235 = vector.extract_strided_slice %21 {offsets = [6, 256], sizes = [1, 256], strides = [1, 1]} : vector<8x1024xf32> to vector<1x256xf32>
      %cst_68 = arith.constant dense<0.000000e+00> : vector<1x256xf32>
      %236 = tpu.matmul %226, %6, %cst_68 {dimension_numbers = #tpu.dot_dimension_numbers<[1], [0], [0], [1], [0, 0, 1, 1], [], []>} : vector<1x256xbf16>, vector<256x256xbf16>, vector<1x256xf32> -> vector<1x256xf32>
      %237 = arith.addf %235, %236 : vector<1x256xf32>
      %238 = arith.negf %237 : vector<1x256xf32>
      %239 = math.exp %238 : vector<1x256xf32>
      %cst_69 = arith.constant 1.000000e+00 : f32
      %240 = vector.broadcast %cst_69 : f32 to vector<1x256xf32>
      %241 = arith.addf %240, %239 : vector<1x256xf32>
      %242 = arith.divf %240, %241 : vector<1x256xf32>
      %243 = vector.extract_strided_slice %21 {offsets = [6, 512], sizes = [1, 256], strides = [1, 1]} : vector<8x1024xf32> to vector<1x256xf32>
      %cst_70 = arith.constant dense<0.000000e+00> : vector<1x256xf32>
      %244 = tpu.matmul %226, %8, %cst_70 {dimension_numbers = #tpu.dot_dimension_numbers<[1], [0], [0], [1], [0, 0, 1, 1], [], []>} : vector<1x256xbf16>, vector<256x256xbf16>, vector<1x256xf32> -> vector<1x256xf32>
      %245 = arith.addf %243, %244 : vector<1x256xf32>
      %246 = math.tanh %245 : vector<1x256xf32>
      %247 = vector.extract_strided_slice %21 {offsets = [6, 768], sizes = [1, 256], strides = [1, 1]} : vector<8x1024xf32> to vector<1x256xf32>
      %cst_71 = arith.constant dense<0.000000e+00> : vector<1x256xf32>
      %248 = tpu.matmul %226, %10, %cst_71 {dimension_numbers = #tpu.dot_dimension_numbers<[1], [0], [0], [1], [0, 0, 1, 1], [], []>} : vector<1x256xbf16>, vector<256x256xbf16>, vector<1x256xf32> -> vector<1x256xf32>
      %249 = arith.addf %247, %248 : vector<1x256xf32>
      %250 = arith.negf %249 : vector<1x256xf32>
      %251 = math.exp %250 : vector<1x256xf32>
      %cst_72 = arith.constant 1.000000e+00 : f32
      %252 = vector.broadcast %cst_72 : f32 to vector<1x256xf32>
      %253 = arith.addf %252, %251 : vector<1x256xf32>
      %254 = arith.divf %252, %253 : vector<1x256xf32>
      %255 = arith.mulf %242, %223 : vector<1x256xf32>
      %256 = arith.mulf %234, %246 : vector<1x256xf32>
      %257 = arith.addf %255, %256 : vector<1x256xf32>
      %258 = math.tanh %257 : vector<1x256xf32>
      %259 = arith.mulf %254, %258 : vector<1x256xf32>
      %260 = arith.truncf %259 : vector<1x256xf32> to vector<1x256xbf16>
      %261 = vector.extract_strided_slice %21 {offsets = [7, 0], sizes = [1, 256], strides = [1, 1]} : vector<8x1024xf32> to vector<1x256xf32>
      %cst_73 = arith.constant dense<0.000000e+00> : vector<1x256xf32>
      %262 = tpu.matmul %260, %4, %cst_73 {dimension_numbers = #tpu.dot_dimension_numbers<[1], [0], [0], [1], [0, 0, 1, 1], [], []>} : vector<1x256xbf16>, vector<256x256xbf16>, vector<1x256xf32> -> vector<1x256xf32>
      %263 = arith.addf %261, %262 : vector<1x256xf32>
      %264 = arith.negf %263 : vector<1x256xf32>
      %265 = math.exp %264 : vector<1x256xf32>
      %cst_74 = arith.constant 1.000000e+00 : f32
      %266 = vector.broadcast %cst_74 : f32 to vector<1x256xf32>
      %267 = arith.addf %266, %265 : vector<1x256xf32>
      %268 = arith.divf %266, %267 : vector<1x256xf32>
      %269 = vector.extract_strided_slice %21 {offsets = [7, 256], sizes = [1, 256], strides = [1, 1]} : vector<8x1024xf32> to vector<1x256xf32>
      %cst_75 = arith.constant dense<0.000000e+00> : vector<1x256xf32>
      %270 = tpu.matmul %260, %6, %cst_75 {dimension_numbers = #tpu.dot_dimension_numbers<[1], [0], [0], [1], [0, 0, 1, 1], [], []>} : vector<1x256xbf16>, vector<256x256xbf16>, vector<1x256xf32> -> vector<1x256xf32>
      %271 = arith.addf %269, %270 : vector<1x256xf32>
      %272 = arith.negf %271 : vector<1x256xf32>
      %273 = math.exp %272 : vector<1x256xf32>
      %cst_76 = arith.constant 1.000000e+00 : f32
      %274 = vector.broadcast %cst_76 : f32 to vector<1x256xf32>
      %275 = arith.addf %274, %273 : vector<1x256xf32>
      %276 = arith.divf %274, %275 : vector<1x256xf32>
      %277 = vector.extract_strided_slice %21 {offsets = [7, 512], sizes = [1, 256], strides = [1, 1]} : vector<8x1024xf32> to vector<1x256xf32>
      %cst_77 = arith.constant dense<0.000000e+00> : vector<1x256xf32>
      %278 = tpu.matmul %260, %8, %cst_77 {dimension_numbers = #tpu.dot_dimension_numbers<[1], [0], [0], [1], [0, 0, 1, 1], [], []>} : vector<1x256xbf16>, vector<256x256xbf16>, vector<1x256xf32> -> vector<1x256xf32>
      %279 = arith.addf %277, %278 : vector<1x256xf32>
      %280 = math.tanh %279 : vector<1x256xf32>
      %281 = vector.extract_strided_slice %21 {offsets = [7, 768], sizes = [1, 256], strides = [1, 1]} : vector<8x1024xf32> to vector<1x256xf32>
      %cst_78 = arith.constant dense<0.000000e+00> : vector<1x256xf32>
      %282 = tpu.matmul %260, %10, %cst_78 {dimension_numbers = #tpu.dot_dimension_numbers<[1], [0], [0], [1], [0, 0, 1, 1], [], []>} : vector<1x256xbf16>, vector<256x256xbf16>, vector<1x256xf32> -> vector<1x256xf32>
      %283 = arith.addf %281, %282 : vector<1x256xf32>
      %284 = arith.negf %283 : vector<1x256xf32>
      %285 = math.exp %284 : vector<1x256xf32>
      %cst_79 = arith.constant 1.000000e+00 : f32
      %286 = vector.broadcast %cst_79 : f32 to vector<1x256xf32>
      %287 = arith.addf %286, %285 : vector<1x256xf32>
      %288 = arith.divf %286, %287 : vector<1x256xf32>
      %289 = arith.mulf %276, %257 : vector<1x256xf32>
      %290 = arith.mulf %268, %280 : vector<1x256xf32>
      %291 = arith.addf %289, %290 : vector<1x256xf32>
      %292 = math.tanh %291 : vector<1x256xf32>
      %293 = arith.mulf %288, %292 : vector<1x256xf32>
      %294 = math.exp %293 : vector<1x256xf32>
      %295 = math.log1p %294 : vector<1x256xf32>
      %296 = math.tanh %295 : vector<1x256xf32>
      %297 = arith.mulf %293, %296 : vector<1x256xf32>
      %cst_80 = arith.constant dense<0.000000e+00> : vector<1x128xf32>
      %298 = tpu.matmul %297, %11, %cst_80 {dimension_numbers = #tpu.dot_dimension_numbers<[1], [0], [0], [1], [0, 0, 1, 1], [], []>} : vector<1x256xf32>, vector<256x128xf32>, vector<1x128xf32> -> vector<1x128xf32>
      %299 = arith.addf %298, %12 : vector<1x128xf32>
      %cst_81 = arith.constant dense<0xFF800000> : vector<1xf32>
      %300 = vector.multi_reduction <maximumf>, %299, %cst_81 [1] : vector<1x128xf32> to vector<1xf32>
      %301 = vector.shape_cast %300 : vector<1xf32> to vector<1x1xf32>
      %302 = vector.broadcast %301 : vector<1x1xf32> to vector<1x128xf32>
      %303 = arith.subf %299, %302 : vector<1x128xf32>
      %304 = math.exp %303 : vector<1x128xf32>
      %cst_82 = arith.constant dense<0.000000e+00> : vector<1xf32>
      %305 = vector.multi_reduction <add>, %304, %cst_82 [1] : vector<1x128xf32> to vector<1xf32>
      %306 = vector.shape_cast %305 : vector<1xf32> to vector<1x1xf32>
      %307 = math.log %306 : vector<1x1xf32>
      %308 = arith.addf %301, %307 : vector<1x1xf32>
      %309 = vector.broadcast %308 : vector<1x1xf32> to vector<1x128xf32>
      %310 = arith.subf %299, %309 : vector<1x128xf32>
      %c0_83 = arith.constant 0 : index
      %311 = arith.index_cast %arg8 : i32 to index
      %c0_84 = arith.constant 0 : index
      %312 = vector.load %arg5[%c0_83, %311, %c0_84] : memref<1x2x128xf32, #tpu.memory_space<vmem>>, vector<1x1x128xf32>
      %313 = vector.shape_cast %312 : vector<1x1x128xf32> to vector<1x128xf32>
      %314 = vector.shape_cast %310 : vector<1x128xf32> to vector<1x1x128xf32>
      tpu.vector_store %arg5[%c0_83, %311, %c0_84], %314 {strides = array<i32>} : memref<1x2x128xf32, #tpu.memory_space<vmem>>, vector<1x1x128xf32>,
      scf.yield %293, %291 : vector<1x256xf32>, vector<1x256xf32>
    }
    %c2_i32_18 = arith.constant 2 : i32
    %c0_19 = arith.constant 0 : index
    %c0_20 = arith.constant 0 : index
    %17 = vector.load %arg6[%c0_19, %c0_20] : memref<1x256xf32, #tpu.memory_space<vmem>>, vector<1x256xf32>
    tpu.vector_store %arg6[%c0_19, %c0_20], %16#0 {strides = array<i32>} : memref<1x256xf32, #tpu.memory_space<vmem>>, vector<1x256xf32>,
    %c0_21 = arith.constant 0 : index
    %c0_22 = arith.constant 0 : index
    %18 = vector.load %arg7[%c0_21, %c0_22] : memref<1x256xf32, #tpu.memory_space<vmem>>, vector<1x256xf32>
    tpu.vector_store %arg7[%c0_21, %c0_22], %16#1 {strides = array<i32>} : memref<1x256xf32, #tpu.memory_space<vmem>>, vector<1x256xf32>,
    return
  }
  func.func @transform_0(%arg0: i32) -> (i32, i32, i32) {
    %c0_i32 = arith.constant 0 : i32
    %c0_i32_0 = arith.constant 0 : i32
    %c0_i32_1 = arith.constant 0 : i32
    return %arg0, %c0_i32, %c0_i32_0 : i32, i32, i32
  }
  func.func @transform_1(%arg0: i32) -> (i32, i32, i32) {
    %c0_i32 = arith.constant 0 : i32
    %c0_i32_0 = arith.constant 0 : i32
    %c0_i32_1 = arith.constant 0 : i32
    %c0_i32_2 = arith.constant 0 : i32
    return %c0_i32, %c0_i32_0, %c0_i32_1 : i32, i32, i32
  }
  func.func @transform_2(%arg0: i32) -> (i32, i32) {
    %c0_i32 = arith.constant 0 : i32
    %c0_i32_0 = arith.constant 0 : i32
    %c0_i32_1 = arith.constant 0 : i32
    return %c0_i32, %c0_i32_0 : i32, i32
  }
  func.func @transform_3(%arg0: i32) -> (i32, i32) {
    %c0_i32 = arith.constant 0 : i32
    %c0_i32_0 = arith.constant 0 : i32
    %c0_i32_1 = arith.constant 0 : i32
    return %c0_i32, %c0_i32_0 : i32, i32
  }
  func.func @transform_4(%arg0: i32) -> (i32, i32, i32) {
    %c0_i32 = arith.constant 0 : i32
    %c0_i32_0 = arith.constant 0 : i32
    %c0_i32_1 = arith.constant 0 : i32
    return %arg0, %c0_i32, %c0_i32_0 : i32, i32, i32
  }
}

</mosaic_0001>

<llo_original>
// kernel: tpu_custom_call.1
$region0: #{tpu_custom_call.1}
  #allocation0 [shape = 'u32[]', space=smem, size = 0x4, offset = 0x4, fixed_abs, tag = 'smem constant byte address 0x4 - core index']
  #allocation1 [shape = 'u32[144,128]{1,0:T(1,128)}', space=vmem, size = 0x12000, scoped, tag = 'internal scratch']
  #allocation2 [shape = 'f32[1,256]{1,0:T(1,128)}', space=vmem, size = 0x400, scoped, tag = 'scratch operand']
  #allocation3 [shape = 'f32[1,256]{1,0:T(1,128)}', space=vmem, size = 0x400, scoped, tag = 'scratch operand']
  %s0 = inlined_call_operand.hbm [shape: f32[2,8,1024], index: 0, kind: input, shape index: {}]
  %s1 = inlined_call_operand.hbm [shape: bf16[4,256,256], index: 1, kind: input, shape index: {}]
  %s2 = inlined_call_operand.hbm [shape: f32[256,128], index: 2, kind: input, shape index: {}]
  %s3 = inlined_call_operand.vmem [shape: f32[1,128], index: 3, kind: input, shape index: {}]
  %s4 = inlined_call_operand.hbm [shape: f32[1,2,128], index: 4, kind: output, shape index: {}]
  %s5 = sld [smem:[#allocation0]]
  $region49: #{tpu_custom_call.1} parent=0
    _
  %s7 = ssub.s32 1, %s5
  %s8 = scalar_select 0, %s7, %s5
  $region1: #{tpu_custom_call.1} parent=0
    #allocation4 [shape = 'u8[65536]{0}', space=vmem, size = 0x10000, scoped, tag = 'input window, operand 0, single buffered']
    #allocation5 [shape = 's32[1]{0}', space=sflag, size = 0x4, scoped, tag = 'scoped memory for tpu_custom_call.1']
    #allocation6 [shape = 's32[1]{0}', space=sflag, size = 0x4, scoped, tag = 'scoped memory for tpu_custom_call.1']
    #allocation7 [shape = 'u8[524288]{0}', space=vmem, size = 0x80000, scoped, tag = 'input window, operand 1, single buffered']
    #allocation8 [shape = 's32[1]{0}', space=sflag, size = 0x4, scoped, tag = 'scoped memory for tpu_custom_call.1']
    #allocation9 [shape = 'u8[131072]{0}', space=vmem, size = 0x20000, scoped, tag = 'input window, operand 2, single buffered']
    #allocation10 [shape = 'u8[1024]{0}', space=vmem, size = 0x400, scoped, tag = 'output window, operand 0, single buffered']
    %9 = vsyncpa [#allocation5], 0
    %10 = vsyncpa [#allocation8], 0
    %11 = vsyncpa [#allocation6], 0
    // Predicated region
    $region2: #{tpu_custom_call.1} parent=1 // pred_check
      _
    $region3: #{tpu_custom_call.1} parent=1 // pred_check_branch
      %13 = sbr.rel (0) target = $region5
    $region4: #{tpu_custom_call.1} parent=1 // pred_region
      %s15 = ssub.s32 2048, 2048
      %16 = vsyncadd [#allocation5], %s15
      %s17 = sshll.u32 [#allocation4], 4
      %s18 = int_to_ptr.vmem [resolvable:$true] %s17
      %23 = dma.hbm_to_vmem [thread:$0]  %s0, 2048, %s18, [#allocation5], 1024, 1024, 64
    $region5: #{tpu_custom_call.1} parent=1 // pred_fallthru
      _
    // Predicated region
    $region6: #{tpu_custom_call.1} parent=1 // pred_check
      _
    $region7: #{tpu_custom_call.1} parent=1 // pred_check_branch
      %25 = sbr.rel (0) target = $region9
    $region8: #{tpu_custom_call.1} parent=1 // pred_region
      %s27 = ssub.s32 16384, 16384
      %28 = vsyncadd [#allocation8], %s27
      %s29 = sshll.u32 [#allocation7], 4
      %s30 = int_to_ptr.vmem [resolvable:$true] %s29
      %35 = dma.hbm_to_vmem [thread:$0]  %s1, 16384, %s30, [#allocation8], 128, 128, 8
    $region9: #{tpu_custom_call.1} parent=1 // pred_fallthru
      _
    // Predicated region
    $region10: #{tpu_custom_call.1} parent=1 // pred_check
      _
    $region11: #{tpu_custom_call.1} parent=1 // pred_check_branch
      %37 = sbr.rel (0) target = $region13
    $region12: #{tpu_custom_call.1} parent=1 // pred_region
      %s39 = ssub.s32 4096, 4096
      %40 = vsyncadd [#allocation8], %s39
      %s41 = sshll.u32 [#allocation9], 4
      %s42 = int_to_ptr.vmem [resolvable:$true] %s41
      %47 = dma.hbm_to_vmem [thread:$0]  %s2, 4096, %s42, [#allocation8], 128, 128, 8
    $region13: #{tpu_custom_call.1} parent=1 // pred_fallthru
      _
    // Predicated region
    $region14: #{tpu_custom_call.1} parent=1 // pred_check
      _
    $region15: #{tpu_custom_call.1} parent=1 // pred_check_branch
      %49 = sbr.rel (0) target = $region17
    $region16: #{tpu_custom_call.1} parent=1 // pred_region
      _
    $region17: #{tpu_custom_call.1} parent=1 // pred_fallthru
      _
    // Predicated region
    $region18: #{tpu_custom_call.1} parent=1 // pred_check
      _
    $region19: #{tpu_custom_call.1} parent=1 // pred_check_branch
      %51 = sbr.rel (0) target = $region21
    $region20: #{tpu_custom_call.1} parent=1 // pred_region
      %52 = dma.done [#allocation5], 2048
    $region21: #{tpu_custom_call.1} parent=1 // pred_fallthru
      _
    // Predicated region
    $region22: #{tpu_custom_call.1} parent=1 // pred_check
      _
    $region23: #{tpu_custom_call.1} parent=1 // pred_check_branch
      %54 = sbr.rel (0) target = $region25
    $region24: #{tpu_custom_call.1} parent=1 // pred_region
      %55 = dma.done [#allocation8], 16384
    $region25: #{tpu_custom_call.1} parent=1 // pred_fallthru
      _
    // Predicated region
    $region26: #{tpu_custom_call.1} parent=1 // pred_check
      _
    $region27: #{tpu_custom_call.1} parent=1 // pred_check_branch
      %57 = sbr.rel (0) target = $region29
    $region28: #{tpu_custom_call.1} parent=1 // pred_region
      %58 = dma.done [#allocation8], 4096
    $region29: #{tpu_custom_call.1} parent=1 // pred_fallthru
      _
    %p59 = scmp.eq.s32.totalorder 0, 0
    // Predicated region
    $region30: #{tpu_custom_call.1} parent=1 // pred_check
      %p60 = pneg %p59
    $region31: #{tpu_custom_call.1} parent=1 // pred_check_branch
      %62 = sbr.rel (%p60) target = $region33
    $region32: #{tpu_custom_call.1} parent=1 // pred_region
      %v63 = vlaneseq
      %vm64 = vcmp.ge.s32.totalorder %v63, 0
      %vm65 = vcmp.lt.s32.totalorder %v63, 256
      %vm66 = vmand %vm64, %vm65
      %67 = vst.msk [vmem:[#allocation2] sm:$0x3] %vm66, 0.0
      %68 = vst.msk [vmem:[#allocation3] sm:$0x3] %vm66, 0.0
    $region33: #{tpu_custom_call.1} parent=1 // pred_fallthru
      _
    %v69 = vld [vmem:[#allocation7] sm:$0xff]
    %v70 = vld [vmem:[#allocation7 + $0x8] sm:$0xff]
    %v71 = vld [vmem:[#allocation7 + $0x10] sm:$0xff]
    %v72 = vld [vmem:[#allocation7 + $0x18] sm:$0xff]
    %v73 = vld [vmem:[#allocation7 + $0x20] sm:$0xff]
    %v74 = vld [vmem:[#allocation7 + $0x28] sm:$0xff]
    %v75 = vld [vmem:[#allocation7 + $0x30] sm:$0xff]
    %v76 = vld [vmem:[#allocation7 + $0x38] sm:$0xff]
    %v77 = vld [vmem:[#allocation7 + $0x40] sm:$0xff]
    %v78 = vld [vmem:[#allocation7 + $0x48] sm:$0xff]
    %v79 = vld [vmem:[#allocation7 + $0x50] sm:$0xff]
    %v80 = vld [vmem:[#allocation7 + $0x58] sm:$0xff]
    %v81 = vld [vmem:[#allocation7 + $0x60] sm:$0xff]
    %v82 = vld [vmem:[#allocation7 + $0x68] sm:$0xff]
    %v83 = vld [vmem:[#allocation7 + $0x70] sm:$0xff]
    %v84 = vld [vmem:[#allocation7 + $0x78] sm:$0xff]
    %v85 = vld [vmem:[#allocation7 + $0x80] sm:$0xff]
    %v86 = vld [vmem:[#allocation7 + $0x88] sm:$0xff]
    %v87 = vld [vmem:[#allocation7 + $0x90] sm:$0xff]
    %v88 = vld [vmem:[#allocation7 + $0x98] sm:$0xff]
    %v89 = vld [vmem:[#allocation7 + $0xa0] sm:$0xff]
    %v90 = vld [vmem:[#allocation7 + $0xa8] sm:$0xff]
    %v91 = vld [vmem:[#allocation7 + $0xb0] sm:$0xff]
    %v92 = vld [vmem:[#allocation7 + $0xb8] sm:$0xff]
    %v93 = vld [vmem:[#allocation7 + $0xc0] sm:$0xff]
    %v94 = vld [vmem:[#allocation7 + $0xc8] sm:$0xff]
    %v95 = vld [vmem:[#allocation7 + $0xd0] sm:$0xff]
    %v96 = vld [vmem:[#allocation7 + $0xd8] sm:$0xff]
    %v97 = vld [vmem:[#allocation7 + $0xe0] sm:$0xff]
    %v98 = vld [vmem:[#allocation7 + $0xe8] sm:$0xff]
    %v99 = vld [vmem:[#allocation7 + $0xf0] sm:$0xff]
    %v100 = vld [vmem:[#allocation7 + $0xf8] sm:$0xff]
    %s101 = scalar_lea.vmem [#allocation7], 256
    %v102 = vld [vmem:[%s101] sm:$0xff]
    %v103 = vld [vmem:[%s101 + $0x8] sm:$0xff]
    %v104 = vld [vmem:[%s101 + $0x10] sm:$0xff]
    %v105 = vld [vmem:[%s101 + $0x18] sm:$0xff]
    %v106 = vld [vmem:[%s101 + $0x20] sm:$0xff]
    %v107 = vld [vmem:[%s101 + $0x28] sm:$0xff]
    %v108 = vld [vmem:[%s101 + $0x30] sm:$0xff]
    %v109 = vld [vmem:[%s101 + $0x38] sm:$0xff]
    %v110 = vld [vmem:[%s101 + $0x40] sm:$0xff]
    %v111 = vld [vmem:[%s101 + $0x48] sm:$0xff]
    %v112 = vld [vmem:[%s101 + $0x50] sm:$0xff]
    %v113 = vld [vmem:[%s101 + $0x58] sm:$0xff]
    %v114 = vld [vmem:[%s101 + $0x60] sm:$0xff]
    %v115 = vld [vmem:[%s101 + $0x68] sm:$0xff]
    %v116 = vld [vmem:[%s101 + $0x70] sm:$0xff]
    %v117 = vld [vmem:[%s101 + $0x78] sm:$0xff]
    %v118 = vld [vmem:[%s101 + $0x80] sm:$0xff]
    %v119 = vld [vmem:[%s101 + $0x88] sm:$0xff]
    %v120 = vld [vmem:[%s101 + $0x90] sm:$0xff]
    %v121 = vld [vmem:[%s101 + $0x98] sm:$0xff]
    %v122 = vld [vmem:[%s101 + $0xa0] sm:$0xff]
    %v123 = vld [vmem:[%s101 + $0xa8] sm:$0xff]
    %v124 = vld [vmem:[%s101 + $0xb0] sm:$0xff]
    %v125 = vld [vmem:[%s101 + $0xb8] sm:$0xff]
    %v126 = vld [vmem:[%s101 + $0xc0] sm:$0xff]
    %v127 = vld [vmem:[%s101 + $0xc8] sm:$0xff]
    %v128 = vld [vmem:[%s101 + $0xd0] sm:$0xff]
    %v129 = vld [vmem:[%s101 + $0xd8] sm:$0xff]
    %v130 = vld [vmem:[%s101 + $0xe0] sm:$0xff]
    %v131 = vld [vmem:[%s101 + $0xe8] sm:$0xff]
    %v132 = vld [vmem:[%s101 + $0xf0] sm:$0xff]
    %v133 = vld [vmem:[%s101 + $0xf8] sm:$0xff]
    %s134 = scalar_lea.vmem [#allocation7], 512
    %v135 = vld [vmem:[%s134] sm:$0xff]
    %v136 = vld [vmem:[%s134 + $0x8] sm:$0xff]
    %v137 = vld [vmem:[%s134 + $0x10] sm:$0xff]
    %v138 = vld [vmem:[%s134 + $0x18] sm:$0xff]
    %v139 = vld [vmem:[%s134 + $0x20] sm:$0xff]
    %v140 = vld [vmem:[%s134 + $0x28] sm:$0xff]
    %v141 = vld [vmem:[%s134 + $0x30] sm:$0xff]
    %v142 = vld [vmem:[%s134 + $0x38] sm:$0xff]
    %v143 = vld [vmem:[%s134 + $0x40] sm:$0xff]
    %v144 = vld [vmem:[%s134 + $0x48] sm:$0xff]
    %v145 = vld [vmem:[%s134 + $0x50] sm:$0xff]
    %v146 = vld [vmem:[%s134 + $0x58] sm:$0xff]
    %v147 = vld [vmem:[%s134 + $0x60] sm:$0xff]
    %v148 = vld [vmem:[%s134 + $0x68] sm:$0xff]
    %v149 = vld [vmem:[%s134 + $0x70] sm:$0xff]
    %v150 = vld [vmem:[%s134 + $0x78] sm:$0xff]
    %v151 = vld [vmem:[%s134 + $0x80] sm:$0xff]
    %v152 = vld [vmem:[%s134 + $0x88] sm:$0xff]
    %v153 = vld [vmem:[%s134 + $0x90] sm:$0xff]
    %v154 = vld [vmem:[%s134 + $0x98] sm:$0xff]
    %v155 = vld [vmem:[%s134 + $0xa0] sm:$0xff]
    %v156 = vld [vmem:[%s134 + $0xa8] sm:$0xff]
    %v157 = vld [vmem:[%s134 + $0xb0] sm:$0xff]
    %v158 = vld [vmem:[%s134 + $0xb8] sm:$0xff]
    %v159 = vld [vmem:[%s134 + $0xc0] sm:$0xff]
    %v160 = vld [vmem:[%s134 + $0xc8] sm:$0xff]
    %v161 = vld [vmem:[%s134 + $0xd0] sm:$0xff]
    %v162 = vld [vmem:[%s134 + $0xd8] sm:$0xff]
    %v163 = vld [vmem:[%s134 + $0xe0] sm:$0xff]
    %v164 = vld [vmem:[%s134 + $0xe8] sm:$0xff]
    %v165 = vld [vmem:[%s134 + $0xf0] sm:$0xff]
    %v166 = vld [vmem:[%s134 + $0xf8] sm:$0xff]
    %s167 = scalar_lea.vmem [#allocation7], 768
    %v168 = vld [vmem:[%s167] sm:$0xff]
    %v169 = vld [vmem:[%s167 + $0x8] sm:$0xff]
    %v170 = vld [vmem:[%s167 + $0x10] sm:$0xff]
    %v171 = vld [vmem:[%s167 + $0x18] sm:$0xff]
    %v172 = vld [vmem:[%s167 + $0x20] sm:$0xff]
    %v173 = vld [vmem:[%s167 + $0x28] sm:$0xff]
    %v174 = vld [vmem:[%s167 + $0x30] sm:$0xff]
    %v175 = vld [vmem:[%s167 + $0x38] sm:$0xff]
    %v176 = vld [vmem:[%s167 + $0x40] sm:$0xff]
    %v177 = vld [vmem:[%s167 + $0x48] sm:$0xff]
    %v178 = vld [vmem:[%s167 + $0x50] sm:$0xff]
    %v179 = vld [vmem:[%s167 + $0x58] sm:$0xff]
    %v180 = vld [vmem:[%s167 + $0x60] sm:$0xff]
    %v181 = vld [vmem:[%s167 + $0x68] sm:$0xff]
    %v182 = vld [vmem:[%s167 + $0x70] sm:$0xff]
    %v183 = vld [vmem:[%s167 + $0x78] sm:$0xff]
    %v184 = vld [vmem:[%s167 + $0x80] sm:$0xff]
    %v185 = vld [vmem:[%s167 + $0x88] sm:$0xff]
    %v186 = vld [vmem:[%s167 + $0x90] sm:$0xff]
    %v187 = vld [vmem:[%s167 + $0x98] sm:$0xff]
    %v188 = vld [vmem:[%s167 + $0xa0] sm:$0xff]
    %v189 = vld [vmem:[%s167 + $0xa8] sm:$0xff]
    %v190 = vld [vmem:[%s167 + $0xb0] sm:$0xff]
    %v191 = vld [vmem:[%s167 + $0xb8] sm:$0xff]
    %v192 = vld [vmem:[%s167 + $0xc0] sm:$0xff]
    %v193 = vld [vmem:[%s167 + $0xc8] sm:$0xff]
    %v194 = vld [vmem:[%s167 + $0xd0] sm:$0xff]
    %v195 = vld [vmem:[%s167 + $0xd8] sm:$0xff]
    %v196 = vld [vmem:[%s167 + $0xe0] sm:$0xff]
    %v197 = vld [vmem:[%s167 + $0xe8] sm:$0xff]
    %v198 = vld [vmem:[%s167 + $0xf0] sm:$0xff]
    %v199 = vld [vmem:[%s167 + $0xf8] sm:$0xff]
    %v200 = vld [vmem:[#allocation9] sm:$0xff]
    %v201 = vld [vmem:[#allocation9 + $0x8] sm:$0xff]
    %v202 = vld [vmem:[#allocation9 + $0x10] sm:$0xff]
    %v203 = vld [vmem:[#allocation9 + $0x18] sm:$0xff]
    %v204 = vld [vmem:[#allocation9 + $0x20] sm:$0xff]
    %v205 = vld [vmem:[#allocation9 + $0x28] sm:$0xff]
    %v206 = vld [vmem:[#allocation9 + $0x30] sm:$0xff]
    %v207 = vld [vmem:[#allocation9 + $0x38] sm:$0xff]
    %v208 = vld [vmem:[#allocation9 + $0x40] sm:$0xff]
    %v209 = vld [vmem:[#allocation9 + $0x48] sm:$0xff]
    %v210 = vld [vmem:[#allocation9 + $0x50] sm:$0xff]
    %v211 = vld [vmem:[#allocation9 + $0x58] sm:$0xff]
    %v212 = vld [vmem:[#allocation9 + $0x60] sm:$0xff]
    %v213 = vld [vmem:[#allocation9 + $0x68] sm:$0xff]
    %v214 = vld [vmem:[#allocation9 + $0x70] sm:$0xff]
    %v215 = vld [vmem:[#allocation9 + $0x78] sm:$0xff]
    %v216 = vld [vmem:[#allocation9 + $0x80] sm:$0xff]
    %v217 = vld [vmem:[#allocation9 + $0x88] sm:$0xff]
    %v218 = vld [vmem:[#allocation9 + $0x90] sm:$0xff]
    %v219 = vld [vmem:[#allocation9 + $0x98] sm:$0xff]
    %v220 = vld [vmem:[#allocation9 + $0xa0] sm:$0xff]
    %v221 = vld [vmem:[#allocation9 + $0xa8] sm:$0xff]
    %v222 = vld [vmem:[#allocation9 + $0xb0] sm:$0xff]
    %v223 = vld [vmem:[#allocation9 + $0xb8] sm:$0xff]
    %v224 = vld [vmem:[#allocation9 + $0xc0] sm:$0xff]
    %v225 = vld [vmem:[#allocation9 + $0xc8] sm:$0xff]
    %v226 = vld [vmem:[#allocation9 + $0xd0] sm:$0xff]
    %v227 = vld [vmem:[#allocation9 + $0xd8] sm:$0xff]
    %v228 = vld [vmem:[#allocation9 + $0xe0] sm:$0xff]
    %v229 = vld [vmem:[#allocation9 + $0xe8] sm:$0xff]
    %v230 = vld [vmem:[#allocation9 + $0xf0] sm:$0xff]
    %v231 = vld [vmem:[#allocation9 + $0xf8] sm:$0xff]
    %v232 = vld [vmem:[%s3] sm:$0x1]
    %v233 = vld [vmem:[#allocation2] sm:$0x3]
    %v234 = vld [vmem:[#allocation3] sm:$0x3]
    %v236 = vlaneseq
    %v237 = vshrl.u32 %v236, 7
    %v238 = vsub.s32 0, %v237
    %v239 = vrot.slane %v233, %v238
    %v240 = vlaneseq
    %v241 = vshrl.u32 %v240, 7
    %v242 = vsub.s32 1, %v241
    %v243 = vrot.slane %v233, %v242
    %v247 = vlaneseq
    %v248 = vshrl.u32 %v247, 7
    %v249 = vsub.s32 0, %v248
    %v250 = vrot.slane %v234, %v249
    %v251 = vlaneseq
    %v252 = vshrl.u32 %v251, 7
    %v253 = vsub.s32 1, %v252
    %v254 = vrot.slane %v234, %v253
    loop: start=0, step=1, limit=2
    $region34: #{tpu_custom_call.1} parent=1 // loop_pre_header
      _
    $region35: #{tpu_custom_call.1} parent=1 // loop_header
      %s258 = sphi 0, %s262
      %p259 = scmp.ge.s32.totalorder %s258, 2
      %v263 = vphi %v239, %v3070
      %v264 = vphi %v243, %v3071
      %v265 = vphi %v250, %v3076
      %v266 = vphi %v254, %v3077
    $region36: #{tpu_custom_call.1} parent=1 // loop_header_branch
      %261 = sbr.rel (%p259) target = $region40
    $region37: #{tpu_custom_call.1} parent=1 // loop_body
      %s267 = smul.u32 %s258, 8
      %s268 = smul.addr %s267, 8
      %s269 = scalar_lea.vmem [#allocation4], %s268
      %v270 = vld [vmem:[%s269] sm:$0xff]
      %v271 = vld [vmem:[%s269 + $0x8] sm:$0xff]
      %v272 = vld [vmem:[%s269 + $0x10] sm:$0xff]
      %v273 = vld [vmem:[%s269 + $0x18] sm:$0xff]
      %v274 = vld [vmem:[%s269 + $0x20] sm:$0xff]
      %v275 = vld [vmem:[%s269 + $0x28] sm:$0xff]
      %v276 = vld [vmem:[%s269 + $0x30] sm:$0xff]
      %v277 = vld [vmem:[%s269 + $0x38] sm:$0xff]
      %v278 = vpack.c.bf16 %v263, %v263
      %v279 = vpack.c.bf16 %v264, %v264
      %v312 = vunpack.c.l.b16 %v69
      %v313 = vunpack.c.h.b16 %v69
      %v314 = vunpack.c.l.b16 %v70
      %v315 = vunpack.c.h.b16 %v70
      %v316 = vunpack.c.l.b16 %v71
      %v317 = vunpack.c.h.b16 %v71
      %v318 = vunpack.c.l.b16 %v72
      %v319 = vunpack.c.h.b16 %v72
      %v320 = vunpack.c.l.b16 %v73
      %v321 = vunpack.c.h.b16 %v73
      %v322 = vunpack.c.l.b16 %v74
      %v323 = vunpack.c.h.b16 %v74
      %v324 = vunpack.c.l.b16 %v75
      %v325 = vunpack.c.h.b16 %v75
      %v326 = vunpack.c.l.b16 %v76
      %v327 = vunpack.c.h.b16 %v76
      %v328 = vunpack.c.l.b16 %v77
      %v329 = vunpack.c.h.b16 %v77
      %v330 = vunpack.c.l.b16 %v78
      %v331 = vunpack.c.h.b16 %v78
      %v332 = vunpack.c.l.b16 %v79
      %v333 = vunpack.c.h.b16 %v79
      %v334 = vunpack.c.l.b16 %v80
      %v335 = vunpack.c.h.b16 %v80
      %v336 = vunpack.c.l.b16 %v81
      %v337 = vunpack.c.h.b16 %v81
      %v338 = vunpack.c.l.b16 %v82
      %v339 = vunpack.c.h.b16 %v82
      %v340 = vunpack.c.l.b16 %v83
      %v341 = vunpack.c.h.b16 %v83
      %v342 = vunpack.c.l.b16 %v84
      %v343 = vunpack.c.h.b16 %v84
      %v344 = vunpack.c.l.b16 %v85
      %v345 = vunpack.c.h.b16 %v85
      %v346 = vunpack.c.l.b16 %v86
      %v347 = vunpack.c.h.b16 %v86
      %v348 = vunpack.c.l.b16 %v87
      %v349 = vunpack.c.h.b16 %v87
      %v350 = vunpack.c.l.b16 %v88
      %v351 = vunpack.c.h.b16 %v88
      %v352 = vunpack.c.l.b16 %v89
      %v353 = vunpack.c.h.b16 %v89
      %v354 = vunpack.c.l.b16 %v90
      %v355 = vunpack.c.h.b16 %v90
      %v356 = vunpack.c.l.b16 %v91
      %v357 = vunpack.c.h.b16 %v91
      %v358 = vunpack.c.l.b16 %v92
      %v359 = vunpack.c.h.b16 %v92
      %v360 = vunpack.c.l.b16 %v93
      %v361 = vunpack.c.h.b16 %v93
      %v362 = vunpack.c.l.b16 %v94
      %v363 = vunpack.c.h.b16 %v94
      %v364 = vunpack.c.l.b16 %v95
      %v365 = vunpack.c.h.b16 %v95
      %v366 = vunpack.c.l.b16 %v96
      %v367 = vunpack.c.h.b16 %v96
      %v368 = vunpack.c.l.b16 %v97
      %v369 = vunpack.c.h.b16 %v97
      %v370 = vunpack.c.l.b16 %v98
      %v371 = vunpack.c.h.b16 %v98
      %v372 = vunpack.c.l.b16 %v99
      %v373 = vunpack.c.h.b16 %v99
      %v374 = vunpack.c.l.b16 %v100
      %v375 = vunpack.c.h.b16 %v100
      %v376 = vpack.c.b16 %v314, %v312
      %v377 = vpack.c.b16 %v315, %v313
      %v378 = vpack.c.b16 %v318, %v316
      %v379 = vpack.c.b16 %v319, %v317
      %v380 = vpack.c.b16 %v322, %v320
      %v381 = vpack.c.b16 %v323, %v321
      %v382 = vpack.c.b16 %v326, %v324
      %v383 = vpack.c.b16 %v327, %v325
      %v384 = vpack.c.b16 %v330, %v328
      %v385 = vpack.c.b16 %v331, %v329
      %v386 = vpack.c.b16 %v334, %v332
      %v387 = vpack.c.b16 %v335, %v333
      %v388 = vpack.c.b16 %v338, %v336
      %v389 = vpack.c.b16 %v339, %v337
      %v390 = vpack.c.b16 %v342, %v340
      %v391 = vpack.c.b16 %v343, %v341
      %v392 = vpack.c.b16 %v346, %v344
      %v393 = vpack.c.b16 %v347, %v345
      %v394 = vpack.c.b16 %v350, %v348
      %v395 = vpack.c.b16 %v351, %v349
      %v396 = vpack.c.b16 %v354, %v352
      %v397 = vpack.c.b16 %v355, %v353
      %v398 = vpack.c.b16 %v358, %v356
      %v399 = vpack.c.b16 %v359, %v357
      %v400 = vpack.c.b16 %v362, %v360
      %v401 = vpack.c.b16 %v363, %v361
      %v402 = vpack.c.b16 %v366, %v364
      %v403 = vpack.c.b16 %v367, %v365
      %v404 = vpack.c.b16 %v370, %v368
      %v405 = vpack.c.b16 %v371, %v369
      %v406 = vpack.c.b16 %v374, %v372
      %v407 = vpack.c.b16 %v375, %v373
      %440 = vmatprep.subr.bf16.mxu0 %v377
      %441 = vmatpush1.bf16.msra.mxu0 %v376
      %442 = vmatprep.subr.bf16.mxu0 %v379
      %443 = vmatpush1.bf16.msra.mxu0 %v378
      %444 = vmatprep.subr.bf16.mxu0 %v381
      %445 = vmatpush1.bf16.msra.mxu0 %v380
      %446 = vmatprep.subr.bf16.mxu0 %v383
      %447 = vmatpush1.bf16.msra.mxu0 %v382
      %448 = vmatprep.subr.bf16.mxu0 %v385
      %449 = vmatpush1.bf16.msra.mxu0 %v384
      %450 = vmatprep.subr.bf16.mxu0 %v387
      %451 = vmatpush1.bf16.msra.mxu0 %v386
      %452 = vmatprep.subr.bf16.mxu0 %v389
      %453 = vmatpush1.bf16.msra.mxu0 %v388
      %454 = vmatprep.subr.bf16.mxu0 %v391
      %455 = vmatpush1.bf16.msra.mxu0 %v390
      %456 = vmatprep.subr.bf16.mxu0 %v393
      %457 = vmatpush1.bf16.msra.mxu0 %v392
      %458 = vmatprep.subr.bf16.mxu0 %v395
      %459 = vmatpush1.bf16.msra.mxu0 %v394
      %460 = vmatprep.subr.bf16.mxu0 %v397
      %461 = vmatpush1.bf16.msra.mxu0 %v396
      %462 = vmatprep.subr.bf16.mxu0 %v399
      %463 = vmatpush1.bf16.msra.mxu0 %v398
      %464 = vmatprep.subr.bf16.mxu0 %v401
      %465 = vmatpush1.bf16.msra.mxu0 %v400
      %466 = vmatprep.subr.bf16.mxu0 %v403
      %467 = vmatpush1.bf16.msra.mxu0 %v402
      %468 = vmatprep.subr.bf16.mxu0 %v405
      %469 = vmatpush1.bf16.msra.mxu0 %v404
      %470 = vmatprep.subr.bf16.mxu0 %v407
      %471 = vmatpush1.bf16.msra.mxu0 %v406
      %472 = vmatprep.mubr.bf16.mxu0 %v279
      %473 = vmatmul.mubr.bf16.gmra.mrb[0].mxu0 %v278
      %v474 = vpop.f32.mrb[0].mxu0
      %v475 = vadd.f32 0.0, %v474
      %v476 = vpop.f32.mrb[0].mxu0
      %v477 = vadd.f32 0.0, %v476
      %v478 = vpop.f32.mrb[0].mxu0
      %v479 = vpop.f32.mrb[0].mxu0
      %480 = vdwg.mxu0
      %v481 = vadd.f32 %v270, %v475
      %v482 = vadd.f32 %v271, %v477
      %v483 = vxor.u32 %v481, 2147483648
      %v484 = vxor.u32 %v482, 2147483648
      %v485 = vmul.f32 %v483, 1.442695
      %v486 = vpow.pop %v485
      %v487 = vmul.f32 %v484, 1.442695
      %v488 = vpow.pop %v487
      %v489 = vadd.f32 %v486, 1.0
      %v490 = vadd.f32 %v488, 1.0
      %v491 = vrcp.pop %v489
      %v492 = vmul.f32 1.0, %v491
      %v493 = vrcp.pop %v490
      %v494 = vmul.f32 1.0, %v493
      %v527 = vunpack.c.l.b16 %v102
      %v528 = vunpack.c.h.b16 %v102
      %v529 = vunpack.c.l.b16 %v103
      %v530 = vunpack.c.h.b16 %v103
      %v531 = vunpack.c.l.b16 %v104
      %v532 = vunpack.c.h.b16 %v104
      %v533 = vunpack.c.l.b16 %v105
      %v534 = vunpack.c.h.b16 %v105
      %v535 = vunpack.c.l.b16 %v106
      %v536 = vunpack.c.h.b16 %v106
      %v537 = vunpack.c.l.b16 %v107
      %v538 = vunpack.c.h.b16 %v107
      %v539 = vunpack.c.l.b16 %v108
      %v540 = vunpack.c.h.b16 %v108
      %v541 = vunpack.c.l.b16 %v109
      %v542 = vunpack.c.h.b16 %v109
      %v543 = vunpack.c.l.b16 %v110
      %v544 = vunpack.c.h.b16 %v110
      %v545 = vunpack.c.l.b16 %v111
      %v546 = vunpack.c.h.b16 %v111
      %v547 = vunpack.c.l.b16 %v112
      %v548 = vunpack.c.h.b16 %v112
      %v549 = vunpack.c.l.b16 %v113
      %v550 = vunpack.c.h.b16 %v113
      %v551 = vunpack.c.l.b16 %v114
      %v552 = vunpack.c.h.b16 %v114
      %v553 = vunpack.c.l.b16 %v115
      %v554 = vunpack.c.h.b16 %v115
      %v555 = vunpack.c.l.b16 %v116
      %v556 = vunpack.c.h.b16 %v116
      %v557 = vunpack.c.l.b16 %v117
      %v558 = vunpack.c.h.b16 %v117
      %v559 = vunpack.c.l.b16 %v118
      %v560 = vunpack.c.h.b16 %v118
      %v561 = vunpack.c.l.b16 %v119
      %v562 = vunpack.c.h.b16 %v119
      %v563 = vunpack.c.l.b16 %v120
      %v564 = vunpack.c.h.b16 %v120
      %v565 = vunpack.c.l.b16 %v121
      %v566 = vunpack.c.h.b16 %v121
      %v567 = vunpack.c.l.b16 %v122
      %v568 = vunpack.c.h.b16 %v122
      %v569 = vunpack.c.l.b16 %v123
      %v570 = vunpack.c.h.b16 %v123
      %v571 = vunpack.c.l.b16 %v124
      %v572 = vunpack.c.h.b16 %v124
      %v573 = vunpack.c.l.b16 %v125
      %v574 = vunpack.c.h.b16 %v125
      %v575 = vunpack.c.l.b16 %v126
      %v576 = vunpack.c.h.b16 %v126
      %v577 = vunpack.c.l.b16 %v127
      %v578 = vunpack.c.h.b16 %v127
      %v579 = vunpack.c.l.b16 %v128
      %v580 = vunpack.c.h.b16 %v128
      %v581 = vunpack.c.l.b16 %v129
      %v582 = vunpack.c.h.b16 %v129
      %v583 = vunpack.c.l.b16 %v130
      %v584 = vunpack.c.h.b16 %v130
      %v585 = vunpack.c.l.b16 %v131
      %v586 = vunpack.c.h.b16 %v131
      %v587 = vunpack.c.l.b16 %v132
      %v588 = vunpack.c.h.b16 %v132
      %v589 = vunpack.c.l.b16 %v133
      %v590 = vunpack.c.h.b16 %v133
      %v591 = vpack.c.b16 %v529, %v527
      %v592 = vpack.c.b16 %v530, %v528
      %v593 = vpack.c.b16 %v533, %v531
      %v594 = vpack.c.b16 %v534, %v532
      %v595 = vpack.c.b16 %v537, %v535
      %v596 = vpack.c.b16 %v538, %v536
      %v597 = vpack.c.b16 %v541, %v539
      %v598 = vpack.c.b16 %v542, %v540
      %v599 = vpack.c.b16 %v545, %v543
      %v600 = vpack.c.b16 %v546, %v544
      %v601 = vpack.c.b16 %v549, %v547
      %v602 = vpack.c.b16 %v550, %v548
      %v603 = vpack.c.b16 %v553, %v551
      %v604 = vpack.c.b16 %v554, %v552
      %v605 = vpack.c.b16 %v557, %v555
      %v606 = vpack.c.b16 %v558, %v556
      %v607 = vpack.c.b16 %v561, %v559
      %v608 = vpack.c.b16 %v562, %v560
      %v609 = vpack.c.b16 %v565, %v563
      %v610 = vpack.c.b16 %v566, %v564
      %v611 = vpack.c.b16 %v569, %v567
      %v612 = vpack.c.b16 %v570, %v568
      %v613 = vpack.c.b16 %v573, %v571
      %v614 = vpack.c.b16 %v574, %v572
      %v615 = vpack.c.b16 %v577, %v575
      %v616 = vpack.c.b16 %v578, %v576
      %v617 = vpack.c.b16 %v581, %v579
      %v618 = vpack.c.b16 %v582, %v580
      %v619 = vpack.c.b16 %v585, %v583
      %v620 = vpack.c.b16 %v586, %v584
      %v621 = vpack.c.b16 %v589, %v587
      %v622 = vpack.c.b16 %v590, %v588
      %655 = vmatprep.subr.bf16.mxu0 %v592
      %656 = vmatpush1.bf16.msra.mxu0 %v591
      %657 = vmatprep.subr.bf16.mxu0 %v594
      %658 = vmatpush1.bf16.msra.mxu0 %v593
      %659 = vmatprep.subr.bf16.mxu0 %v596
      %660 = vmatpush1.bf16.msra.mxu0 %v595
      %661 = vmatprep.subr.bf16.mxu0 %v598
      %662 = vmatpush1.bf16.msra.mxu0 %v597
      %663 = vmatprep.subr.bf16.mxu0 %v600
      %664 = vmatpush1.bf16.msra.mxu0 %v599
      %665 = vmatprep.subr.bf16.mxu0 %v602
      %666 = vmatpush1.bf16.msra.mxu0 %v601
      %667 = vmatprep.subr.bf16.mxu0 %v604
      %668 = vmatpush1.bf16.msra.mxu0 %v603
      %669 = vmatprep.subr.bf16.mxu0 %v606
      %670 = vmatpush1.bf16.msra.mxu0 %v605
      %671 = vmatprep.subr.bf16.mxu0 %v608
      %672 = vmatpush1.bf16.msra.mxu0 %v607
      %673 = vmatprep.subr.bf16.mxu0 %v610
      %674 = vmatpush1.bf16.msra.mxu0 %v609
      %675 = vmatprep.subr.bf16.mxu0 %v612
      %676 = vmatpush1.bf16.msra.mxu0 %v611
      %677 = vmatprep.subr.bf16.mxu0 %v614
      %678 = vmatpush1.bf16.msra.mxu0 %v613
      %679 = vmatprep.subr.bf16.mxu0 %v616
      %680 = vmatpush1.bf16.msra.mxu0 %v615
      %681 = vmatprep.subr.bf16.mxu0 %v618
      %682 = vmatpush1.bf16.msra.mxu0 %v617
      %683 = vmatprep.subr.bf16.mxu0 %v620
      %684 = vmatpush1.bf16.msra.mxu0 %v619
      %685 = vmatprep.subr.bf16.mxu0 %v622
      %686 = vmatpush1.bf16.msra.mxu0 %v621
      %687 = vmatprep.mubr.bf16.mxu0 %v279
      %688 = vmatmul.mubr.bf16.gmra.mrb[0].mxu0 %v278
      %v689 = vpop.f32.mrb[0].mxu0
      %v690 = vadd.f32 0.0, %v689
      %v691 = vpop.f32.mrb[0].mxu0
      %v692 = vadd.f32 0.0, %v691
      %v693 = vpop.f32.mrb[0].mxu0
      %v694 = vpop.f32.mrb[0].mxu0
      %695 = vdwg.mxu0
      %v696 = vadd.f32 %v272, %v690
      %v697 = vadd.f32 %v273, %v692
      %v698 = vxor.u32 %v696, 2147483648
      %v699 = vxor.u32 %v697, 2147483648
      %v700 = vmul.f32 %v698, 1.442695
      %v701 = vpow.pop %v700
      %v702 = vmul.f32 %v699, 1.442695
      %v703 = vpow.pop %v702
      %v704 = vadd.f32 %v701, 1.0
      %v705 = vadd.f32 %v703, 1.0
      %v706 = vrcp.pop %v704
      %v707 = vmul.f32 1.0, %v706
      %v708 = vrcp.pop %v705
      %v709 = vmul.f32 1.0, %v708
      %v742 = vunpack.c.l.b16 %v135
      %v743 = vunpack.c.h.b16 %v135
      %v744 = vunpack.c.l.b16 %v136
      %v745 = vunpack.c.h.b16 %v136
      %v746 = vunpack.c.l.b16 %v137
      %v747 = vunpack.c.h.b16 %v137
      %v748 = vunpack.c.l.b16 %v138
      %v749 = vunpack.c.h.b16 %v138
      %v750 = vunpack.c.l.b16 %v139
      %v751 = vunpack.c.h.b16 %v139
      %v752 = vunpack.c.l.b16 %v140
      %v753 = vunpack.c.h.b16 %v140
      %v754 = vunpack.c.l.b16 %v141
      %v755 = vunpack.c.h.b16 %v141
      %v756 = vunpack.c.l.b16 %v142
      %v757 = vunpack.c.h.b16 %v142
      %v758 = vunpack.c.l.b16 %v143
      %v759 = vunpack.c.h.b16 %v143
      %v760 = vunpack.c.l.b16 %v144
      %v761 = vunpack.c.h.b16 %v144
      %v762 = vunpack.c.l.b16 %v145
      %v763 = vunpack.c.h.b16 %v145
      %v764 = vunpack.c.l.b16 %v146
      %v765 = vunpack.c.h.b16 %v146
      %v766 = vunpack.c.l.b16 %v147
      %v767 = vunpack.c.h.b16 %v147
      %v768 = vunpack.c.l.b16 %v148
      %v769 = vunpack.c.h.b16 %v148
      %v770 = vunpack.c.l.b16 %v149
      %v771 = vunpack.c.h.b16 %v149
      %v772 = vunpack.c.l.b16 %v150
      %v773 = vunpack.c.h.b16 %v150
      %v774 = vunpack.c.l.b16 %v151
      %v775 = vunpack.c.h.b16 %v151
      %v776 = vunpack.c.l.b16 %v152
      %v777 = vunpack.c.h.b16 %v152
      %v778 = vunpack.c.l.b16 %v153
      %v779 = vunpack.c.h.b16 %v153
      %v780 = vunpack.c.l.b16 %v154
      %v781 = vunpack.c.h.b16 %v154
      %v782 = vunpack.c.l.b16 %v155
      %v783 = vunpack.c.h.b16 %v155
      %v784 = vunpack.c.l.b16 %v156
      %v785 = vunpack.c.h.b16 %v156
      %v786 = vunpack.c.l.b16 %v157
      %v787 = vunpack.c.h.b16 %v157
      %v788 = vunpack.c.l.b16 %v158
      %v789 = vunpack.c.h.b16 %v158
      %v790 = vunpack.c.l.b16 %v159
      %v791 = vunpack.c.h.b16 %v159
      %v792 = vunpack.c.l.b16 %v160
      %v793 = vunpack.c.h.b16 %v160
      %v794 = vunpack.c.l.b16 %v161
      %v795 = vunpack.c.h.b16 %v161
      %v796 = vunpack.c.l.b16 %v162
      %v797 = vunpack.c.h.b16 %v162
      %v798 = vunpack.c.l.b16 %v163
      %v799 = vunpack.c.h.b16 %v163
      %v800 = vunpack.c.l.b16 %v164
      %v801 = vunpack.c.h.b16 %v164
      %v802 = vunpack.c.l.b16 %v165
      %v803 = vunpack.c.h.b16 %v165
      %v804 = vunpack.c.l.b16 %v166
      %v805 = vunpack.c.h.b16 %v166
      %v806 = vpack.c.b16 %v744, %v742
      %v807 = vpack.c.b16 %v745, %v743
      %v808 = vpack.c.b16 %v748, %v746
      %v809 = vpack.c.b16 %v749, %v747
      %v810 = vpack.c.b16 %v752, %v750
      %v811 = vpack.c.b16 %v753, %v751
      %v812 = vpack.c.b16 %v756, %v754
      %v813 = vpack.c.b16 %v757, %v755
      %v814 = vpack.c.b16 %v760, %v758
      %v815 = vpack.c.b16 %v761, %v759
      %v816 = vpack.c.b16 %v764, %v762
      %v817 = vpack.c.b16 %v765, %v763
      %v818 = vpack.c.b16 %v768, %v766
      %v819 = vpack.c.b16 %v769, %v767
      %v820 = vpack.c.b16 %v772, %v770
      %v821 = vpack.c.b16 %v773, %v771
      %v822 = vpack.c.b16 %v776, %v774
      %v823 = vpack.c.b16 %v777, %v775
      %v824 = vpack.c.b16 %v780, %v778
      %v825 = vpack.c.b16 %v781, %v779
      %v826 = vpack.c.b16 %v784, %v782
      %v827 = vpack.c.b16 %v785, %v783
      %v828 = vpack.c.b16 %v788, %v786
      %v829 = vpack.c.b16 %v789, %v787
      %v830 = vpack.c.b16 %v792, %v790
      %v831 = vpack.c.b16 %v793, %v791
      %v832 = vpack.c.b16 %v796, %v794
      %v833 = vpack.c.b16 %v797, %v795
      %v834 = vpack.c.b16 %v800, %v798
      %v835 = vpack.c.b16 %v801, %v799
      %v836 = vpack.c.b16 %v804, %v802
      %v837 = vpack.c.b16 %v805, %v803
      %870 = vmatprep.subr.bf16.mxu0 %v807
      %871 = vmatpush1.bf16.msra.mxu0 %v806
      %872 = vmatprep.subr.bf16.mxu0 %v809
      %873 = vmatpush1.bf16.msra.mxu0 %v808
      %874 = vmatprep.subr.bf16.mxu0 %v811
      %875 = vmatpush1.bf16.msra.mxu0 %v810
      %876 = vmatprep.subr.bf16.mxu0 %v813
      %877 = vmatpush1.bf16.msra.mxu0 %v812
      %878 = vmatprep.subr.bf16.mxu0 %v815
      %879 = vmatpush1.bf16.msra.mxu0 %v814
      %880 = vmatprep.subr.bf16.mxu0 %v817
      %881 = vmatpush1.bf16.msra.mxu0 %v816
      %882 = vmatprep.subr.bf16.mxu0 %v819
      %883 = vmatpush1.bf16.msra.mxu0 %v818
      %884 = vmatprep.subr.bf16.mxu0 %v821
      %885 = vmatpush1.bf16.msra.mxu0 %v820
      %886 = vmatprep.subr.bf16.mxu0 %v823
      %887 = vmatpush1.bf16.msra.mxu0 %v822
      %888 = vmatprep.subr.bf16.mxu0 %v825
      %889 = vmatpush1.bf16.msra.mxu0 %v824
      %890 = vmatprep.subr.bf16.mxu0 %v827
      %891 = vmatpush1.bf16.msra.mxu0 %v826
      %892 = vmatprep.subr.bf16.mxu0 %v829
      %893 = vmatpush1.bf16.msra.mxu0 %v828
      %894 = vmatprep.subr.bf16.mxu0 %v831
      %895 = vmatpush1.bf16.msra.mxu0 %v830
      %896 = vmatprep.subr.bf16.mxu0 %v833
      %897 = vmatpush1.bf16.msra.mxu0 %v832
      %898 = vmatprep.subr.bf16.mxu0 %v835
      %899 = vmatpush1.bf16.msra.mxu0 %v834
      %900 = vmatprep.subr.bf16.mxu0 %v837
      %901 = vmatpush1.bf16.msra.mxu0 %v836
      %902 = vmatprep.mubr.bf16.mxu0 %v279
      %903 = vmatmul.mubr.bf16.gmra.mrb[0].mxu0 %v278
      %v904 = vpop.f32.mrb[0].mxu0
      %v905 = vadd.f32 0.0, %v904
      %v906 = vpop.f32.mrb[0].mxu0
      %v907 = vadd.f32 0.0, %v906
      %v908 = vpop.f32.mrb[0].mxu0
      %v909 = vpop.f32.mrb[0].mxu0
      %910 = vdwg.mxu0
      %v911 = vadd.f32 %v274, %v905
      %v912 = vadd.f32 %v275, %v907
      %v913 = vtanh.pop %v911
      %v914 = vtanh.pop %v912
      %v947 = vunpack.c.l.b16 %v168
      %v948 = vunpack.c.h.b16 %v168
      %v949 = vunpack.c.l.b16 %v169
      %v950 = vunpack.c.h.b16 %v169
      %v951 = vunpack.c.l.b16 %v170
      %v952 = vunpack.c.h.b16 %v170
      %v953 = vunpack.c.l.b16 %v171
      %v954 = vunpack.c.h.b16 %v171
      %v955 = vunpack.c.l.b16 %v172
      %v956 = vunpack.c.h.b16 %v172
      %v957 = vunpack.c.l.b16 %v173
      %v958 = vunpack.c.h.b16 %v173
      %v959 = vunpack.c.l.b16 %v174
      %v960 = vunpack.c.h.b16 %v174
      %v961 = vunpack.c.l.b16 %v175
      %v962 = vunpack.c.h.b16 %v175
      %v963 = vunpack.c.l.b16 %v176
      %v964 = vunpack.c.h.b16 %v176
      %v965 = vunpack.c.l.b16 %v177
      %v966 = vunpack.c.h.b16 %v177
      %v967 = vunpack.c.l.b16 %v178
      %v968 = vunpack.c.h.b16 %v178
      %v969 = vunpack.c.l.b16 %v179
      %v970 = vunpack.c.h.b16 %v179
      %v971 = vunpack.c.l.b16 %v180
      %v972 = vunpack.c.h.b16 %v180
      %v973 = vunpack.c.l.b16 %v181
      %v974 = vunpack.c.h.b16 %v181
      %v975 = vunpack.c.l.b16 %v182
      %v976 = vunpack.c.h.b16 %v182
      %v977 = vunpack.c.l.b16 %v183
      %v978 = vunpack.c.h.b16 %v183
      %v979 = vunpack.c.l.b16 %v184
      %v980 = vunpack.c.h.b16 %v184
      %v981 = vunpack.c.l.b16 %v185
      %v982 = vunpack.c.h.b16 %v185
      %v983 = vunpack.c.l.b16 %v186
      %v984 = vunpack.c.h.b16 %v186
      %v985 = vunpack.c.l.b16 %v187
      %v986 = vunpack.c.h.b16 %v187
      %v987 = vunpack.c.l.b16 %v188
      %v988 = vunpack.c.h.b16 %v188
      %v989 = vunpack.c.l.b16 %v189
      %v990 = vunpack.c.h.b16 %v189
      %v991 = vunpack.c.l.b16 %v190
      %v992 = vunpack.c.h.b16 %v190
      %v993 = vunpack.c.l.b16 %v191
      %v994 = vunpack.c.h.b16 %v191
      %v995 = vunpack.c.l.b16 %v192
      %v996 = vunpack.c.h.b16 %v192
      %v997 = vunpack.c.l.b16 %v193
      %v998 = vunpack.c.h.b16 %v193
      %v999 = vunpack.c.l.b16 %v194
      %v1000 = vunpack.c.h.b16 %v194
      %v1001 = vunpack.c.l.b16 %v195
      %v1002 = vunpack.c.h.b16 %v195
      %v1003 = vunpack.c.l.b16 %v196
      %v1004 = vunpack.c.h.b16 %v196
      %v1005 = vunpack.c.l.b16 %v197
      %v1006 = vunpack.c.h.b16 %v197
      %v1007 = vunpack.c.l.b16 %v198
      %v1008 = vunpack.c.h.b16 %v198
      %v1009 = vunpack.c.l.b16 %v199
      %v1010 = vunpack.c.h.b16 %v199
      %v1011 = vpack.c.b16 %v949, %v947
      %v1012 = vpack.c.b16 %v950, %v948
      %v1013 = vpack.c.b16 %v953, %v951
      %v1014 = vpack.c.b16 %v954, %v952
      %v1015 = vpack.c.b16 %v957, %v955
      %v1016 = vpack.c.b16 %v958, %v956
      %v1017 = vpack.c.b16 %v961, %v959
      %v1018 = vpack.c.b16 %v962, %v960
      %v1019 = vpack.c.b16 %v965, %v963
      %v1020 = vpack.c.b16 %v966, %v964
      %v1021 = vpack.c.b16 %v969, %v967
      %v1022 = vpack.c.b16 %v970, %v968
      %v1023 = vpack.c.b16 %v973, %v971
      %v1024 = vpack.c.b16 %v974, %v972
      %v1025 = vpack.c.b16 %v977, %v975
      %v1026 = vpack.c.b16 %v978, %v976
      %v1027 = vpack.c.b16 %v981, %v979
      %v1028 = vpack.c.b16 %v982, %v980
      %v1029 = vpack.c.b16 %v985, %v983
      %v1030 = vpack.c.b16 %v986, %v984
      %v1031 = vpack.c.b16 %v989, %v987
      %v1032 = vpack.c.b16 %v990, %v988
      %v1033 = vpack.c.b16 %v993, %v991
      %v1034 = vpack.c.b16 %v994, %v992
      %v1035 = vpack.c.b16 %v997, %v995
      %v1036 = vpack.c.b16 %v998, %v996
      %v1037 = vpack.c.b16 %v1001, %v999
      %v1038 = vpack.c.b16 %v1002, %v1000
      %v1039 = vpack.c.b16 %v1005, %v1003
      %v1040 = vpack.c.b16 %v1006, %v1004
      %v1041 = vpack.c.b16 %v1009, %v1007
      %v1042 = vpack.c.b16 %v1010, %v1008
      %1075 = vmatprep.subr.bf16.mxu0 %v1012
      %1076 = vmatpush1.bf16.msra.mxu0 %v1011
      %1077 = vmatprep.subr.bf16.mxu0 %v1014
      %1078 = vmatpush1.bf16.msra.mxu0 %v1013
      %1079 = vmatprep.subr.bf16.mxu0 %v1016
      %1080 = vmatpush1.bf16.msra.mxu0 %v1015
      %1081 = vmatprep.subr.bf16.mxu0 %v1018
      %1082 = vmatpush1.bf16.msra.mxu0 %v1017
      %1083 = vmatprep.subr.bf16.mxu0 %v1020
      %1084 = vmatpush1.bf16.msra.mxu0 %v1019
      %1085 = vmatprep.subr.bf16.mxu0 %v1022
      %1086 = vmatpush1.bf16.msra.mxu0 %v1021
      %1087 = vmatprep.subr.bf16.mxu0 %v1024
      %1088 = vmatpush1.bf16.msra.mxu0 %v1023
      %1089 = vmatprep.subr.bf16.mxu0 %v1026
      %1090 = vmatpush1.bf16.msra.mxu0 %v1025
      %1091 = vmatprep.subr.bf16.mxu0 %v1028
      %1092 = vmatpush1.bf16.msra.mxu0 %v1027
      %1093 = vmatprep.subr.bf16.mxu0 %v1030
      %1094 = vmatpush1.bf16.msra.mxu0 %v1029
      %1095 = vmatprep.subr.bf16.mxu0 %v1032
      %1096 = vmatpush1.bf16.msra.mxu0 %v1031
      %1097 = vmatprep.subr.bf16.mxu0 %v1034
      %1098 = vmatpush1.bf16.msra.mxu0 %v1033
      %1099 = vmatprep.subr.bf16.mxu0 %v1036
      %1100 = vmatpush1.bf16.msra.mxu0 %v1035
      %1101 = vmatprep.subr.bf16.mxu0 %v1038
      %1102 = vmatpush1.bf16.msra.mxu0 %v1037
      %1103 = vmatprep.subr.bf16.mxu0 %v1040
      %1104 = vmatpush1.bf16.msra.mxu0 %v1039
      %1105 = vmatprep.subr.bf16.mxu0 %v1042
      %1106 = vmatpush1.bf16.msra.mxu0 %v1041
      %1107 = vmatprep.mubr.bf16.mxu0 %v279
      %1108 = vmatmul.mubr.bf16.gmra.mrb[0].mxu0 %v278
      %v1109 = vpop.f32.mrb[0].mxu0
      %v1110 = vadd.f32 0.0, %v1109
      %v1111 = vpop.f32.mrb[0].mxu0
      %v1112 = vadd.f32 0.0, %v1111
      %v1113 = vpop.f32.mrb[0].mxu0
      %v1114 = vpop.f32.mrb[0].mxu0
      %1115 = vdwg.mxu0
      %v1116 = vadd.f32 %v276, %v1110
      %v1117 = vadd.f32 %v277, %v1112
      %v1118 = vxor.u32 %v1116, 2147483648
      %v1119 = vxor.u32 %v1117, 2147483648
      %v1120 = vmul.f32 %v1118, 1.442695
      %v1121 = vpow.pop %v1120
      %v1122 = vmul.f32 %v1119, 1.442695
      %v1123 = vpow.pop %v1122
      %v1124 = vadd.f32 %v1121, 1.0
      %v1125 = vadd.f32 %v1123, 1.0
      %v1126 = vrcp.pop %v1124
      %v1127 = vmul.f32 1.0, %v1126
      %v1128 = vrcp.pop %v1125
      %v1129 = vmul.f32 1.0, %v1128
      %v1130 = vmul.f32 %v707, %v265
      %v1131 = vmul.f32 %v709, %v266
      %v1132 = vmul.f32 %v492, %v913
      %v1133 = vmul.f32 %v494, %v914
      %v1134 = vadd.f32 %v1130, %v1132
      %v1135 = vadd.f32 %v1131, %v1133
      %v1136 = vtanh.pop %v1134
      %v1137 = vtanh.pop %v1135
      %v1138 = vmul.f32 %v1127, %v1136
      %v1139 = vmul.f32 %v1129, %v1137
      %v1140 = vpack.c.bf16 %v1138, %v1138
      %v1141 = vpack.c.bf16 %v1139, %v1139
      %1142 = vmatprep.subr.bf16.mxu0 %v377
      %1143 = vmatpush1.bf16.msra.mxu0 %v376
      %1144 = vmatprep.subr.bf16.mxu0 %v379
      %1145 = vmatpush1.bf16.msra.mxu0 %v378
      %1146 = vmatprep.subr.bf16.mxu0 %v381
      %1147 = vmatpush1.bf16.msra.mxu0 %v380
      %1148 = vmatprep.subr.bf16.mxu0 %v383
      %1149 = vmatpush1.bf16.msra.mxu0 %v382
      %1150 = vmatprep.subr.bf16.mxu0 %v385
      %1151 = vmatpush1.bf16.msra.mxu0 %v384
      %1152 = vmatprep.subr.bf16.mxu0 %v387
      %1153 = vmatpush1.bf16.msra.mxu0 %v386
      %1154 = vmatprep.subr.bf16.mxu0 %v389
      %1155 = vmatpush1.bf16.msra.mxu0 %v388
      %1156 = vmatprep.subr.bf16.mxu0 %v391
      %1157 = vmatpush1.bf16.msra.mxu0 %v390
      %1158 = vmatprep.subr.bf16.mxu0 %v393
      %1159 = vmatpush1.bf16.msra.mxu0 %v392
      %1160 = vmatprep.subr.bf16.mxu0 %v395
      %1161 = vmatpush1.bf16.msra.mxu0 %v394
      %1162 = vmatprep.subr.bf16.mxu0 %v397
      %1163 = vmatpush1.bf16.msra.mxu0 %v396
      %1164 = vmatprep.subr.bf16.mxu0 %v399
      %1165 = vmatpush1.bf16.msra.mxu0 %v398
      %1166 = vmatprep.subr.bf16.mxu0 %v401
      %1167 = vmatpush1.bf16.msra.mxu0 %v400
      %1168 = vmatprep.subr.bf16.mxu0 %v403
      %1169 = vmatpush1.bf16.msra.mxu0 %v402
      %1170 = vmatprep.subr.bf16.mxu0 %v405
      %1171 = vmatpush1.bf16.msra.mxu0 %v404
      %1172 = vmatprep.subr.bf16.mxu0 %v407
      %1173 = vmatpush1.bf16.msra.mxu0 %v406
      %1174 = vmatprep.mubr.bf16.mxu0 %v1141
      %1175 = vmatmul.mubr.bf16.gmra.mrb[0].mxu0 %v1140
      %v1176 = vpop.f32.mrb[0].mxu0
      %v1177 = vadd.f32 0.0, %v1176
      %v1178 = vpop.f32.mrb[0].mxu0
      %v1179 = vadd.f32 0.0, %v1178
      %v1180 = vpop.f32.mrb[0].mxu0
      %v1181 = vpop.f32.mrb[0].mxu0
      %1182 = vdwg.mxu0
      %v1185 = vrot.slane %v1177, 7
      %v1186 = vrot.slane %v1179, 7
      %v1189 = vadd.f32 %v270, %v1185
      %v1190 = vadd.f32 %v271, %v1186
      %v1191 = vxor.u32 %v1189, 2147483648
      %v1192 = vxor.u32 %v1190, 2147483648
      %v1193 = vmul.f32 %v1191, 1.442695
      %v1194 = vpow.pop %v1193
      %v1195 = vmul.f32 %v1192, 1.442695
      %v1196 = vpow.pop %v1195
      %v1197 = vadd.f32 %v1194, 1.0
      %v1198 = vadd.f32 %v1196, 1.0
      %v1199 = vrcp.pop %v1197
      %v1200 = vmul.f32 1.0, %v1199
      %v1201 = vrcp.pop %v1198
      %v1202 = vmul.f32 1.0, %v1201
      %1203 = vmatprep.subr.bf16.mxu0 %v592
      %1204 = vmatpush1.bf16.msra.mxu0 %v591
      %1205 = vmatprep.subr.bf16.mxu0 %v594
      %1206 = vmatpush1.bf16.msra.mxu0 %v593
      %1207 = vmatprep.subr.bf16.mxu0 %v596
      %1208 = vmatpush1.bf16.msra.mxu0 %v595
      %1209 = vmatprep.subr.bf16.mxu0 %v598
      %1210 = vmatpush1.bf16.msra.mxu0 %v597
      %1211 = vmatprep.subr.bf16.mxu0 %v600
      %1212 = vmatpush1.bf16.msra.mxu0 %v599
      %1213 = vmatprep.subr.bf16.mxu0 %v602
      %1214 = vmatpush1.bf16.msra.mxu0 %v601
      %1215 = vmatprep.subr.bf16.mxu0 %v604
      %1216 = vmatpush1.bf16.msra.mxu0 %v603
      %1217 = vmatprep.subr.bf16.mxu0 %v606
      %1218 = vmatpush1.bf16.msra.mxu0 %v605
      %1219 = vmatprep.subr.bf16.mxu0 %v608
      %1220 = vmatpush1.bf16.msra.mxu0 %v607
      %1221 = vmatprep.subr.bf16.mxu0 %v610
      %1222 = vmatpush1.bf16.msra.mxu0 %v609
      %1223 = vmatprep.subr.bf16.mxu0 %v612
      %1224 = vmatpush1.bf16.msra.mxu0 %v611
      %1225 = vmatprep.subr.bf16.mxu0 %v614
      %1226 = vmatpush1.bf16.msra.mxu0 %v613
      %1227 = vmatprep.subr.bf16.mxu0 %v616
      %1228 = vmatpush1.bf16.msra.mxu0 %v615
      %1229 = vmatprep.subr.bf16.mxu0 %v618
      %1230 = vmatpush1.bf16.msra.mxu0 %v617
      %1231 = vmatprep.subr.bf16.mxu0 %v620
      %1232 = vmatpush1.bf16.msra.mxu0 %v619
      %1233 = vmatprep.subr.bf16.mxu0 %v622
      %1234 = vmatpush1.bf16.msra.mxu0 %v621
      %1235 = vmatprep.mubr.bf16.mxu0 %v1141
      %1236 = vmatmul.mubr.bf16.gmra.mrb[0].mxu0 %v1140
      %v1237 = vpop.f32.mrb[0].mxu0
      %v1238 = vadd.f32 0.0, %v1237
      %v1239 = vpop.f32.mrb[0].mxu0
      %v1240 = vadd.f32 0.0, %v1239
      %v1241 = vpop.f32.mrb[0].mxu0
      %v1242 = vpop.f32.mrb[0].mxu0
      %1243 = vdwg.mxu0
      %v1246 = vrot.slane %v1238, 7
      %v1247 = vrot.slane %v1240, 7
      %v1250 = vadd.f32 %v272, %v1246
      %v1251 = vadd.f32 %v273, %v1247
      %v1252 = vxor.u32 %v1250, 2147483648
      %v1253 = vxor.u32 %v1251, 2147483648
      %v1254 = vmul.f32 %v1252, 1.442695
      %v1255 = vpow.pop %v1254
      %v1256 = vmul.f32 %v1253, 1.442695
      %v1257 = vpow.pop %v1256
      %v1258 = vadd.f32 %v1255, 1.0
      %v1259 = vadd.f32 %v1257, 1.0
      %v1260 = vrcp.pop %v1258
      %v1261 = vmul.f32 1.0, %v1260
      %v1262 = vrcp.pop %v1259
      %v1263 = vmul.f32 1.0, %v1262
      %1264 = vmatprep.subr.bf16.mxu0 %v807
      %1265 = vmatpush1.bf16.msra.mxu0 %v806
      %1266 = vmatprep.subr.bf16.mxu0 %v809
      %1267 = vmatpush1.bf16.msra.mxu0 %v808
      %1268 = vmatprep.subr.bf16.mxu0 %v811
      %1269 = vmatpush1.bf16.msra.mxu0 %v810
      %1270 = vmatprep.subr.bf16.mxu0 %v813
      %1271 = vmatpush1.bf16.msra.mxu0 %v812
      %1272 = vmatprep.subr.bf16.mxu0 %v815
      %1273 = vmatpush1.bf16.msra.mxu0 %v814
      %1274 = vmatprep.subr.bf16.mxu0 %v817
      %1275 = vmatpush1.bf16.msra.mxu0 %v816
      %1276 = vmatprep.subr.bf16.mxu0 %v819
      %1277 = vmatpush1.bf16.msra.mxu0 %v818
      %1278 = vmatprep.subr.bf16.mxu0 %v821
      %1279 = vmatpush1.bf16.msra.mxu0 %v820
      %1280 = vmatprep.subr.bf16.mxu0 %v823
      %1281 = vmatpush1.bf16.msra.mxu0 %v822
      %1282 = vmatprep.subr.bf16.mxu0 %v825
      %1283 = vmatpush1.bf16.msra.mxu0 %v824
      %1284 = vmatprep.subr.bf16.mxu0 %v827
      %1285 = vmatpush1.bf16.msra.mxu0 %v826
      %1286 = vmatprep.subr.bf16.mxu0 %v829
      %1287 = vmatpush1.bf16.msra.mxu0 %v828
      %1288 = vmatprep.subr.bf16.mxu0 %v831
      %1289 = vmatpush1.bf16.msra.mxu0 %v830
      %1290 = vmatprep.subr.bf16.mxu0 %v833
      %1291 = vmatpush1.bf16.msra.mxu0 %v832
      %1292 = vmatprep.subr.bf16.mxu0 %v835
      %1293 = vmatpush1.bf16.msra.mxu0 %v834
      %1294 = vmatprep.subr.bf16.mxu0 %v837
      %1295 = vmatpush1.bf16.msra.mxu0 %v836
      %1296 = vmatprep.mubr.bf16.mxu0 %v1141
      %1297 = vmatmul.mubr.bf16.gmra.mrb[0].mxu0 %v1140
      %v1298 = vpop.f32.mrb[0].mxu0
      %v1299 = vadd.f32 0.0, %v1298
      %v1300 = vpop.f32.mrb[0].mxu0
      %v1301 = vadd.f32 0.0, %v1300
      %v1302 = vpop.f32.mrb[0].mxu0
      %v1303 = vpop.f32.mrb[0].mxu0
      %1304 = vdwg.mxu0
      %v1307 = vrot.slane %v1299, 7
      %v1308 = vrot.slane %v1301, 7
      %v1311 = vadd.f32 %v274, %v1307
      %v1312 = vadd.f32 %v275, %v1308
      %v1313 = vtanh.pop %v1311
      %v1314 = vtanh.pop %v1312
      %1315 = vmatprep.subr.bf16.mxu0 %v1012
      %1316 = vmatpush1.bf16.msra.mxu0 %v1011
      %1317 = vmatprep.subr.bf16.mxu0 %v1014
      %1318 = vmatpush1.bf16.msra.mxu0 %v1013
      %1319 = vmatprep.subr.bf16.mxu0 %v1016
      %1320 = vmatpush1.bf16.msra.mxu0 %v1015
      %1321 = vmatprep.subr.bf16.mxu0 %v1018
      %1322 = vmatpush1.bf16.msra.mxu0 %v1017
      %1323 = vmatprep.subr.bf16.mxu0 %v1020
      %1324 = vmatpush1.bf16.msra.mxu0 %v1019
      %1325 = vmatprep.subr.bf16.mxu0 %v1022
      %1326 = vmatpush1.bf16.msra.mxu0 %v1021
      %1327 = vmatprep.subr.bf16.mxu0 %v1024
      %1328 = vmatpush1.bf16.msra.mxu0 %v1023
      %1329 = vmatprep.subr.bf16.mxu0 %v1026
      %1330 = vmatpush1.bf16.msra.mxu0 %v1025
      %1331 = vmatprep.subr.bf16.mxu0 %v1028
      %1332 = vmatpush1.bf16.msra.mxu0 %v1027
      %1333 = vmatprep.subr.bf16.mxu0 %v1030
      %1334 = vmatpush1.bf16.msra.mxu0 %v1029
      %1335 = vmatprep.subr.bf16.mxu0 %v1032
      %1336 = vmatpush1.bf16.msra.mxu0 %v1031
      %1337 = vmatprep.subr.bf16.mxu0 %v1034
      %1338 = vmatpush1.bf16.msra.mxu0 %v1033
      %1339 = vmatprep.subr.bf16.mxu0 %v1036
      %1340 = vmatpush1.bf16.msra.mxu0 %v1035
      %1341 = vmatprep.subr.bf16.mxu0 %v1038
      %1342 = vmatpush1.bf16.msra.mxu0 %v1037
      %1343 = vmatprep.subr.bf16.mxu0 %v1040
      %1344 = vmatpush1.bf16.msra.mxu0 %v1039
      %1345 = vmatprep.subr.bf16.mxu0 %v1042
      %1346 = vmatpush1.bf16.msra.mxu0 %v1041
      %1347 = vmatprep.mubr.bf16.mxu0 %v1141
      %1348 = vmatmul.mubr.bf16.gmra.mrb[0].mxu0 %v1140
      %v1349 = vpop.f32.mrb[0].mxu0
      %v1350 = vadd.f32 0.0, %v1349
      %v1351 = vpop.f32.mrb[0].mxu0
      %v1352 = vadd.f32 0.0, %v1351
      %v1353 = vpop.f32.mrb[0].mxu0
      %v1354 = vpop.f32.mrb[0].mxu0
      %1355 = vdwg.mxu0
      %v1358 = vrot.slane %v1350, 7
      %v1359 = vrot.slane %v1352, 7
      %v1362 = vadd.f32 %v276, %v1358
      %v1363 = vadd.f32 %v277, %v1359
      %v1364 = vxor.u32 %v1362, 2147483648
      %v1365 = vxor.u32 %v1363, 2147483648
      %v1366 = vmul.f32 %v1364, 1.442695
      %v1367 = vpow.pop %v1366
      %v1368 = vmul.f32 %v1365, 1.442695
      %v1369 = vpow.pop %v1368
      %v1370 = vadd.f32 %v1367, 1.0
      %v1371 = vadd.f32 %v1369, 1.0
      %v1372 = vrcp.pop %v1370
      %v1373 = vmul.f32 1.0, %v1372
      %v1374 = vrcp.pop %v1371
      %v1375 = vmul.f32 1.0, %v1374
      %v1378 = vrot.slane %v1134, 7
      %v1379 = vrot.slane %v1135, 7
      %v1382 = vmul.f32 %v1261, %v1378
      %v1383 = vmul.f32 %v1263, %v1379
      %v1384 = vmul.f32 %v1200, %v1313
      %v1385 = vmul.f32 %v1202, %v1314
      %v1386 = vadd.f32 %v1382, %v1384
      %v1387 = vadd.f32 %v1383, %v1385
      %v1388 = vtanh.pop %v1386
      %v1389 = vtanh.pop %v1387
      %v1390 = vmul.f32 %v1373, %v1388
      %v1391 = vmul.f32 %v1375, %v1389
      %v1392 = vpack.c.bf16 %v1390, %v1390
      %v1393 = vpack.c.bf16 %v1391, %v1391
      %v1395 = vshrl.u32 %v1392, 16
      %v1398 = vshrl.u32 %v1393, 16
      %1402 = vmatprep.subr.bf16.mxu0 %v377
      %1403 = vmatpush1.bf16.msra.mxu0 %v376
      %1404 = vmatprep.subr.bf16.mxu0 %v379
      %1405 = vmatpush1.bf16.msra.mxu0 %v378
      %1406 = vmatprep.subr.bf16.mxu0 %v381
      %1407 = vmatpush1.bf16.msra.mxu0 %v380
      %1408 = vmatprep.subr.bf16.mxu0 %v383
      %1409 = vmatpush1.bf16.msra.mxu0 %v382
      %1410 = vmatprep.subr.bf16.mxu0 %v385
      %1411 = vmatpush1.bf16.msra.mxu0 %v384
      %1412 = vmatprep.subr.bf16.mxu0 %v387
      %1413 = vmatpush1.bf16.msra.mxu0 %v386
      %1414 = vmatprep.subr.bf16.mxu0 %v389
      %1415 = vmatpush1.bf16.msra.mxu0 %v388
      %1416 = vmatprep.subr.bf16.mxu0 %v391
      %1417 = vmatpush1.bf16.msra.mxu0 %v390
      %1418 = vmatprep.subr.bf16.mxu0 %v393
      %1419 = vmatpush1.bf16.msra.mxu0 %v392
      %1420 = vmatprep.subr.bf16.mxu0 %v395
      %1421 = vmatpush1.bf16.msra.mxu0 %v394
      %1422 = vmatprep.subr.bf16.mxu0 %v397
      %1423 = vmatpush1.bf16.msra.mxu0 %v396
      %1424 = vmatprep.subr.bf16.mxu0 %v399
      %1425 = vmatpush1.bf16.msra.mxu0 %v398
      %1426 = vmatprep.subr.bf16.mxu0 %v401
      %1427 = vmatpush1.bf16.msra.mxu0 %v400
      %1428 = vmatprep.subr.bf16.mxu0 %v403
      %1429 = vmatpush1.bf16.msra.mxu0 %v402
      %1430 = vmatprep.subr.bf16.mxu0 %v405
      %1431 = vmatpush1.bf16.msra.mxu0 %v404
      %1432 = vmatprep.subr.bf16.mxu0 %v407
      %1433 = vmatpush1.bf16.msra.mxu0 %v406
      %1434 = vmatprep.mubr.bf16.mxu0 %v1398
      %1435 = vmatmul.mubr.bf16.gmra.mrb[0].mxu0 %v1395
      %v1436 = vpop.f32.mrb[0].mxu0
      %v1437 = vadd.f32 0.0, %v1436
      %v1438 = vpop.f32.mrb[0].mxu0
      %v1439 = vadd.f32 0.0, %v1438
      %v1440 = vpop.f32.mrb[0].mxu0
      %v1441 = vpop.f32.mrb[0].mxu0
      %1442 = vdwg.mxu0
      %v1445 = vrot.slane %v1437, 6
      %v1446 = vrot.slane %v1439, 6
      %v1449 = vadd.f32 %v270, %v1445
      %v1450 = vadd.f32 %v271, %v1446
      %v1451 = vxor.u32 %v1449, 2147483648
      %v1452 = vxor.u32 %v1450, 2147483648
      %v1453 = vmul.f32 %v1451, 1.442695
      %v1454 = vpow.pop %v1453
      %v1455 = vmul.f32 %v1452, 1.442695
      %v1456 = vpow.pop %v1455
      %v1457 = vadd.f32 %v1454, 1.0
      %v1458 = vadd.f32 %v1456, 1.0
      %v1459 = vrcp.pop %v1457
      %v1460 = vmul.f32 1.0, %v1459
      %v1461 = vrcp.pop %v1458
      %v1462 = vmul.f32 1.0, %v1461
      %1463 = vmatprep.subr.bf16.mxu0 %v592
      %1464 = vmatpush1.bf16.msra.mxu0 %v591
      %1465 = vmatprep.subr.bf16.mxu0 %v594
      %1466 = vmatpush1.bf16.msra.mxu0 %v593
      %1467 = vmatprep.subr.bf16.mxu0 %v596
      %1468 = vmatpush1.bf16.msra.mxu0 %v595
      %1469 = vmatprep.subr.bf16.mxu0 %v598
      %1470 = vmatpush1.bf16.msra.mxu0 %v597
      %1471 = vmatprep.subr.bf16.mxu0 %v600
      %1472 = vmatpush1.bf16.msra.mxu0 %v599
      %1473 = vmatprep.subr.bf16.mxu0 %v602
      %1474 = vmatpush1.bf16.msra.mxu0 %v601
      %1475 = vmatprep.subr.bf16.mxu0 %v604
      %1476 = vmatpush1.bf16.msra.mxu0 %v603
      %1477 = vmatprep.subr.bf16.mxu0 %v606
      %1478 = vmatpush1.bf16.msra.mxu0 %v605
      %1479 = vmatprep.subr.bf16.mxu0 %v608
      %1480 = vmatpush1.bf16.msra.mxu0 %v607
      %1481 = vmatprep.subr.bf16.mxu0 %v610
      %1482 = vmatpush1.bf16.msra.mxu0 %v609
      %1483 = vmatprep.subr.bf16.mxu0 %v612
      %1484 = vmatpush1.bf16.msra.mxu0 %v611
      %1485 = vmatprep.subr.bf16.mxu0 %v614
      %1486 = vmatpush1.bf16.msra.mxu0 %v613
      %1487 = vmatprep.subr.bf16.mxu0 %v616
      %1488 = vmatpush1.bf16.msra.mxu0 %v615
      %1489 = vmatprep.subr.bf16.mxu0 %v618
      %1490 = vmatpush1.bf16.msra.mxu0 %v617
      %1491 = vmatprep.subr.bf16.mxu0 %v620
      %1492 = vmatpush1.bf16.msra.mxu0 %v619
      %1493 = vmatprep.subr.bf16.mxu0 %v622
      %1494 = vmatpush1.bf16.msra.mxu0 %v621
      %1495 = vmatprep.mubr.bf16.mxu0 %v1398
      %1496 = vmatmul.mubr.bf16.gmra.mrb[0].mxu0 %v1395
      %v1497 = vpop.f32.mrb[0].mxu0
      %v1498 = vadd.f32 0.0, %v1497
      %v1499 = vpop.f32.mrb[0].mxu0
      %v1500 = vadd.f32 0.0, %v1499
      %v1501 = vpop.f32.mrb[0].mxu0
      %v1502 = vpop.f32.mrb[0].mxu0
      %1503 = vdwg.mxu0
      %v1506 = vrot.slane %v1498, 6
      %v1507 = vrot.slane %v1500, 6
      %v1510 = vadd.f32 %v272, %v1506
      %v1511 = vadd.f32 %v273, %v1507
      %v1512 = vxor.u32 %v1510, 2147483648
      %v1513 = vxor.u32 %v1511, 2147483648
      %v1514 = vmul.f32 %v1512, 1.442695
      %v1515 = vpow.pop %v1514
      %v1516 = vmul.f32 %v1513, 1.442695
      %v1517 = vpow.pop %v1516
      %v1518 = vadd.f32 %v1515, 1.0
      %v1519 = vadd.f32 %v1517, 1.0
      %v1520 = vrcp.pop %v1518
      %v1521 = vmul.f32 1.0, %v1520
      %v1522 = vrcp.pop %v1519
      %v1523 = vmul.f32 1.0, %v1522
      %1524 = vmatprep.subr.bf16.mxu0 %v807
      %1525 = vmatpush1.bf16.msra.mxu0 %v806
      %1526 = vmatprep.subr.bf16.mxu0 %v809
      %1527 = vmatpush1.bf16.msra.mxu0 %v808
      %1528 = vmatprep.subr.bf16.mxu0 %v811
      %1529 = vmatpush1.bf16.msra.mxu0 %v810
      %1530 = vmatprep.subr.bf16.mxu0 %v813
      %1531 = vmatpush1.bf16.msra.mxu0 %v812
      %1532 = vmatprep.subr.bf16.mxu0 %v815
      %1533 = vmatpush1.bf16.msra.mxu0 %v814
      %1534 = vmatprep.subr.bf16.mxu0 %v817
      %1535 = vmatpush1.bf16.msra.mxu0 %v816
      %1536 = vmatprep.subr.bf16.mxu0 %v819
      %1537 = vmatpush1.bf16.msra.mxu0 %v818
      %1538 = vmatprep.subr.bf16.mxu0 %v821
      %1539 = vmatpush1.bf16.msra.mxu0 %v820
      %1540 = vmatprep.subr.bf16.mxu0 %v823
      %1541 = vmatpush1.bf16.msra.mxu0 %v822
      %1542 = vmatprep.subr.bf16.mxu0 %v825
      %1543 = vmatpush1.bf16.msra.mxu0 %v824
      %1544 = vmatprep.subr.bf16.mxu0 %v827
      %1545 = vmatpush1.bf16.msra.mxu0 %v826
      %1546 = vmatprep.subr.bf16.mxu0 %v829
      %1547 = vmatpush1.bf16.msra.mxu0 %v828
      %1548 = vmatprep.subr.bf16.mxu0 %v831
      %1549 = vmatpush1.bf16.msra.mxu0 %v830
      %1550 = vmatprep.subr.bf16.mxu0 %v833
      %1551 = vmatpush1.bf16.msra.mxu0 %v832
      %1552 = vmatprep.subr.bf16.mxu0 %v835
      %1553 = vmatpush1.bf16.msra.mxu0 %v834
      %1554 = vmatprep.subr.bf16.mxu0 %v837
      %1555 = vmatpush1.bf16.msra.mxu0 %v836
      %1556 = vmatprep.mubr.bf16.mxu0 %v1398
      %1557 = vmatmul.mubr.bf16.gmra.mrb[0].mxu0 %v1395
      %v1558 = vpop.f32.mrb[0].mxu0
      %v1559 = vadd.f32 0.0, %v1558
      %v1560 = vpop.f32.mrb[0].mxu0
      %v1561 = vadd.f32 0.0, %v1560
      %v1562 = vpop.f32.mrb[0].mxu0
      %v1563 = vpop.f32.mrb[0].mxu0
      %1564 = vdwg.mxu0
      %v1567 = vrot.slane %v1559, 6
      %v1568 = vrot.slane %v1561, 6
      %v1571 = vadd.f32 %v274, %v1567
      %v1572 = vadd.f32 %v275, %v1568
      %v1573 = vtanh.pop %v1571
      %v1574 = vtanh.pop %v1572
      %1575 = vmatprep.subr.bf16.mxu0 %v1012
      %1576 = vmatpush1.bf16.msra.mxu0 %v1011
      %1577 = vmatprep.subr.bf16.mxu0 %v1014
      %1578 = vmatpush1.bf16.msra.mxu0 %v1013
      %1579 = vmatprep.subr.bf16.mxu0 %v1016
      %1580 = vmatpush1.bf16.msra.mxu0 %v1015
      %1581 = vmatprep.subr.bf16.mxu0 %v1018
      %1582 = vmatpush1.bf16.msra.mxu0 %v1017
      %1583 = vmatprep.subr.bf16.mxu0 %v1020
      %1584 = vmatpush1.bf16.msra.mxu0 %v1019
      %1585 = vmatprep.subr.bf16.mxu0 %v1022
      %1586 = vmatpush1.bf16.msra.mxu0 %v1021
      %1587 = vmatprep.subr.bf16.mxu0 %v1024
      %1588 = vmatpush1.bf16.msra.mxu0 %v1023
      %1589 = vmatprep.subr.bf16.mxu0 %v1026
      %1590 = vmatpush1.bf16.msra.mxu0 %v1025
      %1591 = vmatprep.subr.bf16.mxu0 %v1028
      %1592 = vmatpush1.bf16.msra.mxu0 %v1027
      %1593 = vmatprep.subr.bf16.mxu0 %v1030
      %1594 = vmatpush1.bf16.msra.mxu0 %v1029
      %1595 = vmatprep.subr.bf16.mxu0 %v1032
      %1596 = vmatpush1.bf16.msra.mxu0 %v1031
      %1597 = vmatprep.subr.bf16.mxu0 %v1034
      %1598 = vmatpush1.bf16.msra.mxu0 %v1033
      %1599 = vmatprep.subr.bf16.mxu0 %v1036
      %1600 = vmatpush1.bf16.msra.mxu0 %v1035
      %1601 = vmatprep.subr.bf16.mxu0 %v1038
      %1602 = vmatpush1.bf16.msra.mxu0 %v1037
      %1603 = vmatprep.subr.bf16.mxu0 %v1040
      %1604 = vmatpush1.bf16.msra.mxu0 %v1039
      %1605 = vmatprep.subr.bf16.mxu0 %v1042
      %1606 = vmatpush1.bf16.msra.mxu0 %v1041
      %1607 = vmatprep.mubr.bf16.mxu0 %v1398
      %1608 = vmatmul.mubr.bf16.gmra.mrb[0].mxu0 %v1395
      %v1609 = vpop.f32.mrb[0].mxu0
      %v1610 = vadd.f32 0.0, %v1609
      %v1611 = vpop.f32.mrb[0].mxu0
      %v1612 = vadd.f32 0.0, %v1611
      %v1613 = vpop.f32.mrb[0].mxu0
      %v1614 = vpop.f32.mrb[0].mxu0
      %1615 = vdwg.mxu0
      %v1618 = vrot.slane %v1610, 6
      %v1619 = vrot.slane %v1612, 6
      %v1622 = vadd.f32 %v276, %v1618
      %v1623 = vadd.f32 %v277, %v1619
      %v1624 = vxor.u32 %v1622, 2147483648
      %v1625 = vxor.u32 %v1623, 2147483648
      %v1626 = vmul.f32 %v1624, 1.442695
      %v1627 = vpow.pop %v1626
      %v1628 = vmul.f32 %v1625, 1.442695
      %v1629 = vpow.pop %v1628
      %v1630 = vadd.f32 %v1627, 1.0
      %v1631 = vadd.f32 %v1629, 1.0
      %v1632 = vrcp.pop %v1630
      %v1633 = vmul.f32 1.0, %v1632
      %v1634 = vrcp.pop %v1631
      %v1635 = vmul.f32 1.0, %v1634
      %v1638 = vrot.slane %v1386, 7
      %v1639 = vrot.slane %v1387, 7
      %v1642 = vmul.f32 %v1521, %v1638
      %v1643 = vmul.f32 %v1523, %v1639
      %v1644 = vmul.f32 %v1460, %v1573
      %v1645 = vmul.f32 %v1462, %v1574
      %v1646 = vadd.f32 %v1642, %v1644
      %v1647 = vadd.f32 %v1643, %v1645
      %v1648 = vtanh.pop %v1646
      %v1649 = vtanh.pop %v1647
      %v1650 = vmul.f32 %v1633, %v1648
      %v1651 = vmul.f32 %v1635, %v1649
      %v1652 = vpack.c.bf16 %v1650, %v1650
      %v1653 = vpack.c.bf16 %v1651, %v1651
      %v1656 = vrot.slane %v1652, 1
      %v1657 = vrot.slane %v1653, 1
      %1660 = vmatprep.subr.bf16.mxu0 %v377
      %1661 = vmatpush1.bf16.msra.mxu0 %v376
      %1662 = vmatprep.subr.bf16.mxu0 %v379
      %1663 = vmatpush1.bf16.msra.mxu0 %v378
      %1664 = vmatprep.subr.bf16.mxu0 %v381
      %1665 = vmatpush1.bf16.msra.mxu0 %v380
      %1666 = vmatprep.subr.bf16.mxu0 %v383
      %1667 = vmatpush1.bf16.msra.mxu0 %v382
      %1668 = vmatprep.subr.bf16.mxu0 %v385
      %1669 = vmatpush1.bf16.msra.mxu0 %v384
      %1670 = vmatprep.subr.bf16.mxu0 %v387
      %1671 = vmatpush1.bf16.msra.mxu0 %v386
      %1672 = vmatprep.subr.bf16.mxu0 %v389
      %1673 = vmatpush1.bf16.msra.mxu0 %v388
      %1674 = vmatprep.subr.bf16.mxu0 %v391
      %1675 = vmatpush1.bf16.msra.mxu0 %v390
      %1676 = vmatprep.subr.bf16.mxu0 %v393
      %1677 = vmatpush1.bf16.msra.mxu0 %v392
      %1678 = vmatprep.subr.bf16.mxu0 %v395
      %1679 = vmatpush1.bf16.msra.mxu0 %v394
      %1680 = vmatprep.subr.bf16.mxu0 %v397
      %1681 = vmatpush1.bf16.msra.mxu0 %v396
      %1682 = vmatprep.subr.bf16.mxu0 %v399
      %1683 = vmatpush1.bf16.msra.mxu0 %v398
      %1684 = vmatprep.subr.bf16.mxu0 %v401
      %1685 = vmatpush1.bf16.msra.mxu0 %v400
      %1686 = vmatprep.subr.bf16.mxu0 %v403
      %1687 = vmatpush1.bf16.msra.mxu0 %v402
      %1688 = vmatprep.subr.bf16.mxu0 %v405
      %1689 = vmatpush1.bf16.msra.mxu0 %v404
      %1690 = vmatprep.subr.bf16.mxu0 %v407
      %1691 = vmatpush1.bf16.msra.mxu0 %v406
      %1692 = vmatprep.mubr.bf16.mxu0 %v1657
      %1693 = vmatmul.mubr.bf16.gmra.mrb[0].mxu0 %v1656
      %v1694 = vpop.f32.mrb[0].mxu0
      %v1695 = vadd.f32 0.0, %v1694
      %v1696 = vpop.f32.mrb[0].mxu0
      %v1697 = vadd.f32 0.0, %v1696
      %v1698 = vpop.f32.mrb[0].mxu0
      %v1699 = vpop.f32.mrb[0].mxu0
      %1700 = vdwg.mxu0
      %v1703 = vrot.slane %v1695, 5
      %v1704 = vrot.slane %v1697, 5
      %v1707 = vadd.f32 %v270, %v1703
      %v1708 = vadd.f32 %v271, %v1704
      %v1709 = vxor.u32 %v1707, 2147483648
      %v1710 = vxor.u32 %v1708, 2147483648
      %v1711 = vmul.f32 %v1709, 1.442695
      %v1712 = vpow.pop %v1711
      %v1713 = vmul.f32 %v1710, 1.442695
      %v1714 = vpow.pop %v1713
      %v1715 = vadd.f32 %v1712, 1.0
      %v1716 = vadd.f32 %v1714, 1.0
      %v1717 = vrcp.pop %v1715
      %v1718 = vmul.f32 1.0, %v1717
      %v1719 = vrcp.pop %v1716
      %v1720 = vmul.f32 1.0, %v1719
      %1721 = vmatprep.subr.bf16.mxu0 %v592
      %1722 = vmatpush1.bf16.msra.mxu0 %v591
      %1723 = vmatprep.subr.bf16.mxu0 %v594
      %1724 = vmatpush1.bf16.msra.mxu0 %v593
      %1725 = vmatprep.subr.bf16.mxu0 %v596
      %1726 = vmatpush1.bf16.msra.mxu0 %v595
      %1727 = vmatprep.subr.bf16.mxu0 %v598
      %1728 = vmatpush1.bf16.msra.mxu0 %v597
      %1729 = vmatprep.subr.bf16.mxu0 %v600
      %1730 = vmatpush1.bf16.msra.mxu0 %v599
      %1731 = vmatprep.subr.bf16.mxu0 %v602
      %1732 = vmatpush1.bf16.msra.mxu0 %v601
      %1733 = vmatprep.subr.bf16.mxu0 %v604
      %1734 = vmatpush1.bf16.msra.mxu0 %v603
      %1735 = vmatprep.subr.bf16.mxu0 %v606
      %1736 = vmatpush1.bf16.msra.mxu0 %v605
      %1737 = vmatprep.subr.bf16.mxu0 %v608
      %1738 = vmatpush1.bf16.msra.mxu0 %v607
      %1739 = vmatprep.subr.bf16.mxu0 %v610
      %1740 = vmatpush1.bf16.msra.mxu0 %v609
      %1741 = vmatprep.subr.bf16.mxu0 %v612
      %1742 = vmatpush1.bf16.msra.mxu0 %v611
      %1743 = vmatprep.subr.bf16.mxu0 %v614
      %1744 = vmatpush1.bf16.msra.mxu0 %v613
      %1745 = vmatprep.subr.bf16.mxu0 %v616
      %1746 = vmatpush1.bf16.msra.mxu0 %v615
      %1747 = vmatprep.subr.bf16.mxu0 %v618
      %1748 = vmatpush1.bf16.msra.mxu0 %v617
      %1749 = vmatprep.subr.bf16.mxu0 %v620
      %1750 = vmatpush1.bf16.msra.mxu0 %v619
      %1751 = vmatprep.subr.bf16.mxu0 %v622
      %1752 = vmatpush1.bf16.msra.mxu0 %v621
      %1753 = vmatprep.mubr.bf16.mxu0 %v1657
      %1754 = vmatmul.mubr.bf16.gmra.mrb[0].mxu0 %v1656
      %v1755 = vpop.f32.mrb[0].mxu0
      %v1756 = vadd.f32 0.0, %v1755
      %v1757 = vpop.f32.mrb[0].mxu0
      %v1758 = vadd.f32 0.0, %v1757
      %v1759 = vpop.f32.mrb[0].mxu0
      %v1760 = vpop.f32.mrb[0].mxu0
      %1761 = vdwg.mxu0
      %v1764 = vrot.slane %v1756, 5
      %v1765 = vrot.slane %v1758, 5
      %v1768 = vadd.f32 %v272, %v1764
      %v1769 = vadd.f32 %v273, %v1765
      %v1770 = vxor.u32 %v1768, 2147483648
      %v1771 = vxor.u32 %v1769, 2147483648
      %v1772 = vmul.f32 %v1770, 1.442695
      %v1773 = vpow.pop %v1772
      %v1774 = vmul.f32 %v1771, 1.442695
      %v1775 = vpow.pop %v1774
      %v1776 = vadd.f32 %v1773, 1.0
      %v1777 = vadd.f32 %v1775, 1.0
      %v1778 = vrcp.pop %v1776
      %v1779 = vmul.f32 1.0, %v1778
      %v1780 = vrcp.pop %v1777
      %v1781 = vmul.f32 1.0, %v1780
      %1782 = vmatprep.subr.bf16.mxu0 %v807
      %1783 = vmatpush1.bf16.msra.mxu0 %v806
      %1784 = vmatprep.subr.bf16.mxu0 %v809
      %1785 = vmatpush1.bf16.msra.mxu0 %v808
      %1786 = vmatprep.subr.bf16.mxu0 %v811
      %1787 = vmatpush1.bf16.msra.mxu0 %v810
      %1788 = vmatprep.subr.bf16.mxu0 %v813
      %1789 = vmatpush1.bf16.msra.mxu0 %v812
      %1790 = vmatprep.subr.bf16.mxu0 %v815
      %1791 = vmatpush1.bf16.msra.mxu0 %v814
      %1792 = vmatprep.subr.bf16.mxu0 %v817
      %1793 = vmatpush1.bf16.msra.mxu0 %v816
      %1794 = vmatprep.subr.bf16.mxu0 %v819
      %1795 = vmatpush1.bf16.msra.mxu0 %v818
      %1796 = vmatprep.subr.bf16.mxu0 %v821
      %1797 = vmatpush1.bf16.msra.mxu0 %v820
      %1798 = vmatprep.subr.bf16.mxu0 %v823
      %1799 = vmatpush1.bf16.msra.mxu0 %v822
      %1800 = vmatprep.subr.bf16.mxu0 %v825
      %1801 = vmatpush1.bf16.msra.mxu0 %v824
      %1802 = vmatprep.subr.bf16.mxu0 %v827
      %1803 = vmatpush1.bf16.msra.mxu0 %v826
      %1804 = vmatprep.subr.bf16.mxu0 %v829
      %1805 = vmatpush1.bf16.msra.mxu0 %v828
      %1806 = vmatprep.subr.bf16.mxu0 %v831
      %1807 = vmatpush1.bf16.msra.mxu0 %v830
      %1808 = vmatprep.subr.bf16.mxu0 %v833
      %1809 = vmatpush1.bf16.msra.mxu0 %v832
      %1810 = vmatprep.subr.bf16.mxu0 %v835
      %1811 = vmatpush1.bf16.msra.mxu0 %v834
      %1812 = vmatprep.subr.bf16.mxu0 %v837
      %1813 = vmatpush1.bf16.msra.mxu0 %v836
      %1814 = vmatprep.mubr.bf16.mxu0 %v1657
      %1815 = vmatmul.mubr.bf16.gmra.mrb[0].mxu0 %v1656
      %v1816 = vpop.f32.mrb[0].mxu0
      %v1817 = vadd.f32 0.0, %v1816
      %v1818 = vpop.f32.mrb[0].mxu0
      %v1819 = vadd.f32 0.0, %v1818
      %v1820 = vpop.f32.mrb[0].mxu0
      %v1821 = vpop.f32.mrb[0].mxu0
      %1822 = vdwg.mxu0
      %v1825 = vrot.slane %v1817, 5
      %v1826 = vrot.slane %v1819, 5
      %v1829 = vadd.f32 %v274, %v1825
      %v1830 = vadd.f32 %v275, %v1826
      %v1831 = vtanh.pop %v1829
      %v1832 = vtanh.pop %v1830
      %1833 = vmatprep.subr.bf16.mxu0 %v1012
      %1834 = vmatpush1.bf16.msra.mxu0 %v1011
      %1835 = vmatprep.subr.bf16.mxu0 %v1014
      %1836 = vmatpush1.bf16.msra.mxu0 %v1013
      %1837 = vmatprep.subr.bf16.mxu0 %v1016
      %1838 = vmatpush1.bf16.msra.mxu0 %v1015
      %1839 = vmatprep.subr.bf16.mxu0 %v1018
      %1840 = vmatpush1.bf16.msra.mxu0 %v1017
      %1841 = vmatprep.subr.bf16.mxu0 %v1020
      %1842 = vmatpush1.bf16.msra.mxu0 %v1019
      %1843 = vmatprep.subr.bf16.mxu0 %v1022
      %1844 = vmatpush1.bf16.msra.mxu0 %v1021
      %1845 = vmatprep.subr.bf16.mxu0 %v1024
      %1846 = vmatpush1.bf16.msra.mxu0 %v1023
      %1847 = vmatprep.subr.bf16.mxu0 %v1026
      %1848 = vmatpush1.bf16.msra.mxu0 %v1025
      %1849 = vmatprep.subr.bf16.mxu0 %v1028
      %1850 = vmatpush1.bf16.msra.mxu0 %v1027
      %1851 = vmatprep.subr.bf16.mxu0 %v1030
      %1852 = vmatpush1.bf16.msra.mxu0 %v1029
      %1853 = vmatprep.subr.bf16.mxu0 %v1032
      %1854 = vmatpush1.bf16.msra.mxu0 %v1031
      %1855 = vmatprep.subr.bf16.mxu0 %v1034
      %1856 = vmatpush1.bf16.msra.mxu0 %v1033
      %1857 = vmatprep.subr.bf16.mxu0 %v1036
      %1858 = vmatpush1.bf16.msra.mxu0 %v1035
      %1859 = vmatprep.subr.bf16.mxu0 %v1038
      %1860 = vmatpush1.bf16.msra.mxu0 %v1037
      %1861 = vmatprep.subr.bf16.mxu0 %v1040
      %1862 = vmatpush1.bf16.msra.mxu0 %v1039
      %1863 = vmatprep.subr.bf16.mxu0 %v1042
      %1864 = vmatpush1.bf16.msra.mxu0 %v1041
      %1865 = vmatprep.mubr.bf16.mxu0 %v1657
      %1866 = vmatmul.mubr.bf16.gmra.mrb[0].mxu0 %v1656
      %v1867 = vpop.f32.mrb[0].mxu0
      %v1868 = vadd.f32 0.0, %v1867
      %v1869 = vpop.f32.mrb[0].mxu0
      %v1870 = vadd.f32 0.0, %v1869
      %v1871 = vpop.f32.mrb[0].mxu0
      %v1872 = vpop.f32.mrb[0].mxu0
      %1873 = vdwg.mxu0
      %v1876 = vrot.slane %v1868, 5
      %v1877 = vrot.slane %v1870, 5
      %v1880 = vadd.f32 %v276, %v1876
      %v1881 = vadd.f32 %v277, %v1877
      %v1882 = vxor.u32 %v1880, 2147483648
      %v1883 = vxor.u32 %v1881, 2147483648
      %v1884 = vmul.f32 %v1882, 1.442695
      %v1885 = vpow.pop %v1884
      %v1886 = vmul.f32 %v1883, 1.442695
      %v1887 = vpow.pop %v1886
      %v1888 = vadd.f32 %v1885, 1.0
      %v1889 = vadd.f32 %v1887, 1.0
      %v1890 = vrcp.pop %v1888
      %v1891 = vmul.f32 1.0, %v1890
      %v1892 = vrcp.pop %v1889
      %v1893 = vmul.f32 1.0, %v1892
      %v1896 = vrot.slane %v1646, 7
      %v1897 = vrot.slane %v1647, 7
      %v1900 = vmul.f32 %v1779, %v1896
      %v1901 = vmul.f32 %v1781, %v1897
      %v1902 = vmul.f32 %v1718, %v1831
      %v1903 = vmul.f32 %v1720, %v1832
      %v1904 = vadd.f32 %v1900, %v1902
      %v1905 = vadd.f32 %v1901, %v1903
      %v1906 = vtanh.pop %v1904
      %v1907 = vtanh.pop %v1905
      %v1908 = vmul.f32 %v1891, %v1906
      %v1909 = vmul.f32 %v1893, %v1907
      %v1910 = vpack.c.bf16 %v1908, %v1908
      %v1911 = vpack.c.bf16 %v1909, %v1909
      %v1913 = vshrl.u32 %v1910, 16
      %v1915 = vrot.slane %v1913, 1
      %v1917 = vshrl.u32 %v1911, 16
      %v1919 = vrot.slane %v1917, 1
      %1922 = vmatprep.subr.bf16.mxu0 %v377
      %1923 = vmatpush1.bf16.msra.mxu0 %v376
      %1924 = vmatprep.subr.bf16.mxu0 %v379
      %1925 = vmatpush1.bf16.msra.mxu0 %v378
      %1926 = vmatprep.subr.bf16.mxu0 %v381
      %1927 = vmatpush1.bf16.msra.mxu0 %v380
      %1928 = vmatprep.subr.bf16.mxu0 %v383
      %1929 = vmatpush1.bf16.msra.mxu0 %v382
      %1930 = vmatprep.subr.bf16.mxu0 %v385
      %1931 = vmatpush1.bf16.msra.mxu0 %v384
      %1932 = vmatprep.subr.bf16.mxu0 %v387
      %1933 = vmatpush1.bf16.msra.mxu0 %v386
      %1934 = vmatprep.subr.bf16.mxu0 %v389
      %1935 = vmatpush1.bf16.msra.mxu0 %v388
      %1936 = vmatprep.subr.bf16.mxu0 %v391
      %1937 = vmatpush1.bf16.msra.mxu0 %v390
      %1938 = vmatprep.subr.bf16.mxu0 %v393
      %1939 = vmatpush1.bf16.msra.mxu0 %v392
      %1940 = vmatprep.subr.bf16.mxu0 %v395
      %1941 = vmatpush1.bf16.msra.mxu0 %v394
      %1942 = vmatprep.subr.bf16.mxu0 %v397
      %1943 = vmatpush1.bf16.msra.mxu0 %v396
      %1944 = vmatprep.subr.bf16.mxu0 %v399
      %1945 = vmatpush1.bf16.msra.mxu0 %v398
      %1946 = vmatprep.subr.bf16.mxu0 %v401
      %1947 = vmatpush1.bf16.msra.mxu0 %v400
      %1948 = vmatprep.subr.bf16.mxu0 %v403
      %1949 = vmatpush1.bf16.msra.mxu0 %v402
      %1950 = vmatprep.subr.bf16.mxu0 %v405
      %1951 = vmatpush1.bf16.msra.mxu0 %v404
      %1952 = vmatprep.subr.bf16.mxu0 %v407
      %1953 = vmatpush1.bf16.msra.mxu0 %v406
      %1954 = vmatprep.mubr.bf16.mxu0 %v1919
      %1955 = vmatmul.mubr.bf16.gmra.mrb[0].mxu0 %v1915
      %v1956 = vpop.f32.mrb[0].mxu0
      %v1957 = vadd.f32 0.0, %v1956
      %v1958 = vpop.f32.mrb[0].mxu0
      %v1959 = vadd.f32 0.0, %v1958
      %v1960 = vpop.f32.mrb[0].mxu0
      %v1961 = vpop.f32.mrb[0].mxu0
      %1962 = vdwg.mxu0
      %v1965 = vrot.slane %v1957, 4
      %v1966 = vrot.slane %v1959, 4
      %v1969 = vadd.f32 %v270, %v1965
      %v1970 = vadd.f32 %v271, %v1966
      %v1971 = vxor.u32 %v1969, 2147483648
      %v1972 = vxor.u32 %v1970, 2147483648
      %v1973 = vmul.f32 %v1971, 1.442695
      %v1974 = vpow.pop %v1973
      %v1975 = vmul.f32 %v1972, 1.442695
      %v1976 = vpow.pop %v1975
      %v1977 = vadd.f32 %v1974, 1.0
      %v1978 = vadd.f32 %v1976, 1.0
      %v1979 = vrcp.pop %v1977
      %v1980 = vmul.f32 1.0, %v1979
      %v1981 = vrcp.pop %v1978
      %v1982 = vmul.f32 1.0, %v1981
      %1983 = vmatprep.subr.bf16.mxu0 %v592
      %1984 = vmatpush1.bf16.msra.mxu0 %v591
      %1985 = vmatprep.subr.bf16.mxu0 %v594
      %1986 = vmatpush1.bf16.msra.mxu0 %v593
      %1987 = vmatprep.subr.bf16.mxu0 %v596
      %1988 = vmatpush1.bf16.msra.mxu0 %v595
      %1989 = vmatprep.subr.bf16.mxu0 %v598
      %1990 = vmatpush1.bf16.msra.mxu0 %v597
      %1991 = vmatprep.subr.bf16.mxu0 %v600
      %1992 = vmatpush1.bf16.msra.mxu0 %v599
      %1993 = vmatprep.subr.bf16.mxu0 %v602
      %1994 = vmatpush1.bf16.msra.mxu0 %v601
      %1995 = vmatprep.subr.bf16.mxu0 %v604
      %1996 = vmatpush1.bf16.msra.mxu0 %v603
      %1997 = vmatprep.subr.bf16.mxu0 %v606
      %1998 = vmatpush1.bf16.msra.mxu0 %v605
      %1999 = vmatprep.subr.bf16.mxu0 %v608
      %2000 = vmatpush1.bf16.msra.mxu0 %v607
      %2001 = vmatprep.subr.bf16.mxu0 %v610
      %2002 = vmatpush1.bf16.msra.mxu0 %v609
      %2003 = vmatprep.subr.bf16.mxu0 %v612
      %2004 = vmatpush1.bf16.msra.mxu0 %v611
      %2005 = vmatprep.subr.bf16.mxu0 %v614
      %2006 = vmatpush1.bf16.msra.mxu0 %v613
      %2007 = vmatprep.subr.bf16.mxu0 %v616
      %2008 = vmatpush1.bf16.msra.mxu0 %v615
      %2009 = vmatprep.subr.bf16.mxu0 %v618
      %2010 = vmatpush1.bf16.msra.mxu0 %v617
      %2011 = vmatprep.subr.bf16.mxu0 %v620
      %2012 = vmatpush1.bf16.msra.mxu0 %v619
      %2013 = vmatprep.subr.bf16.mxu0 %v622
      %2014 = vmatpush1.bf16.msra.mxu0 %v621
      %2015 = vmatprep.mubr.bf16.mxu0 %v1919
      %2016 = vmatmul.mubr.bf16.gmra.mrb[0].mxu0 %v1915
      %v2017 = vpop.f32.mrb[0].mxu0
      %v2018 = vadd.f32 0.0, %v2017
      %v2019 = vpop.f32.mrb[0].mxu0
      %v2020 = vadd.f32 0.0, %v2019
      %v2021 = vpop.f32.mrb[0].mxu0
      %v2022 = vpop.f32.mrb[0].mxu0
      %2023 = vdwg.mxu0
      %v2026 = vrot.slane %v2018, 4
      %v2027 = vrot.slane %v2020, 4
      %v2030 = vadd.f32 %v272, %v2026
      %v2031 = vadd.f32 %v273, %v2027
      %v2032 = vxor.u32 %v2030, 2147483648
      %v2033 = vxor.u32 %v2031, 2147483648
      %v2034 = vmul.f32 %v2032, 1.442695
      %v2035 = vpow.pop %v2034
      %v2036 = vmul.f32 %v2033, 1.442695
      %v2037 = vpow.pop %v2036
      %v2038 = vadd.f32 %v2035, 1.0
      %v2039 = vadd.f32 %v2037, 1.0
      %v2040 = vrcp.pop %v2038
      %v2041 = vmul.f32 1.0, %v2040
      %v2042 = vrcp.pop %v2039
      %v2043 = vmul.f32 1.0, %v2042
      %2044 = vmatprep.subr.bf16.mxu0 %v807
      %2045 = vmatpush1.bf16.msra.mxu0 %v806
      %2046 = vmatprep.subr.bf16.mxu0 %v809
      %2047 = vmatpush1.bf16.msra.mxu0 %v808
      %2048 = vmatprep.subr.bf16.mxu0 %v811
      %2049 = vmatpush1.bf16.msra.mxu0 %v810
      %2050 = vmatprep.subr.bf16.mxu0 %v813
      %2051 = vmatpush1.bf16.msra.mxu0 %v812
      %2052 = vmatprep.subr.bf16.mxu0 %v815
      %2053 = vmatpush1.bf16.msra.mxu0 %v814
      %2054 = vmatprep.subr.bf16.mxu0 %v817
      %2055 = vmatpush1.bf16.msra.mxu0 %v816
      %2056 = vmatprep.subr.bf16.mxu0 %v819
      %2057 = vmatpush1.bf16.msra.mxu0 %v818
      %2058 = vmatprep.subr.bf16.mxu0 %v821
      %2059 = vmatpush1.bf16.msra.mxu0 %v820
      %2060 = vmatprep.subr.bf16.mxu0 %v823
      %2061 = vmatpush1.bf16.msra.mxu0 %v822
      %2062 = vmatprep.subr.bf16.mxu0 %v825
      %2063 = vmatpush1.bf16.msra.mxu0 %v824
      %2064 = vmatprep.subr.bf16.mxu0 %v827
      %2065 = vmatpush1.bf16.msra.mxu0 %v826
      %2066 = vmatprep.subr.bf16.mxu0 %v829
      %2067 = vmatpush1.bf16.msra.mxu0 %v828
      %2068 = vmatprep.subr.bf16.mxu0 %v831
      %2069 = vmatpush1.bf16.msra.mxu0 %v830
      %2070 = vmatprep.subr.bf16.mxu0 %v833
      %2071 = vmatpush1.bf16.msra.mxu0 %v832
      %2072 = vmatprep.subr.bf16.mxu0 %v835
      %2073 = vmatpush1.bf16.msra.mxu0 %v834
      %2074 = vmatprep.subr.bf16.mxu0 %v837
      %2075 = vmatpush1.bf16.msra.mxu0 %v836
      %2076 = vmatprep.mubr.bf16.mxu0 %v1919
      %2077 = vmatmul.mubr.bf16.gmra.mrb[0].mxu0 %v1915
      %v2078 = vpop.f32.mrb[0].mxu0
      %v2079 = vadd.f32 0.0, %v2078
      %v2080 = vpop.f32.mrb[0].mxu0
      %v2081 = vadd.f32 0.0, %v2080
      %v2082 = vpop.f32.mrb[0].mxu0
      %v2083 = vpop.f32.mrb[0].mxu0
      %2084 = vdwg.mxu0
      %v2087 = vrot.slane %v2079, 4
      %v2088 = vrot.slane %v2081, 4
      %v2091 = vadd.f32 %v274, %v2087
      %v2092 = vadd.f32 %v275, %v2088
      %v2093 = vtanh.pop %v2091
      %v2094 = vtanh.pop %v2092
      %2095 = vmatprep.subr.bf16.mxu0 %v1012
      %2096 = vmatpush1.bf16.msra.mxu0 %v1011
      %2097 = vmatprep.subr.bf16.mxu0 %v1014
      %2098 = vmatpush1.bf16.msra.mxu0 %v1013
      %2099 = vmatprep.subr.bf16.mxu0 %v1016
      %2100 = vmatpush1.bf16.msra.mxu0 %v1015
      %2101 = vmatprep.subr.bf16.mxu0 %v1018
      %2102 = vmatpush1.bf16.msra.mxu0 %v1017
      %2103 = vmatprep.subr.bf16.mxu0 %v1020
      %2104 = vmatpush1.bf16.msra.mxu0 %v1019
      %2105 = vmatprep.subr.bf16.mxu0 %v1022
      %2106 = vmatpush1.bf16.msra.mxu0 %v1021
      %2107 = vmatprep.subr.bf16.mxu0 %v1024
      %2108 = vmatpush1.bf16.msra.mxu0 %v1023
      %2109 = vmatprep.subr.bf16.mxu0 %v1026
      %2110 = vmatpush1.bf16.msra.mxu0 %v1025
      %2111 = vmatprep.subr.bf16.mxu0 %v1028
      %2112 = vmatpush1.bf16.msra.mxu0 %v1027
      %2113 = vmatprep.subr.bf16.mxu0 %v1030
      %2114 = vmatpush1.bf16.msra.mxu0 %v1029
      %2115 = vmatprep.subr.bf16.mxu0 %v1032
      %2116 = vmatpush1.bf16.msra.mxu0 %v1031
      %2117 = vmatprep.subr.bf16.mxu0 %v1034
      %2118 = vmatpush1.bf16.msra.mxu0 %v1033
      %2119 = vmatprep.subr.bf16.mxu0 %v1036
      %2120 = vmatpush1.bf16.msra.mxu0 %v1035
      %2121 = vmatprep.subr.bf16.mxu0 %v1038
      %2122 = vmatpush1.bf16.msra.mxu0 %v1037
      %2123 = vmatprep.subr.bf16.mxu0 %v1040
      %2124 = vmatpush1.bf16.msra.mxu0 %v1039
      %2125 = vmatprep.subr.bf16.mxu0 %v1042
      %2126 = vmatpush1.bf16.msra.mxu0 %v1041
      %2127 = vmatprep.mubr.bf16.mxu0 %v1919
      %2128 = vmatmul.mubr.bf16.gmra.mrb[0].mxu0 %v1915
      %v2129 = vpop.f32.mrb[0].mxu0
      %v2130 = vadd.f32 0.0, %v2129
      %v2131 = vpop.f32.mrb[0].mxu0
      %v2132 = vadd.f32 0.0, %v2131
      %v2133 = vpop.f32.mrb[0].mxu0
      %v2134 = vpop.f32.mrb[0].mxu0
      %2135 = vdwg.mxu0
      %v2138 = vrot.slane %v2130, 4
      %v2139 = vrot.slane %v2132, 4
      %v2142 = vadd.f32 %v276, %v2138
      %v2143 = vadd.f32 %v277, %v2139
      %v2144 = vxor.u32 %v2142, 2147483648
      %v2145 = vxor.u32 %v2143, 2147483648
      %v2146 = vmul.f32 %v2144, 1.442695
      %v2147 = vpow.pop %v2146
      %v2148 = vmul.f32 %v2145, 1.442695
      %v2149 = vpow.pop %v2148
      %v2150 = vadd.f32 %v2147, 1.0
      %v2151 = vadd.f32 %v2149, 1.0
      %v2152 = vrcp.pop %v2150
      %v2153 = vmul.f32 1.0, %v2152
      %v2154 = vrcp.pop %v2151
      %v2155 = vmul.f32 1.0, %v2154
      %v2158 = vrot.slane %v1904, 7
      %v2159 = vrot.slane %v1905, 7
      %v2162 = vmul.f32 %v2041, %v2158
      %v2163 = vmul.f32 %v2043, %v2159
      %v2164 = vmul.f32 %v1980, %v2093
      %v2165 = vmul.f32 %v1982, %v2094
      %v2166 = vadd.f32 %v2162, %v2164
      %v2167 = vadd.f32 %v2163, %v2165
      %v2168 = vtanh.pop %v2166
      %v2169 = vtanh.pop %v2167
      %v2170 = vmul.f32 %v2153, %v2168
      %v2171 = vmul.f32 %v2155, %v2169
      %v2172 = vpack.c.bf16 %v2170, %v2170
      %v2173 = vpack.c.bf16 %v2171, %v2171
      %v2176 = vrot.slane %v2172, 2
      %v2177 = vrot.slane %v2173, 2
      %2180 = vmatprep.subr.bf16.mxu0 %v377
      %2181 = vmatpush1.bf16.msra.mxu0 %v376
      %2182 = vmatprep.subr.bf16.mxu0 %v379
      %2183 = vmatpush1.bf16.msra.mxu0 %v378
      %2184 = vmatprep.subr.bf16.mxu0 %v381
      %2185 = vmatpush1.bf16.msra.mxu0 %v380
      %2186 = vmatprep.subr.bf16.mxu0 %v383
      %2187 = vmatpush1.bf16.msra.mxu0 %v382
      %2188 = vmatprep.subr.bf16.mxu0 %v385
      %2189 = vmatpush1.bf16.msra.mxu0 %v384
      %2190 = vmatprep.subr.bf16.mxu0 %v387
      %2191 = vmatpush1.bf16.msra.mxu0 %v386
      %2192 = vmatprep.subr.bf16.mxu0 %v389
      %2193 = vmatpush1.bf16.msra.mxu0 %v388
      %2194 = vmatprep.subr.bf16.mxu0 %v391
      %2195 = vmatpush1.bf16.msra.mxu0 %v390
      %2196 = vmatprep.subr.bf16.mxu0 %v393
      %2197 = vmatpush1.bf16.msra.mxu0 %v392
      %2198 = vmatprep.subr.bf16.mxu0 %v395
      %2199 = vmatpush1.bf16.msra.mxu0 %v394
      %2200 = vmatprep.subr.bf16.mxu0 %v397
      %2201 = vmatpush1.bf16.msra.mxu0 %v396
      %2202 = vmatprep.subr.bf16.mxu0 %v399
      %2203 = vmatpush1.bf16.msra.mxu0 %v398
      %2204 = vmatprep.subr.bf16.mxu0 %v401
      %2205 = vmatpush1.bf16.msra.mxu0 %v400
      %2206 = vmatprep.subr.bf16.mxu0 %v403
      %2207 = vmatpush1.bf16.msra.mxu0 %v402
      %2208 = vmatprep.subr.bf16.mxu0 %v405
      %2209 = vmatpush1.bf16.msra.mxu0 %v404
      %2210 = vmatprep.subr.bf16.mxu0 %v407
      %2211 = vmatpush1.bf16.msra.mxu0 %v406
      %2212 = vmatprep.mubr.bf16.mxu0 %v2177
      %2213 = vmatmul.mubr.bf16.gmra.mrb[0].mxu0 %v2176
      %v2214 = vpop.f32.mrb[0].mxu0
      %v2215 = vadd.f32 0.0, %v2214
      %v2216 = vpop.f32.mrb[0].mxu0
      %v2217 = vadd.f32 0.0, %v2216
      %v2218 = vpop.f32.mrb[0].mxu0
      %v2219 = vpop.f32.mrb[0].mxu0
      %2220 = vdwg.mxu0
      %v2223 = vrot.slane %v2215, 3
      %v2224 = vrot.slane %v2217, 3
      %v2227 = vadd.f32 %v270, %v2223
      %v2228 = vadd.f32 %v271, %v2224
      %v2229 = vxor.u32 %v2227, 2147483648
      %v2230 = vxor.u32 %v2228, 2147483648
      %v2231 = vmul.f32 %v2229, 1.442695
      %v2232 = vpow.pop %v2231
      %v2233 = vmul.f32 %v2230, 1.442695
      %v2234 = vpow.pop %v2233
      %v2235 = vadd.f32 %v2232, 1.0
      %v2236 = vadd.f32 %v2234, 1.0
      %v2237 = vrcp.pop %v2235
      %v2238 = vmul.f32 1.0, %v2237
      %v2239 = vrcp.pop %v2236
      %v2240 = vmul.f32 1.0, %v2239
      %2241 = vmatprep.subr.bf16.mxu0 %v592
      %2242 = vmatpush1.bf16.msra.mxu0 %v591
      %2243 = vmatprep.subr.bf16.mxu0 %v594
      %2244 = vmatpush1.bf16.msra.mxu0 %v593
      %2245 = vmatprep.subr.bf16.mxu0 %v596
      %2246 = vmatpush1.bf16.msra.mxu0 %v595
      %2247 = vmatprep.subr.bf16.mxu0 %v598
      %2248 = vmatpush1.bf16.msra.mxu0 %v597
      %2249 = vmatprep.subr.bf16.mxu0 %v600
      %2250 = vmatpush1.bf16.msra.mxu0 %v599
      %2251 = vmatprep.subr.bf16.mxu0 %v602
      %2252 = vmatpush1.bf16.msra.mxu0 %v601
      %2253 = vmatprep.subr.bf16.mxu0 %v604
      %2254 = vmatpush1.bf16.msra.mxu0 %v603
      %2255 = vmatprep.subr.bf16.mxu0 %v606
      %2256 = vmatpush1.bf16.msra.mxu0 %v605
      %2257 = vmatprep.subr.bf16.mxu0 %v608
      %2258 = vmatpush1.bf16.msra.mxu0 %v607
      %2259 = vmatprep.subr.bf16.mxu0 %v610
      %2260 = vmatpush1.bf16.msra.mxu0 %v609
      %2261 = vmatprep.subr.bf16.mxu0 %v612
      %2262 = vmatpush1.bf16.msra.mxu0 %v611
      %2263 = vmatprep.subr.bf16.mxu0 %v614
      %2264 = vmatpush1.bf16.msra.mxu0 %v613
      %2265 = vmatprep.subr.bf16.mxu0 %v616
      %2266 = vmatpush1.bf16.msra.mxu0 %v615
      %2267 = vmatprep.subr.bf16.mxu0 %v618
      %2268 = vmatpush1.bf16.msra.mxu0 %v617
      %2269 = vmatprep.subr.bf16.mxu0 %v620
      %2270 = vmatpush1.bf16.msra.mxu0 %v619
      %2271 = vmatprep.subr.bf16.mxu0 %v622
      %2272 = vmatpush1.bf16.msra.mxu0 %v621
      %2273 = vmatprep.mubr.bf16.mxu0 %v2177
      %2274 = vmatmul.mubr.bf16.gmra.mrb[0].mxu0 %v2176
      %v2275 = vpop.f32.mrb[0].mxu0
      %v2276 = vadd.f32 0.0, %v2275
      %v2277 = vpop.f32.mrb[0].mxu0
      %v2278 = vadd.f32 0.0, %v2277
      %v2279 = vpop.f32.mrb[0].mxu0
      %v2280 = vpop.f32.mrb[0].mxu0
      %2281 = vdwg.mxu0
      %v2284 = vrot.slane %v2276, 3
      %v2285 = vrot.slane %v2278, 3
      %v2288 = vadd.f32 %v272, %v2284
      %v2289 = vadd.f32 %v273, %v2285
      %v2290 = vxor.u32 %v2288, 2147483648
      %v2291 = vxor.u32 %v2289, 2147483648
      %v2292 = vmul.f32 %v2290, 1.442695
      %v2293 = vpow.pop %v2292
      %v2294 = vmul.f32 %v2291, 1.442695
      %v2295 = vpow.pop %v2294
      %v2296 = vadd.f32 %v2293, 1.0
      %v2297 = vadd.f32 %v2295, 1.0
      %v2298 = vrcp.pop %v2296
      %v2299 = vmul.f32 1.0, %v2298
      %v2300 = vrcp.pop %v2297
      %v2301 = vmul.f32 1.0, %v2300
      %2302 = vmatprep.subr.bf16.mxu0 %v807
      %2303 = vmatpush1.bf16.msra.mxu0 %v806
      %2304 = vmatprep.subr.bf16.mxu0 %v809
      %2305 = vmatpush1.bf16.msra.mxu0 %v808
      %2306 = vmatprep.subr.bf16.mxu0 %v811
      %2307 = vmatpush1.bf16.msra.mxu0 %v810
      %2308 = vmatprep.subr.bf16.mxu0 %v813
      %2309 = vmatpush1.bf16.msra.mxu0 %v812
      %2310 = vmatprep.subr.bf16.mxu0 %v815
      %2311 = vmatpush1.bf16.msra.mxu0 %v814
      %2312 = vmatprep.subr.bf16.mxu0 %v817
      %2313 = vmatpush1.bf16.msra.mxu0 %v816
      %2314 = vmatprep.subr.bf16.mxu0 %v819
      %2315 = vmatpush1.bf16.msra.mxu0 %v818
      %2316 = vmatprep.subr.bf16.mxu0 %v821
      %2317 = vmatpush1.bf16.msra.mxu0 %v820
      %2318 = vmatprep.subr.bf16.mxu0 %v823
      %2319 = vmatpush1.bf16.msra.mxu0 %v822
      %2320 = vmatprep.subr.bf16.mxu0 %v825
      %2321 = vmatpush1.bf16.msra.mxu0 %v824
      %2322 = vmatprep.subr.bf16.mxu0 %v827
      %2323 = vmatpush1.bf16.msra.mxu0 %v826
      %2324 = vmatprep.subr.bf16.mxu0 %v829
      %2325 = vmatpush1.bf16.msra.mxu0 %v828
      %2326 = vmatprep.subr.bf16.mxu0 %v831
      %2327 = vmatpush1.bf16.msra.mxu0 %v830
      %2328 = vmatprep.subr.bf16.mxu0 %v833
      %2329 = vmatpush1.bf16.msra.mxu0 %v832
      %2330 = vmatprep.subr.bf16.mxu0 %v835
      %2331 = vmatpush1.bf16.msra.mxu0 %v834
      %2332 = vmatprep.subr.bf16.mxu0 %v837
      %2333 = vmatpush1.bf16.msra.mxu0 %v836
      %2334 = vmatprep.mubr.bf16.mxu0 %v2177
      %2335 = vmatmul.mubr.bf16.gmra.mrb[0].mxu0 %v2176
      %v2336 = vpop.f32.mrb[0].mxu0
      %v2337 = vadd.f32 0.0, %v2336
      %v2338 = vpop.f32.mrb[0].mxu0
      %v2339 = vadd.f32 0.0, %v2338
      %v2340 = vpop.f32.mrb[0].mxu0
      %v2341 = vpop.f32.mrb[0].mxu0
      %2342 = vdwg.mxu0
      %v2345 = vrot.slane %v2337, 3
      %v2346 = vrot.slane %v2339, 3
      %v2349 = vadd.f32 %v274, %v2345
      %v2350 = vadd.f32 %v275, %v2346
      %v2351 = vtanh.pop %v2349
      %v2352 = vtanh.pop %v2350
      %2353 = vmatprep.subr.bf16.mxu0 %v1012
      %2354 = vmatpush1.bf16.msra.mxu0 %v1011
      %2355 = vmatprep.subr.bf16.mxu0 %v1014
      %2356 = vmatpush1.bf16.msra.mxu0 %v1013
      %2357 = vmatprep.subr.bf16.mxu0 %v1016
      %2358 = vmatpush1.bf16.msra.mxu0 %v1015
      %2359 = vmatprep.subr.bf16.mxu0 %v1018
      %2360 = vmatpush1.bf16.msra.mxu0 %v1017
      %2361 = vmatprep.subr.bf16.mxu0 %v1020
      %2362 = vmatpush1.bf16.msra.mxu0 %v1019
      %2363 = vmatprep.subr.bf16.mxu0 %v1022
      %2364 = vmatpush1.bf16.msra.mxu0 %v1021
      %2365 = vmatprep.subr.bf16.mxu0 %v1024
      %2366 = vmatpush1.bf16.msra.mxu0 %v1023
      %2367 = vmatprep.subr.bf16.mxu0 %v1026
      %2368 = vmatpush1.bf16.msra.mxu0 %v1025
      %2369 = vmatprep.subr.bf16.mxu0 %v1028
      %2370 = vmatpush1.bf16.msra.mxu0 %v1027
      %2371 = vmatprep.subr.bf16.mxu0 %v1030
      %2372 = vmatpush1.bf16.msra.mxu0 %v1029
      %2373 = vmatprep.subr.bf16.mxu0 %v1032
      %2374 = vmatpush1.bf16.msra.mxu0 %v1031
      %2375 = vmatprep.subr.bf16.mxu0 %v1034
      %2376 = vmatpush1.bf16.msra.mxu0 %v1033
      %2377 = vmatprep.subr.bf16.mxu0 %v1036
      %2378 = vmatpush1.bf16.msra.mxu0 %v1035
      %2379 = vmatprep.subr.bf16.mxu0 %v1038
      %2380 = vmatpush1.bf16.msra.mxu0 %v1037
      %2381 = vmatprep.subr.bf16.mxu0 %v1040
      %2382 = vmatpush1.bf16.msra.mxu0 %v1039
      %2383 = vmatprep.subr.bf16.mxu0 %v1042
      %2384 = vmatpush1.bf16.msra.mxu0 %v1041
      %2385 = vmatprep.mubr.bf16.mxu0 %v2177
      %2386 = vmatmul.mubr.bf16.gmra.mrb[0].mxu0 %v2176
      %v2387 = vpop.f32.mrb[0].mxu0
      %v2388 = vadd.f32 0.0, %v2387
      %v2389 = vpop.f32.mrb[0].mxu0
      %v2390 = vadd.f32 0.0, %v2389
      %v2391 = vpop.f32.mrb[0].mxu0
      %v2392 = vpop.f32.mrb[0].mxu0
      %2393 = vdwg.mxu0
      %v2396 = vrot.slane %v2388, 3
      %v2397 = vrot.slane %v2390, 3
      %v2400 = vadd.f32 %v276, %v2396
      %v2401 = vadd.f32 %v277, %v2397
      %v2402 = vxor.u32 %v2400, 2147483648
      %v2403 = vxor.u32 %v2401, 2147483648
      %v2404 = vmul.f32 %v2402, 1.442695
      %v2405 = vpow.pop %v2404
      %v2406 = vmul.f32 %v2403, 1.442695
      %v2407 = vpow.pop %v2406
      %v2408 = vadd.f32 %v2405, 1.0
      %v2409 = vadd.f32 %v2407, 1.0
      %v2410 = vrcp.pop %v2408
      %v2411 = vmul.f32 1.0, %v2410
      %v2412 = vrcp.pop %v2409
      %v2413 = vmul.f32 1.0, %v2412
      %v2416 = vrot.slane %v2166, 7
      %v2417 = vrot.slane %v2167, 7
      %v2420 = vmul.f32 %v2299, %v2416
      %v2421 = vmul.f32 %v2301, %v2417
      %v2422 = vmul.f32 %v2238, %v2351
      %v2423 = vmul.f32 %v2240, %v2352
      %v2424 = vadd.f32 %v2420, %v2422
      %v2425 = vadd.f32 %v2421, %v2423
      %v2426 = vtanh.pop %v2424
      %v2427 = vtanh.pop %v2425
      %v2428 = vmul.f32 %v2411, %v2426
      %v2429 = vmul.f32 %v2413, %v2427
      %v2430 = vpack.c.bf16 %v2428, %v2428
      %v2431 = vpack.c.bf16 %v2429, %v2429
      %v2433 = vshrl.u32 %v2430, 16
      %v2435 = vrot.slane %v2433, 2
      %v2437 = vshrl.u32 %v2431, 16
      %v2439 = vrot.slane %v2437, 2
      %2442 = vmatprep.subr.bf16.mxu0 %v377
      %2443 = vmatpush1.bf16.msra.mxu0 %v376
      %2444 = vmatprep.subr.bf16.mxu0 %v379
      %2445 = vmatpush1.bf16.msra.mxu0 %v378
      %2446 = vmatprep.subr.bf16.mxu0 %v381
      %2447 = vmatpush1.bf16.msra.mxu0 %v380
      %2448 = vmatprep.subr.bf16.mxu0 %v383
      %2449 = vmatpush1.bf16.msra.mxu0 %v382
      %2450 = vmatprep.subr.bf16.mxu0 %v385
      %2451 = vmatpush1.bf16.msra.mxu0 %v384
      %2452 = vmatprep.subr.bf16.mxu0 %v387
      %2453 = vmatpush1.bf16.msra.mxu0 %v386
      %2454 = vmatprep.subr.bf16.mxu0 %v389
      %2455 = vmatpush1.bf16.msra.mxu0 %v388
      %2456 = vmatprep.subr.bf16.mxu0 %v391
      %2457 = vmatpush1.bf16.msra.mxu0 %v390
      %2458 = vmatprep.subr.bf16.mxu0 %v393
      %2459 = vmatpush1.bf16.msra.mxu0 %v392
      %2460 = vmatprep.subr.bf16.mxu0 %v395
      %2461 = vmatpush1.bf16.msra.mxu0 %v394
      %2462 = vmatprep.subr.bf16.mxu0 %v397
      %2463 = vmatpush1.bf16.msra.mxu0 %v396
      %2464 = vmatprep.subr.bf16.mxu0 %v399
      %2465 = vmatpush1.bf16.msra.mxu0 %v398
      %2466 = vmatprep.subr.bf16.mxu0 %v401
      %2467 = vmatpush1.bf16.msra.mxu0 %v400
      %2468 = vmatprep.subr.bf16.mxu0 %v403
      %2469 = vmatpush1.bf16.msra.mxu0 %v402
      %2470 = vmatprep.subr.bf16.mxu0 %v405
      %2471 = vmatpush1.bf16.msra.mxu0 %v404
      %2472 = vmatprep.subr.bf16.mxu0 %v407
      %2473 = vmatpush1.bf16.msra.mxu0 %v406
      %2474 = vmatprep.mubr.bf16.mxu0 %v2439
      %2475 = vmatmul.mubr.bf16.gmra.mrb[0].mxu0 %v2435
      %v2476 = vpop.f32.mrb[0].mxu0
      %v2477 = vadd.f32 0.0, %v2476
      %v2478 = vpop.f32.mrb[0].mxu0
      %v2479 = vadd.f32 0.0, %v2478
      %v2480 = vpop.f32.mrb[0].mxu0
      %v2481 = vpop.f32.mrb[0].mxu0
      %2482 = vdwg.mxu0
      %v2485 = vrot.slane %v2477, 2
      %v2486 = vrot.slane %v2479, 2
      %v2489 = vadd.f32 %v270, %v2485
      %v2490 = vadd.f32 %v271, %v2486
      %v2491 = vxor.u32 %v2489, 2147483648
      %v2492 = vxor.u32 %v2490, 2147483648
      %v2493 = vmul.f32 %v2491, 1.442695
      %v2494 = vpow.pop %v2493
      %v2495 = vmul.f32 %v2492, 1.442695
      %v2496 = vpow.pop %v2495
      %v2497 = vadd.f32 %v2494, 1.0
      %v2498 = vadd.f32 %v2496, 1.0
      %v2499 = vrcp.pop %v2497
      %v2500 = vmul.f32 1.0, %v2499
      %v2501 = vrcp.pop %v2498
      %v2502 = vmul.f32 1.0, %v2501
      %2503 = vmatprep.subr.bf16.mxu0 %v592
      %2504 = vmatpush1.bf16.msra.mxu0 %v591
      %2505 = vmatprep.subr.bf16.mxu0 %v594
      %2506 = vmatpush1.bf16.msra.mxu0 %v593
      %2507 = vmatprep.subr.bf16.mxu0 %v596
      %2508 = vmatpush1.bf16.msra.mxu0 %v595
      %2509 = vmatprep.subr.bf16.mxu0 %v598
      %2510 = vmatpush1.bf16.msra.mxu0 %v597
      %2511 = vmatprep.subr.bf16.mxu0 %v600
      %2512 = vmatpush1.bf16.msra.mxu0 %v599
      %2513 = vmatprep.subr.bf16.mxu0 %v602
      %2514 = vmatpush1.bf16.msra.mxu0 %v601
      %2515 = vmatprep.subr.bf16.mxu0 %v604
      %2516 = vmatpush1.bf16.msra.mxu0 %v603
      %2517 = vmatprep.subr.bf16.mxu0 %v606
      %2518 = vmatpush1.bf16.msra.mxu0 %v605
      %2519 = vmatprep.subr.bf16.mxu0 %v608
      %2520 = vmatpush1.bf16.msra.mxu0 %v607
      %2521 = vmatprep.subr.bf16.mxu0 %v610
      %2522 = vmatpush1.bf16.msra.mxu0 %v609
      %2523 = vmatprep.subr.bf16.mxu0 %v612
      %2524 = vmatpush1.bf16.msra.mxu0 %v611
      %2525 = vmatprep.subr.bf16.mxu0 %v614
      %2526 = vmatpush1.bf16.msra.mxu0 %v613
      %2527 = vmatprep.subr.bf16.mxu0 %v616
      %2528 = vmatpush1.bf16.msra.mxu0 %v615
      %2529 = vmatprep.subr.bf16.mxu0 %v618
      %2530 = vmatpush1.bf16.msra.mxu0 %v617
      %2531 = vmatprep.subr.bf16.mxu0 %v620
      %2532 = vmatpush1.bf16.msra.mxu0 %v619
      %2533 = vmatprep.subr.bf16.mxu0 %v622
      %2534 = vmatpush1.bf16.msra.mxu0 %v621
      %2535 = vmatprep.mubr.bf16.mxu0 %v2439
      %2536 = vmatmul.mubr.bf16.gmra.mrb[0].mxu0 %v2435
      %v2537 = vpop.f32.mrb[0].mxu0
      %v2538 = vadd.f32 0.0, %v2537
      %v2539 = vpop.f32.mrb[0].mxu0
      %v2540 = vadd.f32 0.0, %v2539
      %v2541 = vpop.f32.mrb[0].mxu0
      %v2542 = vpop.f32.mrb[0].mxu0
      %2543 = vdwg.mxu0
      %v2546 = vrot.slane %v2538, 2
      %v2547 = vrot.slane %v2540, 2
      %v2550 = vadd.f32 %v272, %v2546
      %v2551 = vadd.f32 %v273, %v2547
      %v2552 = vxor.u32 %v2550, 2147483648
      %v2553 = vxor.u32 %v2551, 2147483648
      %v2554 = vmul.f32 %v2552, 1.442695
      %v2555 = vpow.pop %v2554
      %v2556 = vmul.f32 %v2553, 1.442695
      %v2557 = vpow.pop %v2556
      %v2558 = vadd.f32 %v2555, 1.0
      %v2559 = vadd.f32 %v2557, 1.0
      %v2560 = vrcp.pop %v2558
      %v2561 = vmul.f32 1.0, %v2560
      %v2562 = vrcp.pop %v2559
      %v2563 = vmul.f32 1.0, %v2562
      %2564 = vmatprep.subr.bf16.mxu0 %v807
      %2565 = vmatpush1.bf16.msra.mxu0 %v806
      %2566 = vmatprep.subr.bf16.mxu0 %v809
      %2567 = vmatpush1.bf16.msra.mxu0 %v808
      %2568 = vmatprep.subr.bf16.mxu0 %v811
      %2569 = vmatpush1.bf16.msra.mxu0 %v810
      %2570 = vmatprep.subr.bf16.mxu0 %v813
      %2571 = vmatpush1.bf16.msra.mxu0 %v812
      %2572 = vmatprep.subr.bf16.mxu0 %v815
      %2573 = vmatpush1.bf16.msra.mxu0 %v814
      %2574 = vmatprep.subr.bf16.mxu0 %v817
      %2575 = vmatpush1.bf16.msra.mxu0 %v816
      %2576 = vmatprep.subr.bf16.mxu0 %v819
      %2577 = vmatpush1.bf16.msra.mxu0 %v818
      %2578 = vmatprep.subr.bf16.mxu0 %v821
      %2579 = vmatpush1.bf16.msra.mxu0 %v820
      %2580 = vmatprep.subr.bf16.mxu0 %v823
      %2581 = vmatpush1.bf16.msra.mxu0 %v822
      %2582 = vmatprep.subr.bf16.mxu0 %v825
      %2583 = vmatpush1.bf16.msra.mxu0 %v824
      %2584 = vmatprep.subr.bf16.mxu0 %v827
      %2585 = vmatpush1.bf16.msra.mxu0 %v826
      %2586 = vmatprep.subr.bf16.mxu0 %v829
      %2587 = vmatpush1.bf16.msra.mxu0 %v828
      %2588 = vmatprep.subr.bf16.mxu0 %v831
      %2589 = vmatpush1.bf16.msra.mxu0 %v830
      %2590 = vmatprep.subr.bf16.mxu0 %v833
      %2591 = vmatpush1.bf16.msra.mxu0 %v832
      %2592 = vmatprep.subr.bf16.mxu0 %v835
      %2593 = vmatpush1.bf16.msra.mxu0 %v834
      %2594 = vmatprep.subr.bf16.mxu0 %v837
      %2595 = vmatpush1.bf16.msra.mxu0 %v836
      %2596 = vmatprep.mubr.bf16.mxu0 %v2439
      %2597 = vmatmul.mubr.bf16.gmra.mrb[0].mxu0 %v2435
      %v2598 = vpop.f32.mrb[0].mxu0
      %v2599 = vadd.f32 0.0, %v2598
      %v2600 = vpop.f32.mrb[0].mxu0
      %v2601 = vadd.f32 0.0, %v2600
      %v2602 = vpop.f32.mrb[0].mxu0
      %v2603 = vpop.f32.mrb[0].mxu0
      %2604 = vdwg.mxu0
      %v2607 = vrot.slane %v2599, 2
      %v2608 = vrot.slane %v2601, 2
      %v2611 = vadd.f32 %v274, %v2607
      %v2612 = vadd.f32 %v275, %v2608
      %v2613 = vtanh.pop %v2611
      %v2614 = vtanh.pop %v2612
      %2615 = vmatprep.subr.bf16.mxu0 %v1012
      %2616 = vmatpush1.bf16.msra.mxu0 %v1011
      %2617 = vmatprep.subr.bf16.mxu0 %v1014
      %2618 = vmatpush1.bf16.msra.mxu0 %v1013
      %2619 = vmatprep.subr.bf16.mxu0 %v1016
      %2620 = vmatpush1.bf16.msra.mxu0 %v1015
      %2621 = vmatprep.subr.bf16.mxu0 %v1018
      %2622 = vmatpush1.bf16.msra.mxu0 %v1017
      %2623 = vmatprep.subr.bf16.mxu0 %v1020
      %2624 = vmatpush1.bf16.msra.mxu0 %v1019
      %2625 = vmatprep.subr.bf16.mxu0 %v1022
      %2626 = vmatpush1.bf16.msra.mxu0 %v1021
      %2627 = vmatprep.subr.bf16.mxu0 %v1024
      %2628 = vmatpush1.bf16.msra.mxu0 %v1023
      %2629 = vmatprep.subr.bf16.mxu0 %v1026
      %2630 = vmatpush1.bf16.msra.mxu0 %v1025
      %2631 = vmatprep.subr.bf16.mxu0 %v1028
      %2632 = vmatpush1.bf16.msra.mxu0 %v1027
      %2633 = vmatprep.subr.bf16.mxu0 %v1030
      %2634 = vmatpush1.bf16.msra.mxu0 %v1029
      %2635 = vmatprep.subr.bf16.mxu0 %v1032
      %2636 = vmatpush1.bf16.msra.mxu0 %v1031
      %2637 = vmatprep.subr.bf16.mxu0 %v1034
      %2638 = vmatpush1.bf16.msra.mxu0 %v1033
      %2639 = vmatprep.subr.bf16.mxu0 %v1036
      %2640 = vmatpush1.bf16.msra.mxu0 %v1035
      %2641 = vmatprep.subr.bf16.mxu0 %v1038
      %2642 = vmatpush1.bf16.msra.mxu0 %v1037
      %2643 = vmatprep.subr.bf16.mxu0 %v1040
      %2644 = vmatpush1.bf16.msra.mxu0 %v1039
      %2645 = vmatprep.subr.bf16.mxu0 %v1042
      %2646 = vmatpush1.bf16.msra.mxu0 %v1041
      %2647 = vmatprep.mubr.bf16.mxu0 %v2439
      %2648 = vmatmul.mubr.bf16.gmra.mrb[0].mxu0 %v2435
      %v2649 = vpop.f32.mrb[0].mxu0
      %v2650 = vadd.f32 0.0, %v2649
      %v2651 = vpop.f32.mrb[0].mxu0
      %v2652 = vadd.f32 0.0, %v2651
      %v2653 = vpop.f32.mrb[0].mxu0
      %v2654 = vpop.f32.mrb[0].mxu0
      %2655 = vdwg.mxu0
      %v2658 = vrot.slane %v2650, 2
      %v2659 = vrot.slane %v2652, 2
      %v2662 = vadd.f32 %v276, %v2658
      %v2663 = vadd.f32 %v277, %v2659
      %v2664 = vxor.u32 %v2662, 2147483648
      %v2665 = vxor.u32 %v2663, 2147483648
      %v2666 = vmul.f32 %v2664, 1.442695
      %v2667 = vpow.pop %v2666
      %v2668 = vmul.f32 %v2665, 1.442695
      %v2669 = vpow.pop %v2668
      %v2670 = vadd.f32 %v2667, 1.0
      %v2671 = vadd.f32 %v2669, 1.0
      %v2672 = vrcp.pop %v2670
      %v2673 = vmul.f32 1.0, %v2672
      %v2674 = vrcp.pop %v2671
      %v2675 = vmul.f32 1.0, %v2674
      %v2678 = vrot.slane %v2424, 7
      %v2679 = vrot.slane %v2425, 7
      %v2682 = vmul.f32 %v2561, %v2678
      %v2683 = vmul.f32 %v2563, %v2679
      %v2684 = vmul.f32 %v2500, %v2613
      %v2685 = vmul.f32 %v2502, %v2614
      %v2686 = vadd.f32 %v2682, %v2684
      %v2687 = vadd.f32 %v2683, %v2685
      %v2688 = vtanh.pop %v2686
      %v2689 = vtanh.pop %v2687
      %v2690 = vmul.f32 %v2673, %v2688
      %v2691 = vmul.f32 %v2675, %v2689
      %v2692 = vpack.c.bf16 %v2690, %v2690
      %v2693 = vpack.c.bf16 %v2691, %v2691
      %v2696 = vrot.slane %v2692, 3
      %v2697 = vrot.slane %v2693, 3
      %2700 = vmatprep.subr.bf16.mxu0 %v377
      %2701 = vmatpush1.bf16.msra.mxu0 %v376
      %2702 = vmatprep.subr.bf16.mxu0 %v379
      %2703 = vmatpush1.bf16.msra.mxu0 %v378
      %2704 = vmatprep.subr.bf16.mxu0 %v381
      %2705 = vmatpush1.bf16.msra.mxu0 %v380
      %2706 = vmatprep.subr.bf16.mxu0 %v383
      %2707 = vmatpush1.bf16.msra.mxu0 %v382
      %2708 = vmatprep.subr.bf16.mxu0 %v385
      %2709 = vmatpush1.bf16.msra.mxu0 %v384
      %2710 = vmatprep.subr.bf16.mxu0 %v387
      %2711 = vmatpush1.bf16.msra.mxu0 %v386
      %2712 = vmatprep.subr.bf16.mxu0 %v389
      %2713 = vmatpush1.bf16.msra.mxu0 %v388
      %2714 = vmatprep.subr.bf16.mxu0 %v391
      %2715 = vmatpush1.bf16.msra.mxu0 %v390
      %2716 = vmatprep.subr.bf16.mxu0 %v393
      %2717 = vmatpush1.bf16.msra.mxu0 %v392
      %2718 = vmatprep.subr.bf16.mxu0 %v395
      %2719 = vmatpush1.bf16.msra.mxu0 %v394
      %2720 = vmatprep.subr.bf16.mxu0 %v397
      %2721 = vmatpush1.bf16.msra.mxu0 %v396
      %2722 = vmatprep.subr.bf16.mxu0 %v399
      %2723 = vmatpush1.bf16.msra.mxu0 %v398
      %2724 = vmatprep.subr.bf16.mxu0 %v401
      %2725 = vmatpush1.bf16.msra.mxu0 %v400
      %2726 = vmatprep.subr.bf16.mxu0 %v403
      %2727 = vmatpush1.bf16.msra.mxu0 %v402
      %2728 = vmatprep.subr.bf16.mxu0 %v405
      %2729 = vmatpush1.bf16.msra.mxu0 %v404
      %2730 = vmatprep.subr.bf16.mxu0 %v407
      %2731 = vmatpush1.bf16.msra.mxu0 %v406
      %2732 = vmatprep.mubr.bf16.mxu0 %v2697
      %2733 = vmatmul.mubr.bf16.gmra.mrb[0].mxu0 %v2696
      %v2734 = vpop.f32.mrb[0].mxu0
      %v2735 = vadd.f32 0.0, %v2734
      %v2736 = vpop.f32.mrb[0].mxu0
      %v2737 = vadd.f32 0.0, %v2736
      %v2738 = vpop.f32.mrb[0].mxu0
      %v2739 = vpop.f32.mrb[0].mxu0
      %2740 = vdwg.mxu0
      %v2743 = vrot.slane %v2735, 1
      %v2744 = vrot.slane %v2737, 1
      %v2747 = vadd.f32 %v270, %v2743
      %v2748 = vadd.f32 %v271, %v2744
      %v2749 = vxor.u32 %v2747, 2147483648
      %v2750 = vxor.u32 %v2748, 2147483648
      %v2751 = vmul.f32 %v2749, 1.442695
      %v2752 = vpow.pop %v2751
      %v2753 = vmul.f32 %v2750, 1.442695
      %v2754 = vpow.pop %v2753
      %v2755 = vadd.f32 %v2752, 1.0
      %v2756 = vadd.f32 %v2754, 1.0
      %v2757 = vrcp.pop %v2755
      %v2758 = vmul.f32 1.0, %v2757
      %v2759 = vrcp.pop %v2756
      %v2760 = vmul.f32 1.0, %v2759
      %2761 = vmatprep.subr.bf16.mxu0 %v592
      %2762 = vmatpush1.bf16.msra.mxu0 %v591
      %2763 = vmatprep.subr.bf16.mxu0 %v594
      %2764 = vmatpush1.bf16.msra.mxu0 %v593
      %2765 = vmatprep.subr.bf16.mxu0 %v596
      %2766 = vmatpush1.bf16.msra.mxu0 %v595
      %2767 = vmatprep.subr.bf16.mxu0 %v598
      %2768 = vmatpush1.bf16.msra.mxu0 %v597
      %2769 = vmatprep.subr.bf16.mxu0 %v600
      %2770 = vmatpush1.bf16.msra.mxu0 %v599
      %2771 = vmatprep.subr.bf16.mxu0 %v602
      %2772 = vmatpush1.bf16.msra.mxu0 %v601
      %2773 = vmatprep.subr.bf16.mxu0 %v604
      %2774 = vmatpush1.bf16.msra.mxu0 %v603
      %2775 = vmatprep.subr.bf16.mxu0 %v606
      %2776 = vmatpush1.bf16.msra.mxu0 %v605
      %2777 = vmatprep.subr.bf16.mxu0 %v608
      %2778 = vmatpush1.bf16.msra.mxu0 %v607
      %2779 = vmatprep.subr.bf16.mxu0 %v610
      %2780 = vmatpush1.bf16.msra.mxu0 %v609
      %2781 = vmatprep.subr.bf16.mxu0 %v612
      %2782 = vmatpush1.bf16.msra.mxu0 %v611
      %2783 = vmatprep.subr.bf16.mxu0 %v614
      %2784 = vmatpush1.bf16.msra.mxu0 %v613
      %2785 = vmatprep.subr.bf16.mxu0 %v616
      %2786 = vmatpush1.bf16.msra.mxu0 %v615
      %2787 = vmatprep.subr.bf16.mxu0 %v618
      %2788 = vmatpush1.bf16.msra.mxu0 %v617
      %2789 = vmatprep.subr.bf16.mxu0 %v620
      %2790 = vmatpush1.bf16.msra.mxu0 %v619
      %2791 = vmatprep.subr.bf16.mxu0 %v622
      %2792 = vmatpush1.bf16.msra.mxu0 %v621
      %2793 = vmatprep.mubr.bf16.mxu0 %v2697
      %2794 = vmatmul.mubr.bf16.gmra.mrb[0].mxu0 %v2696
      %v2795 = vpop.f32.mrb[0].mxu0
      %v2796 = vadd.f32 0.0, %v2795
      %v2797 = vpop.f32.mrb[0].mxu0
      %v2798 = vadd.f32 0.0, %v2797
      %v2799 = vpop.f32.mrb[0].mxu0
      %v2800 = vpop.f32.mrb[0].mxu0
      %2801 = vdwg.mxu0
      %v2804 = vrot.slane %v2796, 1
      %v2805 = vrot.slane %v2798, 1
      %v2808 = vadd.f32 %v272, %v2804
      %v2809 = vadd.f32 %v273, %v2805
      %v2810 = vxor.u32 %v2808, 2147483648
      %v2811 = vxor.u32 %v2809, 2147483648
      %v2812 = vmul.f32 %v2810, 1.442695
      %v2813 = vpow.pop %v2812
      %v2814 = vmul.f32 %v2811, 1.442695
      %v2815 = vpow.pop %v2814
      %v2816 = vadd.f32 %v2813, 1.0
      %v2817 = vadd.f32 %v2815, 1.0
      %v2818 = vrcp.pop %v2816
      %v2819 = vmul.f32 1.0, %v2818
      %v2820 = vrcp.pop %v2817
      %v2821 = vmul.f32 1.0, %v2820
      %2822 = vmatprep.subr.bf16.mxu0 %v807
      %2823 = vmatpush1.bf16.msra.mxu0 %v806
      %2824 = vmatprep.subr.bf16.mxu0 %v809
      %2825 = vmatpush1.bf16.msra.mxu0 %v808
      %2826 = vmatprep.subr.bf16.mxu0 %v811
      %2827 = vmatpush1.bf16.msra.mxu0 %v810
      %2828 = vmatprep.subr.bf16.mxu0 %v813
      %2829 = vmatpush1.bf16.msra.mxu0 %v812
      %2830 = vmatprep.subr.bf16.mxu0 %v815
      %2831 = vmatpush1.bf16.msra.mxu0 %v814
      %2832 = vmatprep.subr.bf16.mxu0 %v817
      %2833 = vmatpush1.bf16.msra.mxu0 %v816
      %2834 = vmatprep.subr.bf16.mxu0 %v819
      %2835 = vmatpush1.bf16.msra.mxu0 %v818
      %2836 = vmatprep.subr.bf16.mxu0 %v821
      %2837 = vmatpush1.bf16.msra.mxu0 %v820
      %2838 = vmatprep.subr.bf16.mxu0 %v823
      %2839 = vmatpush1.bf16.msra.mxu0 %v822
      %2840 = vmatprep.subr.bf16.mxu0 %v825
      %2841 = vmatpush1.bf16.msra.mxu0 %v824
      %2842 = vmatprep.subr.bf16.mxu0 %v827
      %2843 = vmatpush1.bf16.msra.mxu0 %v826
      %2844 = vmatprep.subr.bf16.mxu0 %v829
      %2845 = vmatpush1.bf16.msra.mxu0 %v828
      %2846 = vmatprep.subr.bf16.mxu0 %v831
      %2847 = vmatpush1.bf16.msra.mxu0 %v830
      %2848 = vmatprep.subr.bf16.mxu0 %v833
      %2849 = vmatpush1.bf16.msra.mxu0 %v832
      %2850 = vmatprep.subr.bf16.mxu0 %v835
      %2851 = vmatpush1.bf16.msra.mxu0 %v834
      %2852 = vmatprep.subr.bf16.mxu0 %v837
      %2853 = vmatpush1.bf16.msra.mxu0 %v836
      %2854 = vmatprep.mubr.bf16.mxu0 %v2697
      %2855 = vmatmul.mubr.bf16.gmra.mrb[0].mxu0 %v2696
      %v2856 = vpop.f32.mrb[0].mxu0
      %v2857 = vadd.f32 0.0, %v2856
      %v2858 = vpop.f32.mrb[0].mxu0
      %v2859 = vadd.f32 0.0, %v2858
      %v2860 = vpop.f32.mrb[0].mxu0
      %v2861 = vpop.f32.mrb[0].mxu0
      %2862 = vdwg.mxu0
      %v2865 = vrot.slane %v2857, 1
      %v2866 = vrot.slane %v2859, 1
      %v2869 = vadd.f32 %v274, %v2865
      %v2870 = vadd.f32 %v275, %v2866
      %v2871 = vtanh.pop %v2869
      %v2872 = vtanh.pop %v2870
      %2873 = vmatprep.subr.bf16.mxu0 %v1012
      %2874 = vmatpush1.bf16.msra.mxu0 %v1011
      %2875 = vmatprep.subr.bf16.mxu0 %v1014
      %2876 = vmatpush1.bf16.msra.mxu0 %v1013
      %2877 = vmatprep.subr.bf16.mxu0 %v1016
      %2878 = vmatpush1.bf16.msra.mxu0 %v1015
      %2879 = vmatprep.subr.bf16.mxu0 %v1018
      %2880 = vmatpush1.bf16.msra.mxu0 %v1017
      %2881 = vmatprep.subr.bf16.mxu0 %v1020
      %2882 = vmatpush1.bf16.msra.mxu0 %v1019
      %2883 = vmatprep.subr.bf16.mxu0 %v1022
      %2884 = vmatpush1.bf16.msra.mxu0 %v1021
      %2885 = vmatprep.subr.bf16.mxu0 %v1024
      %2886 = vmatpush1.bf16.msra.mxu0 %v1023
      %2887 = vmatprep.subr.bf16.mxu0 %v1026
      %2888 = vmatpush1.bf16.msra.mxu0 %v1025
      %2889 = vmatprep.subr.bf16.mxu0 %v1028
      %2890 = vmatpush1.bf16.msra.mxu0 %v1027
      %2891 = vmatprep.subr.bf16.mxu0 %v1030
      %2892 = vmatpush1.bf16.msra.mxu0 %v1029
      %2893 = vmatprep.subr.bf16.mxu0 %v1032
      %2894 = vmatpush1.bf16.msra.mxu0 %v1031
      %2895 = vmatprep.subr.bf16.mxu0 %v1034
      %2896 = vmatpush1.bf16.msra.mxu0 %v1033
      %2897 = vmatprep.subr.bf16.mxu0 %v1036
      %2898 = vmatpush1.bf16.msra.mxu0 %v1035
      %2899 = vmatprep.subr.bf16.mxu0 %v1038
      %2900 = vmatpush1.bf16.msra.mxu0 %v1037
      %2901 = vmatprep.subr.bf16.mxu0 %v1040
      %2902 = vmatpush1.bf16.msra.mxu0 %v1039
      %2903 = vmatprep.subr.bf16.mxu0 %v1042
      %2904 = vmatpush1.bf16.msra.mxu0 %v1041
      %2905 = vmatprep.mubr.bf16.mxu0 %v2697
      %2906 = vmatmul.mubr.bf16.gmra.mrb[0].mxu0 %v2696
      %v2907 = vpop.f32.mrb[0].mxu0
      %v2908 = vadd.f32 0.0, %v2907
      %v2909 = vpop.f32.mrb[0].mxu0
      %v2910 = vadd.f32 0.0, %v2909
      %v2911 = vpop.f32.mrb[0].mxu0
      %v2912 = vpop.f32.mrb[0].mxu0
      %2913 = vdwg.mxu0
      %v2916 = vrot.slane %v2908, 1
      %v2917 = vrot.slane %v2910, 1
      %v2920 = vadd.f32 %v276, %v2916
      %v2921 = vadd.f32 %v277, %v2917
      %v2922 = vxor.u32 %v2920, 2147483648
      %v2923 = vxor.u32 %v2921, 2147483648
      %v2924 = vmul.f32 %v2922, 1.442695
      %v2925 = vpow.pop %v2924
      %v2926 = vmul.f32 %v2923, 1.442695
      %v2927 = vpow.pop %v2926
      %v2928 = vadd.f32 %v2925, 1.0
      %v2929 = vadd.f32 %v2927, 1.0
      %v2930 = vrcp.pop %v2928
      %v2931 = vmul.f32 1.0, %v2930
      %v2932 = vrcp.pop %v2929
      %v2933 = vmul.f32 1.0, %v2932
      %v2936 = vrot.slane %v2686, 7
      %v2937 = vrot.slane %v2687, 7
      %v2940 = vmul.f32 %v2819, %v2936
      %v2941 = vmul.f32 %v2821, %v2937
      %v2942 = vmul.f32 %v2758, %v2871
      %v2943 = vmul.f32 %v2760, %v2872
      %v2944 = vadd.f32 %v2940, %v2942
      %v2945 = vadd.f32 %v2941, %v2943
      %v2946 = vtanh.pop %v2944
      %v2947 = vtanh.pop %v2945
      %v2948 = vmul.f32 %v2931, %v2946
      %v2949 = vmul.f32 %v2933, %v2947
      %v2950 = vmul.f32 %v2948, 1.442695
      %v2951 = vpow.pop %v2950
      %v2952 = vmul.f32 %v2949, 1.442695
      %v2953 = vpow.pop %v2952
      %v2954 = vadd.f32 %v2951, 1.0
      %v2955 = vlog2.pop %v2954
      %v2956 = vmul.f32 %v2955, 0.6931472
      %v2957 = vmul.f32 -0.5, %v2951
      %v2958 = vadd.f32 %v2957, 1.0
      %v2959 = vmul.f32 %v2958, %v2951
      %v2960 = vand.u32 2147483647, %v2951
      %vm2961 = vcmp.lt.f32.partialorder %v2960, 0.0004427343
      %v2962 = vsel %vm2961, %v2959, %v2956
      %v2963 = vadd.f32 %v2953, 1.0
      %v2964 = vlog2.pop %v2963
      %v2965 = vmul.f32 %v2964, 0.6931472
      %v2966 = vmul.f32 -0.5, %v2953
      %v2967 = vadd.f32 %v2966, 1.0
      %v2968 = vmul.f32 %v2967, %v2953
      %v2969 = vand.u32 2147483647, %v2953
      %vm2970 = vcmp.lt.f32.partialorder %v2969, 0.0004427343
      %v2971 = vsel %vm2970, %v2968, %v2965
      %v2972 = vtanh.pop %v2962
      %v2973 = vtanh.pop %v2971
      %v2974 = vmul.f32 %v2948, %v2972
      %v2975 = vmul.f32 %v2949, %v2973
      %v2978 = vrot.slane %v2974, 7
      %v2979 = vrot.slane %v2975, 7
      %2982 = vmatprep.subr.mxu0 0.0
      %2983 = vmatpush1.msra.mxu0 %v200
      %2984 = vmatprep.subr.mxu0 0.0
      %2985 = vmatpush1.msra.mxu0 %v201
      %2986 = vmatprep.subr.mxu0 0.0
      %2987 = vmatpush1.msra.mxu0 %v202
      %2988 = vmatprep.subr.mxu0 0.0
      %2989 = vmatpush1.msra.mxu0 %v203
      %2990 = vmatprep.subr.mxu0 0.0
      %2991 = vmatpush1.msra.mxu0 %v204
      %2992 = vmatprep.subr.mxu0 0.0
      %2993 = vmatpush1.msra.mxu0 %v205
      %2994 = vmatprep.subr.mxu0 0.0
      %2995 = vmatpush1.msra.mxu0 %v206
      %2996 = vmatprep.subr.mxu0 0.0
      %2997 = vmatpush1.msra.mxu0 %v207
      %2998 = vmatprep.subr.mxu0 0.0
      %2999 = vmatpush1.msra.mxu0 %v208
      %3000 = vmatprep.subr.mxu0 0.0
      %3001 = vmatpush1.msra.mxu0 %v209
      %3002 = vmatprep.subr.mxu0 0.0
      %3003 = vmatpush1.msra.mxu0 %v210
      %3004 = vmatprep.subr.mxu0 0.0
      %3005 = vmatpush1.msra.mxu0 %v211
      %3006 = vmatprep.subr.mxu0 0.0
      %3007 = vmatpush1.msra.mxu0 %v212
      %3008 = vmatprep.subr.mxu0 0.0
      %3009 = vmatpush1.msra.mxu0 %v213
      %3010 = vmatprep.subr.mxu0 0.0
      %3011 = vmatpush1.msra.mxu0 %v214
      %3012 = vmatprep.subr.mxu0 0.0
      %3013 = vmatpush1.msra.mxu0 %v215
      %3014 = vmatprep.subr.mxu0 0.0
      %3015 = vmatpush1.msra.mxu0 %v216
      %3016 = vmatprep.subr.mxu0 0.0
      %3017 = vmatpush1.msra.mxu0 %v217
      %3018 = vmatprep.subr.mxu0 0.0
      %3019 = vmatpush1.msra.mxu0 %v218
      %3020 = vmatprep.subr.mxu0 0.0
      %3021 = vmatpush1.msra.mxu0 %v219
      %3022 = vmatprep.subr.mxu0 0.0
      %3023 = vmatpush1.msra.mxu0 %v220
      %3024 = vmatprep.subr.mxu0 0.0
      %3025 = vmatpush1.msra.mxu0 %v221
      %3026 = vmatprep.subr.mxu0 0.0
      %3027 = vmatpush1.msra.mxu0 %v222
      %3028 = vmatprep.subr.mxu0 0.0
      %3029 = vmatpush1.msra.mxu0 %v223
      %3030 = vmatprep.subr.mxu0 0.0
      %3031 = vmatpush1.msra.mxu0 %v224
      %3032 = vmatprep.subr.mxu0 0.0
      %3033 = vmatpush1.msra.mxu0 %v225
      %3034 = vmatprep.subr.mxu0 0.0
      %3035 = vmatpush1.msra.mxu0 %v226
      %3036 = vmatprep.subr.mxu0 0.0
      %3037 = vmatpush1.msra.mxu0 %v227
      %3038 = vmatprep.subr.mxu0 0.0
      %3039 = vmatpush1.msra.mxu0 %v228
      %3040 = vmatprep.subr.mxu0 0.0
      %3041 = vmatpush1.msra.mxu0 %v229
      %3042 = vmatprep.subr.mxu0 0.0
      %3043 = vmatpush1.msra.mxu0 %v230
      %3044 = vmatprep.subr.mxu0 0.0
      %3045 = vmatpush1.msra.mxu0 %v231
      %3046 = vmatprep.mubr.f32.mxu0 %v2979
      %3047 = vmatmul.mubr.f32.gmra.mrb[0].mxu0 %v2978
      %v3048 = vpop.f32.mrb[0].mxu0
      %v3049 = vadd.f32 %v232, %v3048
      %v3050 = vpop.f32.mrb[0].mxu0
      %3051 = vdwg.mxu0
      %vm3052 = vcmask 1040384
      %v3053 = vsel %vm3052, %v3049, -inf
      %3054 = vmax.xlane.f32.xlu0 %v3053
      %v3055 = vpop.xlane.xlu0 %3054
      %v3056 = vsub.f32 %v3049, %v3055
      %v3057 = vmul.f32 %v3056, 1.442695
      %v3058 = vpow.pop %v3057
      %v3059 = vsel %vm3052, %v3058, 0.0
      %3060 = vadd.xlane.f32.xlu0 %v3059
      %v3061 = vpop.xlane.xlu0 %3060
      %v3062 = vlog2.pop %v3061
      %v3063 = vmul.f32 %v3062, 0.6931472
      %v3064 = vadd.f32 %v3055, %v3063
      %v3065 = vsub.f32 %v3049, %v3064
      %s3066 = scalar_lea.vmem [#allocation10], %s258
      %3067 = vst [vmem:[%s3066] sm:$0x1] %v3065
      %v3070 = vrot.slane %v2948, 7
      %v3071 = vrot.slane %v2949, 7
      %v3076 = vrot.slane %v2944, 7
      %v3077 = vrot.slane %v2945, 7
    $region38: #{tpu_custom_call.1} parent=1 // loop_footer
      %s262 = sadd.s32 1, %s258
    $region39: #{tpu_custom_call.1} parent=1 // loop_footer_branch
      %257 = sbr.rel target = $region35
    $region40: #{tpu_custom_call.1} parent=1 // loop_exit
      _
    %v3082 = vcombine.low %v263, %v264
    %v3084 = vunpack.c.l.s4 1966171168
    %v3085 = vunpack.c.0.s8 %v3084
    %v3086 = vlaneseq
    %v3087 = vshrl.u32 %v3086, 7
    %v3088 = vsub.s32 %v3085, %v3087
    %v3089 = vrot.slane %v3082, %v3088
    %v3091 = vunpack.c.l.s4 1966171168
    %v3092 = vunpack.c.0.s8 %v3091
    %v3093 = vlaneseq
    %v3094 = vshrl.u32 %v3093, 7
    %v3095 = vsub.s32 %v3092, %v3094
    %v3096 = vrot.slane %v3089, %v3095
    %v3098 = vlaneseq
    %vm3099 = vcmp.ge.s32.totalorder %v3098, 0
    %vm3100 = vcmp.lt.s32.totalorder %v3098, 256
    %vm3101 = vmand %vm3099, %vm3100
    %3102 = vst.msk [vmem:[#allocation2] sm:$0x3] %vm3101, %v3096
    %v3105 = vcombine.low %v265, %v266
    %v3107 = vunpack.c.l.s4 1966171168
    %v3108 = vunpack.c.0.s8 %v3107
    %v3109 = vlaneseq
    %v3110 = vshrl.u32 %v3109, 7
    %v3111 = vsub.s32 %v3108, %v3110
    %v3112 = vrot.slane %v3105, %v3111
    %v3114 = vunpack.c.l.s4 1966171168
    %v3115 = vunpack.c.0.s8 %v3114
    %v3116 = vlaneseq
    %v3117 = vshrl.u32 %v3116, 7
    %v3118 = vsub.s32 %v3115, %v3117
    %v3119 = vrot.slane %v3112, %v3118
    %3121 = vst.msk [vmem:[#allocation3] sm:$0x3] %vm3101, %v3119
    // Predicated region
    $region41: #{tpu_custom_call.1} parent=1 // pred_check
      _
    $region42: #{tpu_custom_call.1} parent=1 // pred_check_branch
      %3123 = sbr.rel (0) target = $region44
    $region43: #{tpu_custom_call.1} parent=1 // pred_region
      %s3125 = ssub.s32 32, 32
      %3126 = vsyncadd [#allocation6], %s3125
      %s3128 = sshll.u32 [#allocation10], 4
      %s3129 = int_to_ptr.vmem [resolvable:$true] %s3128
      %3131 = dma.vmem_to_hbm [thread:$0]  %s3129, 32, %s4, [#allocation6]
    $region44: #{tpu_custom_call.1} parent=1 // pred_fallthru
      _
    // Predicated region
    $region45: #{tpu_custom_call.1} parent=1 // pred_check
      _
    $region46: #{tpu_custom_call.1} parent=1 // pred_check_branch
      %3133 = sbr.rel (0) target = $region48
    $region47: #{tpu_custom_call.1} parent=1 // pred_region
      %3134 = dma.done [#allocation6], 32
    $region48: #{tpu_custom_call.1} parent=1 // pred_fallthru
      _
    %3135 = vsyncpa [#allocation5], 1
    %3136 = vsyncpa [#allocation8], 1
    %3137 = vsyncpa [#allocation6], 1

</llo_original>
